<compile_context>
chip_gen: v5e
topology: v5e:2x2
jax: 0.10.0
libtpu: 0.0.40
codegen_flags: <defaults>
</compile_context>

<pallas_src>
import functools

import jax
import jax.numpy as jnp
from jax.experimental import pallas as pl
from jax.experimental.pallas import tpu as pltpu

_LN_EPS = 1e-5


# ----------------------------- in-kernel helpers -----------------------------

def _layer_norm(x, g, b, eps=_LN_EPS):
    """x: (N, D) f32; g/b: (1, D) f32.  Matches torch.nn.LayerNorm (biased var)."""
    mu = jnp.mean(x, axis=-1, keepdims=True)
    var = jnp.mean(jnp.square(x - mu), axis=-1, keepdims=True)
    return (x - mu) * jax.lax.rsqrt(var + eps) * g + b


def _matmul_bias(x, w, b):
    """x: (N, Din) f32; w: bf16 (Din, Dout); b: f32 (1, Dout)."""
    y = jnp.dot(x.astype(jnp.bfloat16), w, preferred_element_type=jnp.float32)
    return y + b


def _mha(q, k, v, w_o, b_o, num_heads):
    """q: (Lq, D), k/v: (Lk, D) f32; w_o: bf16 (D, D); b_o: f32 (1, D).

    The 1/sqrt(Dh) scale is already folded into the Q projection.  Per-head
    softmax contexts are lane-concatenated back to (Lq, D) so the output
    projection runs as ONE full-contraction-depth MXU matmul (instead of H
    depth-Dh matmuls).
    """
    lq, d = q.shape
    dh = d // num_heads
    ctx = []
    for h in range(num_heads):  # H is small; per-head temporaries stay local
        lo = h * dh
        qh = q[:, lo:lo + dh].astype(jnp.bfloat16)
        kh = k[:, lo:lo + dh].astype(jnp.bfloat16)
        vh = v[:, lo:lo + dh].astype(jnp.bfloat16)
        # scores: (Lq, Lk) = q_h @ k_h^T, f32 accumulation
        s = jax.lax.dot_general(qh, kh, (((1,), (1,)), ((), ())),
                                preferred_element_type=jnp.float32)
        m = jnp.max(s, axis=-1, keepdims=True)
        e = jnp.exp(s - m)
        p = e * pl.reciprocal(jnp.sum(e, axis=-1, keepdims=True), approx=True)
        ctx.append(jnp.dot(p.astype(jnp.bfloat16), vh,
                           preferred_element_type=jnp.float32))       # (Lq, Dh)
    ctx_all = jnp.concatenate(ctx, axis=-1).astype(jnp.bfloat16)      # (Lq, D)
    return jnp.dot(ctx_all, w_o, preferred_element_type=jnp.float32) + b_o


# ------------------------------- fused kernel --------------------------------

def _decoder_kernel(*refs, layer_def, has_final_norm, num_heads):
    """One grid step = (batch element b, decoder layer l).  The residual stream
    and (memory+pos) live in VMEM scratch across the layer axis."""
    tgt_ref, mem_ref, pos_ref, qpos_ref = refs[:4]
    n_layer_leaves = layer_def.num_leaves
    layer_refs = refs[4:4 + n_layer_leaves]
    idx = 4 + n_layer_leaves
    if has_final_norm:
        fng_ref, fnb_ref = refs[idx], refs[idx + 1]
        idx += 2
    out_ref = refs[idx]
    x_scr, mk_scr = refs[idx + 1], refs[idx + 2]

    lw = jax.tree_util.tree_unflatten(layer_def, layer_refs)

    l = pl.program_id(1)

    @pl.when(l == 0)
    def _init():
        x_scr[...] = tgt_ref[0].astype(jnp.float32)
        mk_scr[...] = (mem_ref[0].astype(jnp.float32)
                       + pos_ref[0].astype(jnp.float32))

    x = x_scr[...]                                    # (T, D) residual stream
    qpos = qpos_ref[0].astype(jnp.float32)            # (T, D)
    mem = mem_ref[0].astype(jnp.float32)              # (S, D)
    mem_kin = mk_scr[...]                             # (S, D) = memory + pos
    d = x.shape[-1]

    # ---------------- self-attention: q = k = x + qpos, v = x ----------------
    qk = _matmul_bias(x + qpos, lw["sa_wqk"][0], lw["sa_bqk"][0])     # (T, 2D)
    v = _matmul_bias(x, lw["sa_wv"][0], lw["sa_bv"][0])               # (T, D)
    sa = _mha(qk[:, :d], qk[:, d:], v, lw["sa_wo"][0], lw["sa_bo"][0], num_heads)
    x = _layer_norm(x + sa, lw["n1g"][0], lw["n1b"][0])

    # -------------- cross-attention: q = x + qpos, k = mem+pos, v = mem ------
    q = _matmul_bias(x + qpos, lw["ca_wq"][0], lw["ca_bq"][0])        # (T, D)
    k = _matmul_bias(mem_kin, lw["ca_wk"][0], lw["ca_bk"][0])         # (S, D)
    v = _matmul_bias(mem, lw["ca_wv"][0], lw["ca_bv"][0])             # (S, D)
    ca = _mha(q, k, v, lw["ca_wo"][0], lw["ca_bo"][0], num_heads)
    x = _layer_norm(x + ca, lw["n2g"][0], lw["n2b"][0])

    # ---------------- feed-forward -------------------------------------------
    h1 = jnp.maximum(_matmul_bias(x, lw["w1"][0], lw["b1"][0]), 0.0)
    ff = _matmul_bias(h1, lw["w2"][0], lw["b2"][0])
    x = _layer_norm(x + ff, lw["n3g"][0], lw["n3b"][0])

    x_scr[...] = x

    @pl.when(l == pl.num_programs(1) - 1)
    def _finalize():
        y = x
        if has_final_norm:
            y = _layer_norm(y, fng_ref[...], fnb_ref[...])
        out_ref[0] = y.astype(out_ref.dtype)


# ------------------------- parameter packing & wrapper ------------------------

def _row(v):
    return v.reshape(1, -1).astype(jnp.float32)


def _prepack_params(params, num_heads):
    """Stack per-layer params with a leading layer axis (for streaming), merge
    self-attn QK weights, fold the attention scale into Q weights/biases, cast
    matmul weights to bf16, keep biases / LN affine in f32 as (1, X) rows."""
    bf16 = jnp.bfloat16
    d = params["layers"][0]["self_attn"]["wq"].shape[0]
    scale = 1.0 / float(d // num_heads) ** 0.5

    per_layer = []
    for lp in params["layers"]:
        sa, ca, ff = lp["self_attn"], lp["cross_attn"], lp["ffn"]
        per_layer.append({
            "sa_wqk": jnp.concatenate([sa["wq"] * scale, sa["wk"]], axis=1).astype(bf16),
            "sa_bqk": _row(jnp.concatenate([sa["bq"] * scale, sa["bk"]])),
            "sa_wv": sa["wv"].astype(bf16), "sa_bv": _row(sa["bv"]),
            "sa_wo": sa["wo"].astype(bf16), "sa_bo": _row(sa["bo"]),
            "ca_wq": (ca["wq"] * scale).astype(bf16), "ca_bq": _row(ca["bq"] * scale),
            "ca_wk": ca["wk"].astype(bf16), "ca_bk": _row(ca["bk"]),
            "ca_wv": ca["wv"].astype(bf16), "ca_bv": _row(ca["bv"]),
            "ca_wo": ca["wo"].astype(bf16), "ca_bo": _row(ca["bo"]),
            "w1": ff["w1"].astype(bf16), "b1": _row(ff["b1"]),
            "w2": ff["w2"].astype(bf16), "b2": _row(ff["b2"]),
            "n1g": _row(lp["norm1"]["g"]), "n1b": _row(lp["norm1"]["b"]),
            "n2g": _row(lp["norm2"]["g"]), "n2b": _row(lp["norm2"]["b"]),
            "n3g": _row(lp["norm3"]["g"]), "n3b": _row(lp["norm3"]["b"]),
        })
    stacked = jax.tree_util.tree_map(lambda *xs: jnp.stack(xs, axis=0), *per_layer)

    final = None
    if params.get("norm") is not None:
        final = {"g": _row(params["norm"]["g"]), "b": _row(params["norm"]["b"])}
    return stacked, final


def transformer_decoder(tgt, memory, pos, query_pos, params, num_heads):
    """tgt/query_pos: (T, B, D); memory/pos: (S, B, D) -> (1, T, B, D)."""
    T, B, D = tgt.shape
    S = memory.shape[0]

    # One-time layout plumbing in the wrapper: seq-major -> batch-major so the
    # kernel runs a batch-parallel grid with lane-dense (L, D) tiles.
    acts = [tgt.transpose(1, 0, 2), memory.transpose(1, 0, 2),
            pos.transpose(1, 0, 2), query_pos.transpose(1, 0, 2)]

    layer_params, final_params = _prepack_params(params, num_heads)
    num_layers = layer_params["sa_wqk"].shape[0]
    layer_leaves, layer_def = jax.tree_util.tree_flatten(layer_params)
    has_final = final_params is not None
    final_leaves = [final_params["g"], final_params["b"]] if has_final else []

    # Activations: one batch element resident, constant across the layer axis
    # (Pallas only re-DMAs when the block index changes, i.e. on batch change).
    act_specs = [pl.BlockSpec((1,) + a.shape[1:], lambda b, l: (b, 0, 0))
                 for a in acts]
    # Per-layer weights: streamed one layer at a time (double-buffered so the
    # next layer's DMA overlaps this layer's compute).
    layer_specs = [pl.BlockSpec((1,) + a.shape[1:],
                                lambda b, l, _nd=a.ndim: (l,) + (0,) * (_nd - 1))
                   for a in layer_leaves]
    # Final-norm affine params: tiny, grid-invariant.
    final_specs = [pl.BlockSpec(a.shape, lambda b, l, _nd=a.ndim: (0,) * _nd)
                   for a in final_leaves]

    # Explicit VMEM budget from the actual per-grid-step footprint (x2 for
    # double-buffering), clamped so it is valid on v5e/v6e (128 MiB) and
    # v7x (64 MiB physical).
    def _nbytes(a):
        return a.size * a.dtype.itemsize
    per_layer_bytes = sum(_nbytes(a) // num_layers for a in layer_leaves)
    per_batch_act_bytes = sum(_nbytes(a) // B for a in acts)
    out_bytes = T * D * 4
    scratch_bytes = (T + S) * D * 4
    final_bytes = sum(_nbytes(a) for a in final_leaves)
    footprint = (2 * per_layer_bytes + 2 * per_batch_act_bytes + 2 * out_bytes
                 + scratch_bytes + 2 * final_bytes)
    vmem_limit = int(min(48 * 1024 * 1024, max(16 * 1024 * 1024, 3 * footprint)))

    out = pl.pallas_call(
        functools.partial(_decoder_kernel, layer_def=layer_def,
                          has_final_norm=has_final, num_heads=num_heads),
        out_shape=jax.ShapeDtypeStruct((B, T, D), jnp.float32),
        grid=(B, num_layers),
        in_specs=act_specs + layer_specs + final_specs,
        out_specs=pl.BlockSpec((1, T, D), lambda b, l: (b, 0, 0)),
        scratch_shapes=[pltpu.VMEM((T, D), jnp.float32),   # residual stream x
                        pltpu.VMEM((S, D), jnp.float32)],  # memory + pos
        compiler_params=pltpu.CompilerParams(
            dimension_semantics=("parallel", "arbitrary"),  # batch || , layers seq
            vmem_limit_bytes=vmem_limit),
    )(*acts, *layer_leaves, *final_leaves)

    # (B, T, D) -> (T, B, D) -> unsqueeze(0)
    return out.transpose(1, 0, 2)[None]


# --------------------------------- parameters ---------------------------------

def init_params(key, d_model, nhead, dim_ff, num_layers):
    def dense(k, fan_in, fan_out):
        return jax.random.normal(k, (fan_in, fan_out), jnp.float32) * 0.02

    def attn_params(k):
        ks = jax.random.split(k, 4)
        return {
            "wq": dense(ks[0], d_model, d_model), "bq": jnp.zeros((d_model,), jnp.float32),
            "wk": dense(ks[1], d_model, d_model), "bk": jnp.zeros((d_model,), jnp.float32),
            "wv": dense(ks[2], d_model, d_model), "bv": jnp.zeros((d_model,), jnp.float32),
            "wo": dense(ks[3], d_model, d_model), "bo": jnp.zeros((d_model,), jnp.float32),
        }

    def ln_params():
        return {"g": jnp.ones((d_model,), jnp.float32),
                "b": jnp.zeros((d_model,), jnp.float32)}

    layers = []
    keys = jax.random.split(key, num_layers + 1)
    for li in range(num_layers):
        ks = jax.random.split(keys[li], 4)
        layers.append({
            "self_attn": attn_params(ks[0]),
            "cross_attn": attn_params(ks[1]),
            "ffn": {
                "w1": dense(ks[2], d_model, dim_ff), "b1": jnp.zeros((dim_ff,), jnp.float32),
                "w2": dense(ks[3], dim_ff, d_model), "b2": jnp.zeros((d_model,), jnp.float32),
            },
            "norm1": ln_params(), "norm2": ln_params(), "norm3": ln_params(),
        })
    return {"layers": layers, "norm": ln_params()}


# ------------------------------------ main -------------------------------------

if __name__ == "__main__":
    d_model, nhead, dim_ff, num_layers = 32, 4, 64, 2
    T, S, B = 8, 16, 2  # num queries, memory length, batch

    key = jax.random.PRNGKey(0)
    k1, k2, k3, k4, kp = jax.random.split(key, 5)
    tgt = jax.random.normal(k1, (T, B, d_model), jnp.float32)
    memory = jax.random.normal(k2, (S, B, d_model), jnp.float32)
    query_pos = jax.random.normal(k3, (T, B, d_model), jnp.float32)
    pos = jax.random.normal(k4, (S, B, d_model), jnp.float32)

    params = init_params(kp, d_model, nhead, dim_ff, num_layers)

    fwd = jax.jit(functools.partial(transformer_decoder, num_heads=nhead))
    out = jax.block_until_ready(fwd(tgt, memory, pos, query_pos, params))

    assert out.shape == (1, T, B, d_model), out.shape
    assert bool(jnp.all(jnp.isfinite(out)))
    print("KERNEL_OK")
</pallas_src>

<mosaic_0001>
module attributes {stable_mosaic.version = 11 : i64} {
  func.func @_decoder_kernel(%arg0: i32, %arg1: i32, %arg2: memref<1x8x32xf32, #tpu.memory_space<vmem>>, %arg3: memref<1x16x32xf32, #tpu.memory_space<vmem>>, %arg4: memref<1x16x32xf32, #tpu.memory_space<vmem>>, %arg5: memref<1x8x32xf32, #tpu.memory_space<vmem>>, %arg6: memref<1x1x64xf32, #tpu.memory_space<vmem>>, %arg7: memref<1x1x32xf32, #tpu.memory_space<vmem>>, %arg8: memref<1x1x32xf32, #tpu.memory_space<vmem>>, %arg9: memref<1x1x32xf32, #tpu.memory_space<vmem>>, %arg10: memref<1x1x32xf32, #tpu.memory_space<vmem>>, %arg11: memref<1x1x32xf32, #tpu.memory_space<vmem>>, %arg12: memref<1x32x32xbf16, #tpu.memory_space<vmem>>, %arg13: memref<1x32x32xbf16, #tpu.memory_space<vmem>>, %arg14: memref<1x32x32xbf16, #tpu.memory_space<vmem>>, %arg15: memref<1x32x32xbf16, #tpu.memory_space<vmem>>, %arg16: memref<1x1x32xf32, #tpu.memory_space<vmem>>, %arg17: memref<1x1x32xf32, #tpu.memory_space<vmem>>, %arg18: memref<1x1x32xf32, #tpu.memory_space<vmem>>, %arg19: memref<1x1x32xf32, #tpu.memory_space<vmem>>, %arg20: memref<1x1x32xf32, #tpu.memory_space<vmem>>, %arg21: memref<1x1x32xf32, #tpu.memory_space<vmem>>, %arg22: memref<1x1x32xf32, #tpu.memory_space<vmem>>, %arg23: memref<1x1x64xf32, #tpu.memory_space<vmem>>, %arg24: memref<1x1x32xf32, #tpu.memory_space<vmem>>, %arg25: memref<1x32x32xbf16, #tpu.memory_space<vmem>>, %arg26: memref<1x32x64xbf16, #tpu.memory_space<vmem>>, %arg27: memref<1x32x32xbf16, #tpu.memory_space<vmem>>, %arg28: memref<1x32x64xbf16, #tpu.memory_space<vmem>>, %arg29: memref<1x64x32xbf16, #tpu.memory_space<vmem>>, %arg30: memref<1x32xf32, #tpu.memory_space<vmem>>, %arg31: memref<1x32xf32, #tpu.memory_space<vmem>>, %arg32: memref<1x8x32xf32, #tpu.memory_space<vmem>>, %arg33: memref<8x32xf32, #tpu.memory_space<vmem>>, %arg34: memref<16x32xf32, #tpu.memory_space<vmem>>) attributes {dimension_semantics = [#tpu.dimension_semantics<parallel>, #tpu.dimension_semantics<arbitrary>], iteration_bounds = array<i64: 2, 2>, scalar_prefetch = 0 : i64, scratch_operands = 2 : i64, tpu.core_type = #tpu.core_type<tc>, window_params = [{transform_indices = @transform_0, window_bounds = array<i64: 1, 8, 32>}, {transform_indices = @transform_1, window_bounds = array<i64: 1, 16, 32>}, {transform_indices = @transform_2, window_bounds = array<i64: 1, 16, 32>}, {transform_indices = @transform_3, window_bounds = array<i64: 1, 8, 32>}, {transform_indices = @transform_4, window_bounds = array<i64: 1, 1, 64>}, {transform_indices = @transform_5, window_bounds = array<i64: 1, 1, 32>}, {transform_indices = @transform_6, window_bounds = array<i64: 1, 1, 32>}, {transform_indices = @transform_7, window_bounds = array<i64: 1, 1, 32>}, {transform_indices = @transform_8, window_bounds = array<i64: 1, 1, 32>}, {transform_indices = @transform_9, window_bounds = array<i64: 1, 1, 32>}, {transform_indices = @transform_10, window_bounds = array<i64: 1, 32, 32>}, {transform_indices = @transform_11, window_bounds = array<i64: 1, 32, 32>}, {transform_indices = @transform_12, window_bounds = array<i64: 1, 32, 32>}, {transform_indices = @transform_13, window_bounds = array<i64: 1, 32, 32>}, {transform_indices = @transform_14, window_bounds = array<i64: 1, 1, 32>}, {transform_indices = @transform_15, window_bounds = array<i64: 1, 1, 32>}, {transform_indices = @transform_16, window_bounds = array<i64: 1, 1, 32>}, {transform_indices = @transform_17, window_bounds = array<i64: 1, 1, 32>}, {transform_indices = @transform_18, window_bounds = array<i64: 1, 1, 32>}, {transform_indices = @transform_19, window_bounds = array<i64: 1, 1, 32>}, {transform_indices = @transform_20, window_bounds = array<i64: 1, 1, 32>}, {transform_indices = @transform_21, window_bounds = array<i64: 1, 1, 64>}, {transform_indices = @transform_22, window_bounds = array<i64: 1, 1, 32>}, {transform_indices = @transform_23, window_bounds = array<i64: 1, 32, 32>}, {transform_indices = @transform_24, window_bounds = array<i64: 1, 32, 64>}, {transform_indices = @transform_25, window_bounds = array<i64: 1, 32, 32>}, {transform_indices = @transform_26, window_bounds = array<i64: 1, 32, 64>}, {transform_indices = @transform_27, window_bounds = array<i64: 1, 64, 32>}, {pipeline_mode = #tpu.pipeline_mode<synchronous>, transform_indices = @transform_28, window_bounds = array<i64: 1, 32>}, {pipeline_mode = #tpu.pipeline_mode<synchronous>, transform_indices = @transform_29, window_bounds = array<i64: 1, 32>}, {transform_indices = @transform_30, window_bounds = array<i64: 1, 8, 32>}]} {
    %c0_i32 = arith.constant 0 : i32
    %0 = arith.cmpi eq, %arg1, %c0_i32 : i32
    %1 = arith.extui %0 : i1 to i32
    %c0_i32_0 = arith.constant 0 : i32
    %2 = arith.cmpi ne, %1, %c0_i32_0 : i32
    scf.if %2 {
      %c0_141 = arith.constant 0 : index
      %c0_142 = arith.constant 0 : index
      %c0_143 = arith.constant 0 : index
      %326 = vector.load %arg2[%c0_141, %c0_142, %c0_143] : memref<1x8x32xf32, #tpu.memory_space<vmem>>, vector<1x8x32xf32>
      %327 = vector.shape_cast %326 : vector<1x8x32xf32> to vector<8x32xf32>
      %c0_144 = arith.constant 0 : index
      %c0_145 = arith.constant 0 : index
      %328 = vector.load %arg33[%c0_144, %c0_145] : memref<8x32xf32, #tpu.memory_space<vmem>>, vector<8x32xf32>
      tpu.vector_store %arg33[%c0_144, %c0_145], %327 {strides = array<i32>} : memref<8x32xf32, #tpu.memory_space<vmem>>, vector<8x32xf32>,
      %c0_146 = arith.constant 0 : index
      %c0_147 = arith.constant 0 : index
      %c0_148 = arith.constant 0 : index
      %329 = vector.load %arg3[%c0_146, %c0_147, %c0_148] : memref<1x16x32xf32, #tpu.memory_space<vmem>>, vector<1x16x32xf32>
      %330 = vector.shape_cast %329 : vector<1x16x32xf32> to vector<16x32xf32>
      %c0_149 = arith.constant 0 : index
      %c0_150 = arith.constant 0 : index
      %c0_151 = arith.constant 0 : index
      %331 = vector.load %arg4[%c0_149, %c0_150, %c0_151] : memref<1x16x32xf32, #tpu.memory_space<vmem>>, vector<1x16x32xf32>
      %332 = vector.shape_cast %331 : vector<1x16x32xf32> to vector<16x32xf32>
      %333 = arith.addf %330, %332 : vector<16x32xf32>
      %c0_152 = arith.constant 0 : index
      %c0_153 = arith.constant 0 : index
      %334 = vector.load %arg34[%c0_152, %c0_153] : memref<16x32xf32, #tpu.memory_space<vmem>>, vector<16x32xf32>
      tpu.vector_store %arg34[%c0_152, %c0_153], %333 {strides = array<i32>} : memref<16x32xf32, #tpu.memory_space<vmem>>, vector<16x32xf32>,
    } else {
    }
    %c0 = arith.constant 0 : index
    %c0_1 = arith.constant 0 : index
    %3 = vector.load %arg33[%c0, %c0_1] : memref<8x32xf32, #tpu.memory_space<vmem>>, vector<8x32xf32>
    %c0_2 = arith.constant 0 : index
    %c0_3 = arith.constant 0 : index
    %c0_4 = arith.constant 0 : index
    %4 = vector.load %arg5[%c0_2, %c0_3, %c0_4] : memref<1x8x32xf32, #tpu.memory_space<vmem>>, vector<1x8x32xf32>
    %5 = vector.shape_cast %4 : vector<1x8x32xf32> to vector<8x32xf32>
    %c0_5 = arith.constant 0 : index
    %c0_6 = arith.constant 0 : index
    %c0_7 = arith.constant 0 : index
    %6 = vector.load %arg3[%c0_5, %c0_6, %c0_7] : memref<1x16x32xf32, #tpu.memory_space<vmem>>, vector<1x16x32xf32>
    %7 = vector.shape_cast %6 : vector<1x16x32xf32> to vector<16x32xf32>
    %c0_8 = arith.constant 0 : index
    %c0_9 = arith.constant 0 : index
    %8 = vector.load %arg34[%c0_8, %c0_9] : memref<16x32xf32, #tpu.memory_space<vmem>>, vector<16x32xf32>
    %9 = arith.addf %3, %5 : vector<8x32xf32>
    %c0_10 = arith.constant 0 : index
    %c0_11 = arith.constant 0 : index
    %c0_12 = arith.constant 0 : index
    %10 = vector.load %arg26[%c0_10, %c0_11, %c0_12] : memref<1x32x64xbf16, #tpu.memory_space<vmem>>, vector<1x32x64xbf16>
    %11 = vector.shape_cast %10 : vector<1x32x64xbf16> to vector<32x64xbf16>
    %c0_13 = arith.constant 0 : index
    %c0_14 = arith.constant 0 : index
    %c0_15 = arith.constant 0 : index
    %12 = vector.load %arg23[%c0_13, %c0_14, %c0_15] : memref<1x1x64xf32, #tpu.memory_space<vmem>>, vector<1x1x64xf32>
    %13 = vector.shape_cast %12 : vector<1x1x64xf32> to vector<1x64xf32>
    %14 = arith.truncf %9 : vector<8x32xf32> to vector<8x32xbf16>
    %cst = arith.constant dense<0.000000e+00> : vector<8x64xf32>
    %15 = tpu.matmul %14, %11, %cst {dimension_numbers = #tpu.dot_dimension_numbers<[1], [0], [0], [1], [0, 0, 1, 1], [], []>} : vector<8x32xbf16>, vector<32x64xbf16>, vector<8x64xf32> -> vector<8x64xf32>
    %16 = vector.broadcast %13 : vector<1x64xf32> to vector<8x64xf32>
    %17 = arith.addf %15, %16 : vector<8x64xf32>
    %c0_16 = arith.constant 0 : index
    %c0_17 = arith.constant 0 : index
    %c0_18 = arith.constant 0 : index
    %18 = vector.load %arg27[%c0_16, %c0_17, %c0_18] : memref<1x32x32xbf16, #tpu.memory_space<vmem>>, vector<1x32x32xbf16>
    %19 = vector.shape_cast %18 : vector<1x32x32xbf16> to vector<32x32xbf16>
    %c0_19 = arith.constant 0 : index
    %c0_20 = arith.constant 0 : index
    %c0_21 = arith.constant 0 : index
    %20 = vector.load %arg24[%c0_19, %c0_20, %c0_21] : memref<1x1x32xf32, #tpu.memory_space<vmem>>, vector<1x1x32xf32>
    %21 = vector.shape_cast %20 : vector<1x1x32xf32> to vector<1x32xf32>
    %22 = arith.truncf %3 : vector<8x32xf32> to vector<8x32xbf16>
    %cst_22 = arith.constant dense<0.000000e+00> : vector<8x32xf32>
    %23 = tpu.matmul %22, %19, %cst_22 {dimension_numbers = #tpu.dot_dimension_numbers<[1], [0], [0], [1], [0, 0, 1, 1], [], []>} : vector<8x32xbf16>, vector<32x32xbf16>, vector<8x32xf32> -> vector<8x32xf32>
    %24 = vector.broadcast %21 : vector<1x32xf32> to vector<8x32xf32>
    %25 = arith.addf %23, %24 : vector<8x32xf32>
    %26 = vector.extract_strided_slice %17 {offsets = [0, 0], sizes = [8, 32], strides = [1, 1]} : vector<8x64xf32> to vector<8x32xf32>
    %27 = vector.extract_strided_slice %17 {offsets = [0, 32], sizes = [8, 32], strides = [1, 1]} : vector<8x64xf32> to vector<8x32xf32>
    %c0_23 = arith.constant 0 : index
    %c0_24 = arith.constant 0 : index
    %c0_25 = arith.constant 0 : index
    %28 = vector.load %arg25[%c0_23, %c0_24, %c0_25] : memref<1x32x32xbf16, #tpu.memory_space<vmem>>, vector<1x32x32xbf16>
    %29 = vector.shape_cast %28 : vector<1x32x32xbf16> to vector<32x32xbf16>
    %c0_26 = arith.constant 0 : index
    %c0_27 = arith.constant 0 : index
    %c0_28 = arith.constant 0 : index
    %30 = vector.load %arg22[%c0_26, %c0_27, %c0_28] : memref<1x1x32xf32, #tpu.memory_space<vmem>>, vector<1x1x32xf32>
    %31 = vector.shape_cast %30 : vector<1x1x32xf32> to vector<1x32xf32>
    %32 = vector.extract_strided_slice %26 {offsets = [0, 0], sizes = [8, 8], strides = [1, 1]} : vector<8x32xf32> to vector<8x8xf32>
    %33 = arith.truncf %32 : vector<8x8xf32> to vector<8x8xbf16>
    %34 = vector.extract_strided_slice %27 {offsets = [0, 0], sizes = [8, 8], strides = [1, 1]} : vector<8x32xf32> to vector<8x8xf32>
    %35 = arith.truncf %34 : vector<8x8xf32> to vector<8x8xbf16>
    %36 = vector.extract_strided_slice %25 {offsets = [0, 0], sizes = [8, 8], strides = [1, 1]} : vector<8x32xf32> to vector<8x8xf32>
    %37 = arith.truncf %36 : vector<8x8xf32> to vector<8x8xbf16>
    %cst_29 = arith.constant dense<0.000000e+00> : vector<8x8xf32>
    %38 = tpu.matmul %33, %35, %cst_29 {dimension_numbers = #tpu.dot_dimension_numbers<[1], [1], [0], [0], [0, 0, 1, 0], [], []>} : vector<8x8xbf16>, vector<8x8xbf16>, vector<8x8xf32> -> vector<8x8xf32>
    %cst_30 = arith.constant dense<0xFF800000> : vector<8xf32>
    %39 = vector.multi_reduction <maximumf>, %38, %cst_30 [1] : vector<8x8xf32> to vector<8xf32>
    %40 = vector.shape_cast %39 : vector<8xf32> to vector<8x1xf32>
    %41 = vector.broadcast %40 : vector<8x1xf32> to vector<8x8xf32>
    %42 = arith.subf %38, %41 : vector<8x8xf32>
    %43 = math.exp %42 : vector<8x8xf32>
    %cst_31 = arith.constant dense<0.000000e+00> : vector<8xf32>
    %44 = vector.multi_reduction <add>, %43, %cst_31 [1] : vector<8x8xf32> to vector<8xf32>
    %45 = vector.shape_cast %44 : vector<8xf32> to vector<8x1xf32>
    %46 = tpu.reciprocal %45 {approx = true} : vector<8x1xf32> -> vector<8x1xf32>
    %47 = vector.broadcast %46 : vector<8x1xf32> to vector<8x8xf32>
    %48 = arith.mulf %43, %47 : vector<8x8xf32>
    %49 = arith.truncf %48 : vector<8x8xf32> to vector<8x8xbf16>
    %cst_32 = arith.constant dense<0.000000e+00> : vector<8x8xf32>
    %50 = tpu.matmul %49, %37, %cst_32 {dimension_numbers = #tpu.dot_dimension_numbers<[1], [0], [0], [1], [0, 0, 1, 1], [], []>} : vector<8x8xbf16>, vector<8x8xbf16>, vector<8x8xf32> -> vector<8x8xf32>
    %51 = vector.extract_strided_slice %26 {offsets = [0, 8], sizes = [8, 8], strides = [1, 1]} : vector<8x32xf32> to vector<8x8xf32>
    %52 = arith.truncf %51 : vector<8x8xf32> to vector<8x8xbf16>
    %53 = vector.extract_strided_slice %27 {offsets = [0, 8], sizes = [8, 8], strides = [1, 1]} : vector<8x32xf32> to vector<8x8xf32>
    %54 = arith.truncf %53 : vector<8x8xf32> to vector<8x8xbf16>
    %55 = vector.extract_strided_slice %25 {offsets = [0, 8], sizes = [8, 8], strides = [1, 1]} : vector<8x32xf32> to vector<8x8xf32>
    %56 = arith.truncf %55 : vector<8x8xf32> to vector<8x8xbf16>
    %cst_33 = arith.constant dense<0.000000e+00> : vector<8x8xf32>
    %57 = tpu.matmul %52, %54, %cst_33 {dimension_numbers = #tpu.dot_dimension_numbers<[1], [1], [0], [0], [0, 0, 1, 0], [], []>} : vector<8x8xbf16>, vector<8x8xbf16>, vector<8x8xf32> -> vector<8x8xf32>
    %cst_34 = arith.constant dense<0xFF800000> : vector<8xf32>
    %58 = vector.multi_reduction <maximumf>, %57, %cst_34 [1] : vector<8x8xf32> to vector<8xf32>
    %59 = vector.shape_cast %58 : vector<8xf32> to vector<8x1xf32>
    %60 = vector.broadcast %59 : vector<8x1xf32> to vector<8x8xf32>
    %61 = arith.subf %57, %60 : vector<8x8xf32>
    %62 = math.exp %61 : vector<8x8xf32>
    %cst_35 = arith.constant dense<0.000000e+00> : vector<8xf32>
    %63 = vector.multi_reduction <add>, %62, %cst_35 [1] : vector<8x8xf32> to vector<8xf32>
    %64 = vector.shape_cast %63 : vector<8xf32> to vector<8x1xf32>
    %65 = tpu.reciprocal %64 {approx = true} : vector<8x1xf32> -> vector<8x1xf32>
    %66 = vector.broadcast %65 : vector<8x1xf32> to vector<8x8xf32>
    %67 = arith.mulf %62, %66 : vector<8x8xf32>
    %68 = arith.truncf %67 : vector<8x8xf32> to vector<8x8xbf16>
    %cst_36 = arith.constant dense<0.000000e+00> : vector<8x8xf32>
    %69 = tpu.matmul %68, %56, %cst_36 {dimension_numbers = #tpu.dot_dimension_numbers<[1], [0], [0], [1], [0, 0, 1, 1], [], []>} : vector<8x8xbf16>, vector<8x8xbf16>, vector<8x8xf32> -> vector<8x8xf32>
    %70 = vector.extract_strided_slice %26 {offsets = [0, 16], sizes = [8, 8], strides = [1, 1]} : vector<8x32xf32> to vector<8x8xf32>
    %71 = arith.truncf %70 : vector<8x8xf32> to vector<8x8xbf16>
    %72 = vector.extract_strided_slice %27 {offsets = [0, 16], sizes = [8, 8], strides = [1, 1]} : vector<8x32xf32> to vector<8x8xf32>
    %73 = arith.truncf %72 : vector<8x8xf32> to vector<8x8xbf16>
    %74 = vector.extract_strided_slice %25 {offsets = [0, 16], sizes = [8, 8], strides = [1, 1]} : vector<8x32xf32> to vector<8x8xf32>
    %75 = arith.truncf %74 : vector<8x8xf32> to vector<8x8xbf16>
    %cst_37 = arith.constant dense<0.000000e+00> : vector<8x8xf32>
    %76 = tpu.matmul %71, %73, %cst_37 {dimension_numbers = #tpu.dot_dimension_numbers<[1], [1], [0], [0], [0, 0, 1, 0], [], []>} : vector<8x8xbf16>, vector<8x8xbf16>, vector<8x8xf32> -> vector<8x8xf32>
    %cst_38 = arith.constant dense<0xFF800000> : vector<8xf32>
    %77 = vector.multi_reduction <maximumf>, %76, %cst_38 [1] : vector<8x8xf32> to vector<8xf32>
    %78 = vector.shape_cast %77 : vector<8xf32> to vector<8x1xf32>
    %79 = vector.broadcast %78 : vector<8x1xf32> to vector<8x8xf32>
    %80 = arith.subf %76, %79 : vector<8x8xf32>
    %81 = math.exp %80 : vector<8x8xf32>
    %cst_39 = arith.constant dense<0.000000e+00> : vector<8xf32>
    %82 = vector.multi_reduction <add>, %81, %cst_39 [1] : vector<8x8xf32> to vector<8xf32>
    %83 = vector.shape_cast %82 : vector<8xf32> to vector<8x1xf32>
    %84 = tpu.reciprocal %83 {approx = true} : vector<8x1xf32> -> vector<8x1xf32>
    %85 = vector.broadcast %84 : vector<8x1xf32> to vector<8x8xf32>
    %86 = arith.mulf %81, %85 : vector<8x8xf32>
    %87 = arith.truncf %86 : vector<8x8xf32> to vector<8x8xbf16>
    %cst_40 = arith.constant dense<0.000000e+00> : vector<8x8xf32>
    %88 = tpu.matmul %87, %75, %cst_40 {dimension_numbers = #tpu.dot_dimension_numbers<[1], [0], [0], [1], [0, 0, 1, 1], [], []>} : vector<8x8xbf16>, vector<8x8xbf16>, vector<8x8xf32> -> vector<8x8xf32>
    %89 = vector.extract_strided_slice %26 {offsets = [0, 24], sizes = [8, 8], strides = [1, 1]} : vector<8x32xf32> to vector<8x8xf32>
    %90 = arith.truncf %89 : vector<8x8xf32> to vector<8x8xbf16>
    %91 = vector.extract_strided_slice %27 {offsets = [0, 24], sizes = [8, 8], strides = [1, 1]} : vector<8x32xf32> to vector<8x8xf32>
    %92 = arith.truncf %91 : vector<8x8xf32> to vector<8x8xbf16>
    %93 = vector.extract_strided_slice %25 {offsets = [0, 24], sizes = [8, 8], strides = [1, 1]} : vector<8x32xf32> to vector<8x8xf32>
    %94 = arith.truncf %93 : vector<8x8xf32> to vector<8x8xbf16>
    %cst_41 = arith.constant dense<0.000000e+00> : vector<8x8xf32>
    %95 = tpu.matmul %90, %92, %cst_41 {dimension_numbers = #tpu.dot_dimension_numbers<[1], [1], [0], [0], [0, 0, 1, 0], [], []>} : vector<8x8xbf16>, vector<8x8xbf16>, vector<8x8xf32> -> vector<8x8xf32>
    %cst_42 = arith.constant dense<0xFF800000> : vector<8xf32>
    %96 = vector.multi_reduction <maximumf>, %95, %cst_42 [1] : vector<8x8xf32> to vector<8xf32>
    %97 = vector.shape_cast %96 : vector<8xf32> to vector<8x1xf32>
    %98 = vector.broadcast %97 : vector<8x1xf32> to vector<8x8xf32>
    %99 = arith.subf %95, %98 : vector<8x8xf32>
    %100 = math.exp %99 : vector<8x8xf32>
    %cst_43 = arith.constant dense<0.000000e+00> : vector<8xf32>
    %101 = vector.multi_reduction <add>, %100, %cst_43 [1] : vector<8x8xf32> to vector<8xf32>
    %102 = vector.shape_cast %101 : vector<8xf32> to vector<8x1xf32>
    %103 = tpu.reciprocal %102 {approx = true} : vector<8x1xf32> -> vector<8x1xf32>
    %104 = vector.broadcast %103 : vector<8x1xf32> to vector<8x8xf32>
    %105 = arith.mulf %100, %104 : vector<8x8xf32>
    %106 = arith.truncf %105 : vector<8x8xf32> to vector<8x8xbf16>
    %cst_44 = arith.constant dense<0.000000e+00> : vector<8x8xf32>
    %107 = tpu.matmul %106, %94, %cst_44 {dimension_numbers = #tpu.dot_dimension_numbers<[1], [0], [0], [1], [0, 0, 1, 1], [], []>} : vector<8x8xbf16>, vector<8x8xbf16>, vector<8x8xf32> -> vector<8x8xf32>
    %108 = tpu.concatenate %50, %69, %88, %107 in 1 : vector<8x8xf32>, vector<8x8xf32>, vector<8x8xf32>, vector<8x8xf32> -> vector<8x32xf32>
    %109 = arith.truncf %108 : vector<8x32xf32> to vector<8x32xbf16>
    %cst_45 = arith.constant dense<0.000000e+00> : vector<8x32xf32>
    %110 = tpu.matmul %109, %29, %cst_45 {dimension_numbers = #tpu.dot_dimension_numbers<[1], [0], [0], [1], [0, 0, 1, 1], [], []>} : vector<8x32xbf16>, vector<32x32xbf16>, vector<8x32xf32> -> vector<8x32xf32>
    %111 = vector.broadcast %31 : vector<1x32xf32> to vector<8x32xf32>
    %112 = arith.addf %110, %111 : vector<8x32xf32>
    %113 = arith.addf %3, %112 : vector<8x32xf32>
    %c0_46 = arith.constant 0 : index
    %c0_47 = arith.constant 0 : index
    %c0_48 = arith.constant 0 : index
    %114 = vector.load %arg17[%c0_46, %c0_47, %c0_48] : memref<1x1x32xf32, #tpu.memory_space<vmem>>, vector<1x1x32xf32>
    %115 = vector.shape_cast %114 : vector<1x1x32xf32> to vector<1x32xf32>
    %c0_49 = arith.constant 0 : index
    %c0_50 = arith.constant 0 : index
    %c0_51 = arith.constant 0 : index
    %116 = vector.load %arg16[%c0_49, %c0_50, %c0_51] : memref<1x1x32xf32, #tpu.memory_space<vmem>>, vector<1x1x32xf32>
    %117 = vector.shape_cast %116 : vector<1x1x32xf32> to vector<1x32xf32>
    %cst_52 = arith.constant dense<0.000000e+00> : vector<8xf32>
    %118 = vector.multi_reduction <add>, %113, %cst_52 [1] : vector<8x32xf32> to vector<8xf32>
    %119 = vector.shape_cast %118 : vector<8xf32> to vector<8x1xf32>
    %cst_53 = arith.constant 3.200000e+01 : f32
    %120 = vector.broadcast %cst_53 : f32 to vector<8x1xf32>
    %121 = arith.divf %119, %120 : vector<8x1xf32>
    %122 = vector.broadcast %121 : vector<8x1xf32> to vector<8x32xf32>
    %123 = arith.subf %113, %122 : vector<8x32xf32>
    %124 = arith.mulf %123, %123 : vector<8x32xf32>
    %cst_54 = arith.constant dense<0.000000e+00> : vector<8xf32>
    %125 = vector.multi_reduction <add>, %124, %cst_54 [1] : vector<8x32xf32> to vector<8xf32>
    %126 = vector.shape_cast %125 : vector<8xf32> to vector<8x1xf32>
    %cst_55 = arith.constant 3.200000e+01 : f32
    %127 = vector.broadcast %cst_55 : f32 to vector<8x1xf32>
    %128 = arith.divf %126, %127 : vector<8x1xf32>
    %129 = vector.broadcast %121 : vector<8x1xf32> to vector<8x32xf32>
    %130 = arith.subf %113, %129 : vector<8x32xf32>
    %cst_56 = arith.constant 9.99999974E-6 : f32
    %131 = vector.broadcast %cst_56 : f32 to vector<8x1xf32>
    %132 = arith.addf %128, %131 : vector<8x1xf32>
    %133 = math.rsqrt %132 : vector<8x1xf32>
    %134 = vector.broadcast %133 : vector<8x1xf32> to vector<8x32xf32>
    %135 = arith.mulf %130, %134 : vector<8x32xf32>
    %136 = vector.broadcast %115 : vector<1x32xf32> to vector<8x32xf32>
    %137 = arith.mulf %135, %136 : vector<8x32xf32>
    %138 = vector.broadcast %117 : vector<1x32xf32> to vector<8x32xf32>
    %139 = arith.addf %137, %138 : vector<8x32xf32>
    %140 = arith.addf %139, %5 : vector<8x32xf32>
    %c0_57 = arith.constant 0 : index
    %c0_58 = arith.constant 0 : index
    %c0_59 = arith.constant 0 : index
    %141 = vector.load %arg14[%c0_57, %c0_58, %c0_59] : memref<1x32x32xbf16, #tpu.memory_space<vmem>>, vector<1x32x32xbf16>
    %142 = vector.shape_cast %141 : vector<1x32x32xbf16> to vector<32x32xbf16>
    %c0_60 = arith.constant 0 : index
    %c0_61 = arith.constant 0 : index
    %c0_62 = arith.constant 0 : index
    %143 = vector.load %arg10[%c0_60, %c0_61, %c0_62] : memref<1x1x32xf32, #tpu.memory_space<vmem>>, vector<1x1x32xf32>
    %144 = vector.shape_cast %143 : vector<1x1x32xf32> to vector<1x32xf32>
    %145 = arith.truncf %140 : vector<8x32xf32> to vector<8x32xbf16>
    %cst_63 = arith.constant dense<0.000000e+00> : vector<8x32xf32>
    %146 = tpu.matmul %145, %142, %cst_63 {dimension_numbers = #tpu.dot_dimension_numbers<[1], [0], [0], [1], [0, 0, 1, 1], [], []>} : vector<8x32xbf16>, vector<32x32xbf16>, vector<8x32xf32> -> vector<8x32xf32>
    %147 = vector.broadcast %144 : vector<1x32xf32> to vector<8x32xf32>
    %148 = arith.addf %146, %147 : vector<8x32xf32>
    %c0_64 = arith.constant 0 : index
    %c0_65 = arith.constant 0 : index
    %c0_66 = arith.constant 0 : index
    %149 = vector.load %arg12[%c0_64, %c0_65, %c0_66] : memref<1x32x32xbf16, #tpu.memory_space<vmem>>, vector<1x32x32xbf16>
    %150 = vector.shape_cast %149 : vector<1x32x32xbf16> to vector<32x32xbf16>
    %c0_67 = arith.constant 0 : index
    %c0_68 = arith.constant 0 : index
    %c0_69 = arith.constant 0 : index
    %151 = vector.load %arg8[%c0_67, %c0_68, %c0_69] : memref<1x1x32xf32, #tpu.memory_space<vmem>>, vector<1x1x32xf32>
    %152 = vector.shape_cast %151 : vector<1x1x32xf32> to vector<1x32xf32>
    %153 = arith.truncf %8 : vector<16x32xf32> to vector<16x32xbf16>
    %cst_70 = arith.constant dense<0.000000e+00> : vector<16x32xf32>
    %154 = tpu.matmul %153, %150, %cst_70 {dimension_numbers = #tpu.dot_dimension_numbers<[1], [0], [0], [1], [0, 0, 1, 1], [], []>} : vector<16x32xbf16>, vector<32x32xbf16>, vector<16x32xf32> -> vector<16x32xf32>
    %155 = vector.broadcast %152 : vector<1x32xf32> to vector<16x32xf32>
    %156 = arith.addf %154, %155 : vector<16x32xf32>
    %c0_71 = arith.constant 0 : index
    %c0_72 = arith.constant 0 : index
    %c0_73 = arith.constant 0 : index
    %157 = vector.load %arg15[%c0_71, %c0_72, %c0_73] : memref<1x32x32xbf16, #tpu.memory_space<vmem>>, vector<1x32x32xbf16>
    %158 = vector.shape_cast %157 : vector<1x32x32xbf16> to vector<32x32xbf16>
    %c0_74 = arith.constant 0 : index
    %c0_75 = arith.constant 0 : index
    %c0_76 = arith.constant 0 : index
    %159 = vector.load %arg11[%c0_74, %c0_75, %c0_76] : memref<1x1x32xf32, #tpu.memory_space<vmem>>, vector<1x1x32xf32>
    %160 = vector.shape_cast %159 : vector<1x1x32xf32> to vector<1x32xf32>
    %161 = arith.truncf %7 : vector<16x32xf32> to vector<16x32xbf16>
    %cst_77 = arith.constant dense<0.000000e+00> : vector<16x32xf32>
    %162 = tpu.matmul %161, %158, %cst_77 {dimension_numbers = #tpu.dot_dimension_numbers<[1], [0], [0], [1], [0, 0, 1, 1], [], []>} : vector<16x32xbf16>, vector<32x32xbf16>, vector<16x32xf32> -> vector<16x32xf32>
    %163 = vector.broadcast %160 : vector<1x32xf32> to vector<16x32xf32>
    %164 = arith.addf %162, %163 : vector<16x32xf32>
    %c0_78 = arith.constant 0 : index
    %c0_79 = arith.constant 0 : index
    %c0_80 = arith.constant 0 : index
    %165 = vector.load %arg13[%c0_78, %c0_79, %c0_80] : memref<1x32x32xbf16, #tpu.memory_space<vmem>>, vector<1x32x32xbf16>
    %166 = vector.shape_cast %165 : vector<1x32x32xbf16> to vector<32x32xbf16>
    %c0_81 = arith.constant 0 : index
    %c0_82 = arith.constant 0 : index
    %c0_83 = arith.constant 0 : index
    %167 = vector.load %arg9[%c0_81, %c0_82, %c0_83] : memref<1x1x32xf32, #tpu.memory_space<vmem>>, vector<1x1x32xf32>
    %168 = vector.shape_cast %167 : vector<1x1x32xf32> to vector<1x32xf32>
    %169 = vector.extract_strided_slice %148 {offsets = [0, 0], sizes = [8, 8], strides = [1, 1]} : vector<8x32xf32> to vector<8x8xf32>
    %170 = arith.truncf %169 : vector<8x8xf32> to vector<8x8xbf16>
    %171 = vector.extract_strided_slice %156 {offsets = [0, 0], sizes = [16, 8], strides = [1, 1]} : vector<16x32xf32> to vector<16x8xf32>
    %172 = arith.truncf %171 : vector<16x8xf32> to vector<16x8xbf16>
    %173 = vector.extract_strided_slice %164 {offsets = [0, 0], sizes = [16, 8], strides = [1, 1]} : vector<16x32xf32> to vector<16x8xf32>
    %174 = arith.truncf %173 : vector<16x8xf32> to vector<16x8xbf16>
    %cst_84 = arith.constant dense<0.000000e+00> : vector<8x16xf32>
    %175 = tpu.matmul %170, %172, %cst_84 {dimension_numbers = #tpu.dot_dimension_numbers<[1], [1], [0], [0], [0, 0, 1, 0], [], []>} : vector<8x8xbf16>, vector<16x8xbf16>, vector<8x16xf32> -> vector<8x16xf32>
    %cst_85 = arith.constant dense<0xFF800000> : vector<8xf32>
    %176 = vector.multi_reduction <maximumf>, %175, %cst_85 [1] : vector<8x16xf32> to vector<8xf32>
    %177 = vector.shape_cast %176 : vector<8xf32> to vector<8x1xf32>
    %178 = vector.broadcast %177 : vector<8x1xf32> to vector<8x16xf32>
    %179 = arith.subf %175, %178 : vector<8x16xf32>
    %180 = math.exp %179 : vector<8x16xf32>
    %cst_86 = arith.constant dense<0.000000e+00> : vector<8xf32>
    %181 = vector.multi_reduction <add>, %180, %cst_86 [1] : vector<8x16xf32> to vector<8xf32>
    %182 = vector.shape_cast %181 : vector<8xf32> to vector<8x1xf32>
    %183 = tpu.reciprocal %182 {approx = true} : vector<8x1xf32> -> vector<8x1xf32>
    %184 = vector.broadcast %183 : vector<8x1xf32> to vector<8x16xf32>
    %185 = arith.mulf %180, %184 : vector<8x16xf32>
    %186 = arith.truncf %185 : vector<8x16xf32> to vector<8x16xbf16>
    %cst_87 = arith.constant dense<0.000000e+00> : vector<8x8xf32>
    %187 = tpu.matmul %186, %174, %cst_87 {dimension_numbers = #tpu.dot_dimension_numbers<[1], [0], [0], [1], [0, 0, 1, 1], [], []>} : vector<8x16xbf16>, vector<16x8xbf16>, vector<8x8xf32> -> vector<8x8xf32>
    %188 = vector.extract_strided_slice %148 {offsets = [0, 8], sizes = [8, 8], strides = [1, 1]} : vector<8x32xf32> to vector<8x8xf32>
    %189 = arith.truncf %188 : vector<8x8xf32> to vector<8x8xbf16>
    %190 = vector.extract_strided_slice %156 {offsets = [0, 8], sizes = [16, 8], strides = [1, 1]} : vector<16x32xf32> to vector<16x8xf32>
    %191 = arith.truncf %190 : vector<16x8xf32> to vector<16x8xbf16>
    %192 = vector.extract_strided_slice %164 {offsets = [0, 8], sizes = [16, 8], strides = [1, 1]} : vector<16x32xf32> to vector<16x8xf32>
    %193 = arith.truncf %192 : vector<16x8xf32> to vector<16x8xbf16>
    %cst_88 = arith.constant dense<0.000000e+00> : vector<8x16xf32>
    %194 = tpu.matmul %189, %191, %cst_88 {dimension_numbers = #tpu.dot_dimension_numbers<[1], [1], [0], [0], [0, 0, 1, 0], [], []>} : vector<8x8xbf16>, vector<16x8xbf16>, vector<8x16xf32> -> vector<8x16xf32>
    %cst_89 = arith.constant dense<0xFF800000> : vector<8xf32>
    %195 = vector.multi_reduction <maximumf>, %194, %cst_89 [1] : vector<8x16xf32> to vector<8xf32>
    %196 = vector.shape_cast %195 : vector<8xf32> to vector<8x1xf32>
    %197 = vector.broadcast %196 : vector<8x1xf32> to vector<8x16xf32>
    %198 = arith.subf %194, %197 : vector<8x16xf32>
    %199 = math.exp %198 : vector<8x16xf32>
    %cst_90 = arith.constant dense<0.000000e+00> : vector<8xf32>
    %200 = vector.multi_reduction <add>, %199, %cst_90 [1] : vector<8x16xf32> to vector<8xf32>
    %201 = vector.shape_cast %200 : vector<8xf32> to vector<8x1xf32>
    %202 = tpu.reciprocal %201 {approx = true} : vector<8x1xf32> -> vector<8x1xf32>
    %203 = vector.broadcast %202 : vector<8x1xf32> to vector<8x16xf32>
    %204 = arith.mulf %199, %203 : vector<8x16xf32>
    %205 = arith.truncf %204 : vector<8x16xf32> to vector<8x16xbf16>
    %cst_91 = arith.constant dense<0.000000e+00> : vector<8x8xf32>
    %206 = tpu.matmul %205, %193, %cst_91 {dimension_numbers = #tpu.dot_dimension_numbers<[1], [0], [0], [1], [0, 0, 1, 1], [], []>} : vector<8x16xbf16>, vector<16x8xbf16>, vector<8x8xf32> -> vector<8x8xf32>
    %207 = vector.extract_strided_slice %148 {offsets = [0, 16], sizes = [8, 8], strides = [1, 1]} : vector<8x32xf32> to vector<8x8xf32>
    %208 = arith.truncf %207 : vector<8x8xf32> to vector<8x8xbf16>
    %209 = vector.extract_strided_slice %156 {offsets = [0, 16], sizes = [16, 8], strides = [1, 1]} : vector<16x32xf32> to vector<16x8xf32>
    %210 = arith.truncf %209 : vector<16x8xf32> to vector<16x8xbf16>
    %211 = vector.extract_strided_slice %164 {offsets = [0, 16], sizes = [16, 8], strides = [1, 1]} : vector<16x32xf32> to vector<16x8xf32>
    %212 = arith.truncf %211 : vector<16x8xf32> to vector<16x8xbf16>
    %cst_92 = arith.constant dense<0.000000e+00> : vector<8x16xf32>
    %213 = tpu.matmul %208, %210, %cst_92 {dimension_numbers = #tpu.dot_dimension_numbers<[1], [1], [0], [0], [0, 0, 1, 0], [], []>} : vector<8x8xbf16>, vector<16x8xbf16>, vector<8x16xf32> -> vector<8x16xf32>
    %cst_93 = arith.constant dense<0xFF800000> : vector<8xf32>
    %214 = vector.multi_reduction <maximumf>, %213, %cst_93 [1] : vector<8x16xf32> to vector<8xf32>
    %215 = vector.shape_cast %214 : vector<8xf32> to vector<8x1xf32>
    %216 = vector.broadcast %215 : vector<8x1xf32> to vector<8x16xf32>
    %217 = arith.subf %213, %216 : vector<8x16xf32>
    %218 = math.exp %217 : vector<8x16xf32>
    %cst_94 = arith.constant dense<0.000000e+00> : vector<8xf32>
    %219 = vector.multi_reduction <add>, %218, %cst_94 [1] : vector<8x16xf32> to vector<8xf32>
    %220 = vector.shape_cast %219 : vector<8xf32> to vector<8x1xf32>
    %221 = tpu.reciprocal %220 {approx = true} : vector<8x1xf32> -> vector<8x1xf32>
    %222 = vector.broadcast %221 : vector<8x1xf32> to vector<8x16xf32>
    %223 = arith.mulf %218, %222 : vector<8x16xf32>
    %224 = arith.truncf %223 : vector<8x16xf32> to vector<8x16xbf16>
    %cst_95 = arith.constant dense<0.000000e+00> : vector<8x8xf32>
    %225 = tpu.matmul %224, %212, %cst_95 {dimension_numbers = #tpu.dot_dimension_numbers<[1], [0], [0], [1], [0, 0, 1, 1], [], []>} : vector<8x16xbf16>, vector<16x8xbf16>, vector<8x8xf32> -> vector<8x8xf32>
    %226 = vector.extract_strided_slice %148 {offsets = [0, 24], sizes = [8, 8], strides = [1, 1]} : vector<8x32xf32> to vector<8x8xf32>
    %227 = arith.truncf %226 : vector<8x8xf32> to vector<8x8xbf16>
    %228 = vector.extract_strided_slice %156 {offsets = [0, 24], sizes = [16, 8], strides = [1, 1]} : vector<16x32xf32> to vector<16x8xf32>
    %229 = arith.truncf %228 : vector<16x8xf32> to vector<16x8xbf16>
    %230 = vector.extract_strided_slice %164 {offsets = [0, 24], sizes = [16, 8], strides = [1, 1]} : vector<16x32xf32> to vector<16x8xf32>
    %231 = arith.truncf %230 : vector<16x8xf32> to vector<16x8xbf16>
    %cst_96 = arith.constant dense<0.000000e+00> : vector<8x16xf32>
    %232 = tpu.matmul %227, %229, %cst_96 {dimension_numbers = #tpu.dot_dimension_numbers<[1], [1], [0], [0], [0, 0, 1, 0], [], []>} : vector<8x8xbf16>, vector<16x8xbf16>, vector<8x16xf32> -> vector<8x16xf32>
    %cst_97 = arith.constant dense<0xFF800000> : vector<8xf32>
    %233 = vector.multi_reduction <maximumf>, %232, %cst_97 [1] : vector<8x16xf32> to vector<8xf32>
    %234 = vector.shape_cast %233 : vector<8xf32> to vector<8x1xf32>
    %235 = vector.broadcast %234 : vector<8x1xf32> to vector<8x16xf32>
    %236 = arith.subf %232, %235 : vector<8x16xf32>
    %237 = math.exp %236 : vector<8x16xf32>
    %cst_98 = arith.constant dense<0.000000e+00> : vector<8xf32>
    %238 = vector.multi_reduction <add>, %237, %cst_98 [1] : vector<8x16xf32> to vector<8xf32>
    %239 = vector.shape_cast %238 : vector<8xf32> to vector<8x1xf32>
    %240 = tpu.reciprocal %239 {approx = true} : vector<8x1xf32> -> vector<8x1xf32>
    %241 = vector.broadcast %240 : vector<8x1xf32> to vector<8x16xf32>
    %242 = arith.mulf %237, %241 : vector<8x16xf32>
    %243 = arith.truncf %242 : vector<8x16xf32> to vector<8x16xbf16>
    %cst_99 = arith.constant dense<0.000000e+00> : vector<8x8xf32>
    %244 = tpu.matmul %243, %231, %cst_99 {dimension_numbers = #tpu.dot_dimension_numbers<[1], [0], [0], [1], [0, 0, 1, 1], [], []>} : vector<8x16xbf16>, vector<16x8xbf16>, vector<8x8xf32> -> vector<8x8xf32>
    %245 = tpu.concatenate %187, %206, %225, %244 in 1 : vector<8x8xf32>, vector<8x8xf32>, vector<8x8xf32>, vector<8x8xf32> -> vector<8x32xf32>
    %246 = arith.truncf %245 : vector<8x32xf32> to vector<8x32xbf16>
    %cst_100 = arith.constant dense<0.000000e+00> : vector<8x32xf32>
    %247 = tpu.matmul %246, %166, %cst_100 {dimension_numbers = #tpu.dot_dimension_numbers<[1], [0], [0], [1], [0, 0, 1, 1], [], []>} : vector<8x32xbf16>, vector<32x32xbf16>, vector<8x32xf32> -> vector<8x32xf32>
    %248 = vector.broadcast %168 : vector<1x32xf32> to vector<8x32xf32>
    %249 = arith.addf %247, %248 : vector<8x32xf32>
    %250 = arith.addf %139, %249 : vector<8x32xf32>
    %c0_101 = arith.constant 0 : index
    %c0_102 = arith.constant 0 : index
    %c0_103 = arith.constant 0 : index
    %251 = vector.load %arg19[%c0_101, %c0_102, %c0_103] : memref<1x1x32xf32, #tpu.memory_space<vmem>>, vector<1x1x32xf32>
    %252 = vector.shape_cast %251 : vector<1x1x32xf32> to vector<1x32xf32>
    %c0_104 = arith.constant 0 : index
    %c0_105 = arith.constant 0 : index
    %c0_106 = arith.constant 0 : index
    %253 = vector.load %arg18[%c0_104, %c0_105, %c0_106] : memref<1x1x32xf32, #tpu.memory_space<vmem>>, vector<1x1x32xf32>
    %254 = vector.shape_cast %253 : vector<1x1x32xf32> to vector<1x32xf32>
    %cst_107 = arith.constant dense<0.000000e+00> : vector<8xf32>
    %255 = vector.multi_reduction <add>, %250, %cst_107 [1] : vector<8x32xf32> to vector<8xf32>
    %256 = vector.shape_cast %255 : vector<8xf32> to vector<8x1xf32>
    %cst_108 = arith.constant 3.200000e+01 : f32
    %257 = vector.broadcast %cst_108 : f32 to vector<8x1xf32>
    %258 = arith.divf %256, %257 : vector<8x1xf32>
    %259 = vector.broadcast %258 : vector<8x1xf32> to vector<8x32xf32>
    %260 = arith.subf %250, %259 : vector<8x32xf32>
    %261 = arith.mulf %260, %260 : vector<8x32xf32>
    %cst_109 = arith.constant dense<0.000000e+00> : vector<8xf32>
    %262 = vector.multi_reduction <add>, %261, %cst_109 [1] : vector<8x32xf32> to vector<8xf32>
    %263 = vector.shape_cast %262 : vector<8xf32> to vector<8x1xf32>
    %cst_110 = arith.constant 3.200000e+01 : f32
    %264 = vector.broadcast %cst_110 : f32 to vector<8x1xf32>
    %265 = arith.divf %263, %264 : vector<8x1xf32>
    %266 = vector.broadcast %258 : vector<8x1xf32> to vector<8x32xf32>
    %267 = arith.subf %250, %266 : vector<8x32xf32>
    %cst_111 = arith.constant 9.99999974E-6 : f32
    %268 = vector.broadcast %cst_111 : f32 to vector<8x1xf32>
    %269 = arith.addf %265, %268 : vector<8x1xf32>
    %270 = math.rsqrt %269 : vector<8x1xf32>
    %271 = vector.broadcast %270 : vector<8x1xf32> to vector<8x32xf32>
    %272 = arith.mulf %267, %271 : vector<8x32xf32>
    %273 = vector.broadcast %252 : vector<1x32xf32> to vector<8x32xf32>
    %274 = arith.mulf %272, %273 : vector<8x32xf32>
    %275 = vector.broadcast %254 : vector<1x32xf32> to vector<8x32xf32>
    %276 = arith.addf %274, %275 : vector<8x32xf32>
    %c0_112 = arith.constant 0 : index
    %c0_113 = arith.constant 0 : index
    %c0_114 = arith.constant 0 : index
    %277 = vector.load %arg28[%c0_112, %c0_113, %c0_114] : memref<1x32x64xbf16, #tpu.memory_space<vmem>>, vector<1x32x64xbf16>
    %278 = vector.shape_cast %277 : vector<1x32x64xbf16> to vector<32x64xbf16>
    %c0_115 = arith.constant 0 : index
    %c0_116 = arith.constant 0 : index
    %c0_117 = arith.constant 0 : index
    %279 = vector.load %arg6[%c0_115, %c0_116, %c0_117] : memref<1x1x64xf32, #tpu.memory_space<vmem>>, vector<1x1x64xf32>
    %280 = vector.shape_cast %279 : vector<1x1x64xf32> to vector<1x64xf32>
    %281 = arith.truncf %276 : vector<8x32xf32> to vector<8x32xbf16>
    %cst_118 = arith.constant dense<0.000000e+00> : vector<8x64xf32>
    %282 = tpu.matmul %281, %278, %cst_118 {dimension_numbers = #tpu.dot_dimension_numbers<[1], [0], [0], [1], [0, 0, 1, 1], [], []>} : vector<8x32xbf16>, vector<32x64xbf16>, vector<8x64xf32> -> vector<8x64xf32>
    %283 = vector.broadcast %280 : vector<1x64xf32> to vector<8x64xf32>
    %284 = arith.addf %282, %283 : vector<8x64xf32>
    %cst_119 = arith.constant 0.000000e+00 : f32
    %285 = vector.broadcast %cst_119 : f32 to vector<8x64xf32>
    %286 = arith.maximumf %284, %285 : vector<8x64xf32>
    %c0_120 = arith.constant 0 : index
    %c0_121 = arith.constant 0 : index
    %c0_122 = arith.constant 0 : index
    %287 = vector.load %arg29[%c0_120, %c0_121, %c0_122] : memref<1x64x32xbf16, #tpu.memory_space<vmem>>, vector<1x64x32xbf16>
    %288 = vector.shape_cast %287 : vector<1x64x32xbf16> to vector<64x32xbf16>
    %c0_123 = arith.constant 0 : index
    %c0_124 = arith.constant 0 : index
    %c0_125 = arith.constant 0 : index
    %289 = vector.load %arg7[%c0_123, %c0_124, %c0_125] : memref<1x1x32xf32, #tpu.memory_space<vmem>>, vector<1x1x32xf32>
    %290 = vector.shape_cast %289 : vector<1x1x32xf32> to vector<1x32xf32>
    %291 = arith.truncf %286 : vector<8x64xf32> to vector<8x64xbf16>
    %cst_126 = arith.constant dense<0.000000e+00> : vector<8x32xf32>
    %292 = tpu.matmul %291, %288, %cst_126 {dimension_numbers = #tpu.dot_dimension_numbers<[1], [0], [0], [1], [0, 0, 1, 1], [], []>} : vector<8x64xbf16>, vector<64x32xbf16>, vector<8x32xf32> -> vector<8x32xf32>
    %293 = vector.broadcast %290 : vector<1x32xf32> to vector<8x32xf32>
    %294 = arith.addf %292, %293 : vector<8x32xf32>
    %295 = arith.addf %276, %294 : vector<8x32xf32>
    %c0_127 = arith.constant 0 : index
    %c0_128 = arith.constant 0 : index
    %c0_129 = arith.constant 0 : index
    %296 = vector.load %arg21[%c0_127, %c0_128, %c0_129] : memref<1x1x32xf32, #tpu.memory_space<vmem>>, vector<1x1x32xf32>
    %297 = vector.shape_cast %296 : vector<1x1x32xf32> to vector<1x32xf32>
    %c0_130 = arith.constant 0 : index
    %c0_131 = arith.constant 0 : index
    %c0_132 = arith.constant 0 : index
    %298 = vector.load %arg20[%c0_130, %c0_131, %c0_132] : memref<1x1x32xf32, #tpu.memory_space<vmem>>, vector<1x1x32xf32>
    %299 = vector.shape_cast %298 : vector<1x1x32xf32> to vector<1x32xf32>
    %cst_133 = arith.constant dense<0.000000e+00> : vector<8xf32>
    %300 = vector.multi_reduction <add>, %295, %cst_133 [1] : vector<8x32xf32> to vector<8xf32>
    %301 = vector.shape_cast %300 : vector<8xf32> to vector<8x1xf32>
    %cst_134 = arith.constant 3.200000e+01 : f32
    %302 = vector.broadcast %cst_134 : f32 to vector<8x1xf32>
    %303 = arith.divf %301, %302 : vector<8x1xf32>
    %304 = vector.broadcast %303 : vector<8x1xf32> to vector<8x32xf32>
    %305 = arith.subf %295, %304 : vector<8x32xf32>
    %306 = arith.mulf %305, %305 : vector<8x32xf32>
    %cst_135 = arith.constant dense<0.000000e+00> : vector<8xf32>
    %307 = vector.multi_reduction <add>, %306, %cst_135 [1] : vector<8x32xf32> to vector<8xf32>
    %308 = vector.shape_cast %307 : vector<8xf32> to vector<8x1xf32>
    %cst_136 = arith.constant 3.200000e+01 : f32
    %309 = vector.broadcast %cst_136 : f32 to vector<8x1xf32>
    %310 = arith.divf %308, %309 : vector<8x1xf32>
    %311 = vector.broadcast %303 : vector<8x1xf32> to vector<8x32xf32>
    %312 = arith.subf %295, %311 : vector<8x32xf32>
    %cst_137 = arith.constant 9.99999974E-6 : f32
    %313 = vector.broadcast %cst_137 : f32 to vector<8x1xf32>
    %314 = arith.addf %310, %313 : vector<8x1xf32>
    %315 = math.rsqrt %314 : vector<8x1xf32>
    %316 = vector.broadcast %315 : vector<8x1xf32> to vector<8x32xf32>
    %317 = arith.mulf %312, %316 : vector<8x32xf32>
    %318 = vector.broadcast %297 : vector<1x32xf32> to vector<8x32xf32>
    %319 = arith.mulf %317, %318 : vector<8x32xf32>
    %320 = vector.broadcast %299 : vector<1x32xf32> to vector<8x32xf32>
    %321 = arith.addf %319, %320 : vector<8x32xf32>
    %c0_138 = arith.constant 0 : index
    %c0_139 = arith.constant 0 : index
    %322 = vector.load %arg33[%c0_138, %c0_139] : memref<8x32xf32, #tpu.memory_space<vmem>>, vector<8x32xf32>
    tpu.vector_store %arg33[%c0_138, %c0_139], %321 {strides = array<i32>} : memref<8x32xf32, #tpu.memory_space<vmem>>, vector<8x32xf32>,
    %c1_i32 = arith.constant 1 : i32
    %323 = arith.cmpi eq, %arg1, %c1_i32 : i32
    %324 = arith.extui %323 : i1 to i32
    %c0_i32_140 = arith.constant 0 : i32
    %325 = arith.cmpi ne, %324, %c0_i32_140 : i32
    scf.if %325 {
      %c0_141 = arith.constant 0 : index
      %c0_142 = arith.constant 0 : index
      %326 = vector.load %arg30[%c0_141, %c0_142] : memref<1x32xf32, #tpu.memory_space<vmem>>, vector<1x32xf32>
      %c0_143 = arith.constant 0 : index
      %c0_144 = arith.constant 0 : index
      %327 = vector.load %arg31[%c0_143, %c0_144] : memref<1x32xf32, #tpu.memory_space<vmem>>, vector<1x32xf32>
      %cst_145 = arith.constant dense<0.000000e+00> : vector<8xf32>
      %328 = vector.multi_reduction <add>, %321, %cst_145 [1] : vector<8x32xf32> to vector<8xf32>
      %329 = vector.shape_cast %328 : vector<8xf32> to vector<8x1xf32>
      %cst_146 = arith.constant 3.200000e+01 : f32
      %330 = vector.broadcast %cst_146 : f32 to vector<8x1xf32>
      %331 = arith.divf %329, %330 : vector<8x1xf32>
      %332 = vector.broadcast %331 : vector<8x1xf32> to vector<8x32xf32>
      %333 = arith.subf %321, %332 : vector<8x32xf32>
      %334 = arith.mulf %333, %333 : vector<8x32xf32>
      %cst_147 = arith.constant dense<0.000000e+00> : vector<8xf32>
      %335 = vector.multi_reduction <add>, %334, %cst_147 [1] : vector<8x32xf32> to vector<8xf32>
      %336 = vector.shape_cast %335 : vector<8xf32> to vector<8x1xf32>
      %cst_148 = arith.constant 3.200000e+01 : f32
      %337 = vector.broadcast %cst_148 : f32 to vector<8x1xf32>
      %338 = arith.divf %336, %337 : vector<8x1xf32>
      %339 = vector.broadcast %331 : vector<8x1xf32> to vector<8x32xf32>
      %340 = arith.subf %321, %339 : vector<8x32xf32>
      %cst_149 = arith.constant 9.99999974E-6 : f32
      %341 = vector.broadcast %cst_149 : f32 to vector<8x1xf32>
      %342 = arith.addf %338, %341 : vector<8x1xf32>
      %343 = math.rsqrt %342 : vector<8x1xf32>
      %344 = vector.broadcast %343 : vector<8x1xf32> to vector<8x32xf32>
      %345 = arith.mulf %340, %344 : vector<8x32xf32>
      %346 = vector.broadcast %326 : vector<1x32xf32> to vector<8x32xf32>
      %347 = arith.mulf %345, %346 : vector<8x32xf32>
      %348 = vector.broadcast %327 : vector<1x32xf32> to vector<8x32xf32>
      %349 = arith.addf %347, %348 : vector<8x32xf32>
      %c0_150 = arith.constant 0 : index
      %c0_151 = arith.constant 0 : index
      %c0_152 = arith.constant 0 : index
      %350 = vector.load %arg32[%c0_150, %c0_151, %c0_152] : memref<1x8x32xf32, #tpu.memory_space<vmem>>, vector<1x8x32xf32>
      %351 = vector.shape_cast %350 : vector<1x8x32xf32> to vector<8x32xf32>
      %352 = vector.shape_cast %349 : vector<8x32xf32> to vector<1x8x32xf32>
      tpu.vector_store %arg32[%c0_150, %c0_151, %c0_152], %352 {strides = array<i32>} : memref<1x8x32xf32, #tpu.memory_space<vmem>>, vector<1x8x32xf32>,
    } else {
    }
    return
  }
  func.func @transform_0(%arg0: i32, %arg1: i32) -> (i32, i32, i32) {
    %c0_i32 = arith.constant 0 : i32
    %c0_i32_0 = arith.constant 0 : i32
    %c0_i32_1 = arith.constant 0 : i32
    return %arg0, %c0_i32, %c0_i32_0 : i32, i32, i32
  }
  func.func @transform_1(%arg0: i32, %arg1: i32) -> (i32, i32, i32) {
    %c0_i32 = arith.constant 0 : i32
    %c0_i32_0 = arith.constant 0 : i32
    %c0_i32_1 = arith.constant 0 : i32
    return %arg0, %c0_i32, %c0_i32_0 : i32, i32, i32
  }
  func.func @transform_2(%arg0: i32, %arg1: i32) -> (i32, i32, i32) {
    %c0_i32 = arith.constant 0 : i32
    %c0_i32_0 = arith.constant 0 : i32
    %c0_i32_1 = arith.constant 0 : i32
    return %arg0, %c0_i32, %c0_i32_0 : i32, i32, i32
  }
  func.func @transform_3(%arg0: i32, %arg1: i32) -> (i32, i32, i32) {
    %c0_i32 = arith.constant 0 : i32
    %c0_i32_0 = arith.constant 0 : i32
    %c0_i32_1 = arith.constant 0 : i32
    return %arg0, %c0_i32, %c0_i32_0 : i32, i32, i32
  }
  func.func @transform_4(%arg0: i32, %arg1: i32) -> (i32, i32, i32) {
    %c0_i32 = arith.constant 0 : i32
    %c0_i32_0 = arith.constant 0 : i32
    %c0_i32_1 = arith.constant 0 : i32
    return %arg1, %c0_i32, %c0_i32_0 : i32, i32, i32
  }
  func.func @transform_5(%arg0: i32, %arg1: i32) -> (i32, i32, i32) {
    %c0_i32 = arith.constant 0 : i32
    %c0_i32_0 = arith.constant 0 : i32
    %c0_i32_1 = arith.constant 0 : i32
    return %arg1, %c0_i32, %c0_i32_0 : i32, i32, i32
  }
  func.func @transform_6(%arg0: i32, %arg1: i32) -> (i32, i32, i32) {
    %c0_i32 = arith.constant 0 : i32
    %c0_i32_0 = arith.constant 0 : i32
    %c0_i32_1 = arith.constant 0 : i32
    return %arg1, %c0_i32, %c0_i32_0 : i32, i32, i32
  }
  func.func @transform_7(%arg0: i32, %arg1: i32) -> (i32, i32, i32) {
    %c0_i32 = arith.constant 0 : i32
    %c0_i32_0 = arith.constant 0 : i32
    %c0_i32_1 = arith.constant 0 : i32
    return %arg1, %c0_i32, %c0_i32_0 : i32, i32, i32
  }
  func.func @transform_8(%arg0: i32, %arg1: i32) -> (i32, i32, i32) {
    %c0_i32 = arith.constant 0 : i32
    %c0_i32_0 = arith.constant 0 : i32
    %c0_i32_1 = arith.constant 0 : i32
    return %arg1, %c0_i32, %c0_i32_0 : i32, i32, i32
  }
  func.func @transform_9(%arg0: i32, %arg1: i32) -> (i32, i32, i32) {
    %c0_i32 = arith.constant 0 : i32
    %c0_i32_0 = arith.constant 0 : i32
    %c0_i32_1 = arith.constant 0 : i32
    return %arg1, %c0_i32, %c0_i32_0 : i32, i32, i32
  }
  func.func @transform_10(%arg0: i32, %arg1: i32) -> (i32, i32, i32) {
    %c0_i32 = arith.constant 0 : i32
    %c0_i32_0 = arith.constant 0 : i32
    %c0_i32_1 = arith.constant 0 : i32
    return %arg1, %c0_i32, %c0_i32_0 : i32, i32, i32
  }
  func.func @transform_11(%arg0: i32, %arg1: i32) -> (i32, i32, i32) {
    %c0_i32 = arith.constant 0 : i32
    %c0_i32_0 = arith.constant 0 : i32
    %c0_i32_1 = arith.constant 0 : i32
    return %arg1, %c0_i32, %c0_i32_0 : i32, i32, i32
  }
  func.func @transform_12(%arg0: i32, %arg1: i32) -> (i32, i32, i32) {
    %c0_i32 = arith.constant 0 : i32
    %c0_i32_0 = arith.constant 0 : i32
    %c0_i32_1 = arith.constant 0 : i32
    return %arg1, %c0_i32, %c0_i32_0 : i32, i32, i32
  }
  func.func @transform_13(%arg0: i32, %arg1: i32) -> (i32, i32, i32) {
    %c0_i32 = arith.constant 0 : i32
    %c0_i32_0 = arith.constant 0 : i32
    %c0_i32_1 = arith.constant 0 : i32
    return %arg1, %c0_i32, %c0_i32_0 : i32, i32, i32
  }
  func.func @transform_14(%arg0: i32, %arg1: i32) -> (i32, i32, i32) {
    %c0_i32 = arith.constant 0 : i32
    %c0_i32_0 = arith.constant 0 : i32
    %c0_i32_1 = arith.constant 0 : i32
    return %arg1, %c0_i32, %c0_i32_0 : i32, i32, i32
  }
  func.func @transform_15(%arg0: i32, %arg1: i32) -> (i32, i32, i32) {
    %c0_i32 = arith.constant 0 : i32
    %c0_i32_0 = arith.constant 0 : i32
    %c0_i32_1 = arith.constant 0 : i32
    return %arg1, %c0_i32, %c0_i32_0 : i32, i32, i32
  }
  func.func @transform_16(%arg0: i32, %arg1: i32) -> (i32, i32, i32) {
    %c0_i32 = arith.constant 0 : i32
    %c0_i32_0 = arith.constant 0 : i32
    %c0_i32_1 = arith.constant 0 : i32
    return %arg1, %c0_i32, %c0_i32_0 : i32, i32, i32
  }
  func.func @transform_17(%arg0: i32, %arg1: i32) -> (i32, i32, i32) {
    %c0_i32 = arith.constant 0 : i32
    %c0_i32_0 = arith.constant 0 : i32
    %c0_i32_1 = arith.constant 0 : i32
    return %arg1, %c0_i32, %c0_i32_0 : i32, i32, i32
  }
  func.func @transform_18(%arg0: i32, %arg1: i32) -> (i32, i32, i32) {
    %c0_i32 = arith.constant 0 : i32
    %c0_i32_0 = arith.constant 0 : i32
    %c0_i32_1 = arith.constant 0 : i32
    return %arg1, %c0_i32, %c0_i32_0 : i32, i32, i32
  }
  func.func @transform_19(%arg0: i32, %arg1: i32) -> (i32, i32, i32) {
    %c0_i32 = arith.constant 0 : i32
    %c0_i32_0 = arith.constant 0 : i32
    %c0_i32_1 = arith.constant 0 : i32
    return %arg1, %c0_i32, %c0_i32_0 : i32, i32, i32
  }
  func.func @transform_20(%arg0: i32, %arg1: i32) -> (i32, i32, i32) {
    %c0_i32 = arith.constant 0 : i32
    %c0_i32_0 = arith.constant 0 : i32
    %c0_i32_1 = arith.constant 0 : i32
    return %arg1, %c0_i32, %c0_i32_0 : i32, i32, i32
  }
  func.func @transform_21(%arg0: i32, %arg1: i32) -> (i32, i32, i32) {
    %c0_i32 = arith.constant 0 : i32
    %c0_i32_0 = arith.constant 0 : i32
    %c0_i32_1 = arith.constant 0 : i32
    return %arg1, %c0_i32, %c0_i32_0 : i32, i32, i32
  }
  func.func @transform_22(%arg0: i32, %arg1: i32) -> (i32, i32, i32) {
    %c0_i32 = arith.constant 0 : i32
    %c0_i32_0 = arith.constant 0 : i32
    %c0_i32_1 = arith.constant 0 : i32
    return %arg1, %c0_i32, %c0_i32_0 : i32, i32, i32
  }
  func.func @transform_23(%arg0: i32, %arg1: i32) -> (i32, i32, i32) {
    %c0_i32 = arith.constant 0 : i32
    %c0_i32_0 = arith.constant 0 : i32
    %c0_i32_1 = arith.constant 0 : i32
    return %arg1, %c0_i32, %c0_i32_0 : i32, i32, i32
  }
  func.func @transform_24(%arg0: i32, %arg1: i32) -> (i32, i32, i32) {
    %c0_i32 = arith.constant 0 : i32
    %c0_i32_0 = arith.constant 0 : i32
    %c0_i32_1 = arith.constant 0 : i32
    return %arg1, %c0_i32, %c0_i32_0 : i32, i32, i32
  }
  func.func @transform_25(%arg0: i32, %arg1: i32) -> (i32, i32, i32) {
    %c0_i32 = arith.constant 0 : i32
    %c0_i32_0 = arith.constant 0 : i32
    %c0_i32_1 = arith.constant 0 : i32
    return %arg1, %c0_i32, %c0_i32_0 : i32, i32, i32
  }
  func.func @transform_26(%arg0: i32, %arg1: i32) -> (i32, i32, i32) {
    %c0_i32 = arith.constant 0 : i32
    %c0_i32_0 = arith.constant 0 : i32
    %c0_i32_1 = arith.constant 0 : i32
    return %arg1, %c0_i32, %c0_i32_0 : i32, i32, i32
  }
  func.func @transform_27(%arg0: i32, %arg1: i32) -> (i32, i32, i32) {
    %c0_i32 = arith.constant 0 : i32
    %c0_i32_0 = arith.constant 0 : i32
    %c0_i32_1 = arith.constant 0 : i32
    return %arg1, %c0_i32, %c0_i32_0 : i32, i32, i32
  }
  func.func @transform_28(%arg0: i32, %arg1: i32) -> (i32, i32) {
    %c0_i32 = arith.constant 0 : i32
    %c0_i32_0 = arith.constant 0 : i32
    %c0_i32_1 = arith.constant 0 : i32
    return %c0_i32, %c0_i32_0 : i32, i32
  }
  func.func @transform_29(%arg0: i32, %arg1: i32) -> (i32, i32) {
    %c0_i32 = arith.constant 0 : i32
    %c0_i32_0 = arith.constant 0 : i32
    %c0_i32_1 = arith.constant 0 : i32
    return %c0_i32, %c0_i32_0 : i32, i32
  }
  func.func @transform_30(%arg0: i32, %arg1: i32) -> (i32, i32, i32) {
    %c0_i32 = arith.constant 0 : i32
    %c0_i32_0 = arith.constant 0 : i32
    %c0_i32_1 = arith.constant 0 : i32
    return %arg0, %c0_i32, %c0_i32_0 : i32, i32, i32
  }
}

</mosaic_0001>

<llo_original>
// kernel: transformer_decoder.1
$region0: #{transformer_decoder.1}
  #allocation0 [shape = 'u32[]', space=smem, size = 0x4, offset = 0x4, fixed_abs, tag = 'smem constant byte address 0x4 - core index']
  #allocation1 [shape = 'u32[72,128]{1,0:T(1,128)}', space=vmem, size = 0x9000, scoped, tag = 'internal scratch']
  #allocation2 [shape = 'f32[8,32]{1,0:T(8,128)}', space=vmem, size = 0x1000, scoped, tag = 'scratch operand']
  #allocation3 [shape = 'f32[16,32]{1,0:T(8,128)}', space=vmem, size = 0x2000, scoped, tag = 'scratch operand']
  %s0 = inlined_call_operand.smem [shape: u32[31], index: -1, kind: input, shape index: {}]
  %s1 = sld [smem:[%s0]]
  %s2 = scalar_lea.smem %s0, 1
  %s3 = sld [smem:[%s2]]
  %s4 = scalar_lea.smem %s0, 2
  %s5 = sld [smem:[%s4]]
  %s6 = scalar_lea.smem %s0, 3
  %s7 = sld [smem:[%s6]]
  %s8 = scalar_lea.smem %s0, 4
  %s9 = sld [smem:[%s8]]
  %s10 = scalar_lea.smem %s0, 5
  %s11 = sld [smem:[%s10]]
  %s12 = scalar_lea.smem %s0, 6
  %s13 = sld [smem:[%s12]]
  %s14 = scalar_lea.smem %s0, 7
  %s15 = sld [smem:[%s14]]
  %s16 = scalar_lea.smem %s0, 8
  %s17 = sld [smem:[%s16]]
  %s18 = scalar_lea.smem %s0, 9
  %s19 = sld [smem:[%s18]]
  %s20 = scalar_lea.smem %s0, 10
  %s21 = sld [smem:[%s20]]
  %s22 = scalar_lea.smem %s0, 11
  %s23 = sld [smem:[%s22]]
  %s24 = scalar_lea.smem %s0, 12
  %s25 = sld [smem:[%s24]]
  %s26 = scalar_lea.smem %s0, 13
  %s27 = sld [smem:[%s26]]
  %s28 = scalar_lea.smem %s0, 14
  %s29 = sld [smem:[%s28]]
  %s30 = scalar_lea.smem %s0, 15
  %s31 = sld [smem:[%s30]]
  %s32 = scalar_lea.smem %s0, 16
  %s33 = sld [smem:[%s32]]
  %s34 = scalar_lea.smem %s0, 17
  %s35 = sld [smem:[%s34]]
  %s36 = scalar_lea.smem %s0, 18
  %s37 = sld [smem:[%s36]]
  %s38 = scalar_lea.smem %s0, 19
  %s39 = sld [smem:[%s38]]
  %s40 = scalar_lea.smem %s0, 20
  %s41 = sld [smem:[%s40]]
  %s42 = scalar_lea.smem %s0, 21
  %s43 = sld [smem:[%s42]]
  %s44 = scalar_lea.smem %s0, 22
  %s45 = sld [smem:[%s44]]
  %s46 = scalar_lea.smem %s0, 23
  %s47 = sld [smem:[%s46]]
  %s48 = scalar_lea.smem %s0, 24
  %s49 = sld [smem:[%s48]]
  %s50 = scalar_lea.smem %s0, 25
  %s51 = sld [smem:[%s50]]
  %s52 = scalar_lea.smem %s0, 26
  %s53 = sld [smem:[%s52]]
  %s54 = scalar_lea.smem %s0, 27
  %s55 = sld [smem:[%s54]]
  %s56 = scalar_lea.smem %s0, 28
  %s57 = sld [smem:[%s56]]
  %s58 = scalar_lea.smem %s0, 29
  %s59 = sld [smem:[%s58]]
  %s60 = scalar_lea.smem %s0, 30
  %s61 = sld [smem:[%s60]]
  %s62 = sld [smem:[#allocation0]]
  $region161: #{transformer_decoder.1} parent=0
    _
  %s64 = ssub.s32 1, %s62
  %s65 = scalar_select 0, %s64, %s62
  loop: start=0, step=1, limit=6
  $region2: #{transformer_decoder.1} parent=0 // loop_pre_header
    _
  $region3: #{transformer_decoder.1} parent=0 // loop_header
    %s67 = sphi 0, %s71
    %p68 = scmp.ge.s32.totalorder %s67, 6
    %s74 = sphi 0, %s86
    %s75 = sphi 0, %s82
    %s76 = sphi 0, %s74
    %s77 = sphi 0, %s75
    %s78 = sphi 0, %s76
    %s79 = sphi 0, %s77
    %s89 = sphi 0, %s91
    %s92 = sphi 0, %s89
    %s93 = sphi 0, %s92
    %s109 = sphi 0, %s93
    %s115 = sphi 0, %s117
    %s118 = sphi 0, %s115
    %s119 = sphi 0, %s118
    %s135 = sphi 0, %s119
    %s141 = sphi 0, %s143
    %s144 = sphi 0, %s141
    %s145 = sphi 0, %s144
    %s161 = sphi 0, %s145
    %s167 = sphi 0, %s169
    %s170 = sphi 0, %s167
    %s171 = sphi 0, %s170
    %s187 = sphi 0, %s171
    %s193 = sphi 0, %s195
    %s196 = sphi 0, %s193
    %s197 = sphi 0, %s196
    %s213 = sphi 0, %s197
    %s219 = sphi 0, %s221
    %s222 = sphi 0, %s219
    %s223 = sphi 0, %s222
    %s239 = sphi 0, %s223
    %s245 = sphi 0, %s247
    %s248 = sphi 0, %s245
    %s249 = sphi 0, %s248
    %s265 = sphi 0, %s249
    %s271 = sphi 0, %s273
    %s274 = sphi 0, %s271
    %s275 = sphi 0, %s274
    %s291 = sphi 0, %s275
    %s297 = sphi 0, %s299
    %s300 = sphi 0, %s297
    %s301 = sphi 0, %s300
    %s317 = sphi 0, %s301
    %s323 = sphi 0, %s325
    %s326 = sphi 0, %s323
    %s327 = sphi 0, %s326
    %s343 = sphi 0, %s327
    %s349 = sphi 0, %s351
    %s352 = sphi 0, %s349
    %s353 = sphi 0, %s352
    %s369 = sphi 0, %s353
    %s375 = sphi 0, %s377
    %s378 = sphi 0, %s375
    %s379 = sphi 0, %s378
    %s395 = sphi 0, %s379
    %s401 = sphi 0, %s403
    %s404 = sphi 0, %s401
    %s405 = sphi 0, %s404
    %s421 = sphi 0, %s405
    %s427 = sphi 0, %s429
    %s430 = sphi 0, %s427
    %s431 = sphi 0, %s430
    %s447 = sphi 0, %s431
    %s453 = sphi 0, %s455
    %s456 = sphi 0, %s453
    %s457 = sphi 0, %s456
    %s473 = sphi 0, %s457
    %s479 = sphi 0, %s481
    %s482 = sphi 0, %s479
    %s483 = sphi 0, %s482
    %s499 = sphi 0, %s483
    %s505 = sphi 0, %s507
    %s508 = sphi 0, %s505
    %s509 = sphi 0, %s508
    %s525 = sphi 0, %s509
    %s531 = sphi 0, %s533
    %s534 = sphi 0, %s531
    %s535 = sphi 0, %s534
    %s551 = sphi 0, %s535
    %s557 = sphi 0, %s559
    %s560 = sphi 0, %s557
    %s561 = sphi 0, %s560
    %s577 = sphi 0, %s561
    %s583 = sphi 0, %s585
    %s586 = sphi 0, %s583
    %s587 = sphi 0, %s586
    %s603 = sphi 0, %s587
    %s609 = sphi 0, %s611
    %s612 = sphi 0, %s609
    %s613 = sphi 0, %s612
    %s629 = sphi 0, %s613
    %s635 = sphi 0, %s637
    %s638 = sphi 0, %s635
    %s639 = sphi 0, %s638
    %s655 = sphi 0, %s639
    %s661 = sphi 0, %s663
    %s664 = sphi 0, %s661
    %s665 = sphi 0, %s664
    %s681 = sphi 0, %s665
    %s687 = sphi 0, %s689
    %s690 = sphi 0, %s687
    %s691 = sphi 0, %s690
    %s707 = sphi 0, %s691
    %s713 = sphi 0, %s715
    %s716 = sphi 0, %s713
    %s717 = sphi 0, %s716
    %s733 = sphi 0, %s717
    %s739 = sphi 0, %s741
    %s742 = sphi 0, %s739
    %s743 = sphi 0, %s742
    %s759 = sphi 0, %s743
    %s765 = sphi 0, %s767
    %s768 = sphi 0, %s765
    %s769 = sphi 0, %s768
    %s785 = sphi 0, %s769
    %s791 = sphi 0, %s793
    %s794 = sphi 0, %s791
    %s795 = sphi 0, %s794
    %s811 = sphi 0, %s795
    %s815 = sphi 0, %s815
    %s817 = sphi 0, %s815
    %s818 = sphi 0, %s817
    %s832 = sphi 0, %s818
    %s836 = sphi 0, %s836
    %s838 = sphi 0, %s836
    %s839 = sphi 0, %s838
    %s853 = sphi 0, %s839
    %s859 = sphi 0, %s861
    %s862 = sphi 0, %s859
    %s863 = sphi 0, %s862
    %s879 = sphi 0, %s863
  $region4: #{transformer_decoder.1} parent=0 // loop_header_branch
    %70 = sbr.rel (%p68) target = $region8
  $region5: #{transformer_decoder.1} parent=0 // loop_body
    %s72 = ssub.s32 %s67, 1
    %s73 = ssub.s32 %s67, 2
    %s80 = sadd.s32 1, %s75
    %p81 = scmp.ge.s32.totalorder %s80, 2
    %s82 = scalar_select %p81, 0, %s80
    %s83 = sadd.s32 1, %s74
    %s84 = scalar_select %p81, %s83, %s74
    %p85 = scmp.ge.s32.totalorder %s84, 2
    %s86 = scalar_select %p85, 0, %s84
    %s87 = ssub.s32 %s74, %s86
    %p88 = scmp.eq.s32.totalorder %s87, 0
    %s90 = sadd.s32 %s89, 1
    %s91 = scalar_select %p88, %s89, %s90
    %p94 = pneg %p88
    %p95 = scmp.eq.s32.totalorder %s67, 3
    %p96 = por %p94, %p95
    %p97 = scmp.ne.s32.totalorder %s89, %s92
    %p98 = scmp.eq.s32.totalorder %s67, 0
    %p99 = por %p97, %p98
    %p100 = scmp.ne.s32.totalorder %s89, %s92
    %p101 = scmp.eq.s32.totalorder %s72, 3
    %p102 = por %p100, %p101
    %p103 = scmp.ne.s32.totalorder %s92, %s93
    %p104 = scmp.eq.s32.totalorder %s72, 0
    %p105 = por %p103, %p104
    %p106 = scmp.ne.s32.totalorder %s92, %s93
    %p107 = scmp.eq.s32.totalorder %s73, 3
    %p108 = por %p106, %p107
    %p110 = scmp.ne.s32.totalorder %s93, %s109
    %p111 = scmp.eq.s32.totalorder %s73, 0
    %p112 = por %p110, %p111
    %s113 = ssub.s32 %s74, %s86
    %p114 = scmp.eq.s32.totalorder %s113, 0
    %s116 = sadd.s32 %s115, 1
    %s117 = scalar_select %p114, %s115, %s116
    %p120 = pneg %p114
    %p121 = scmp.eq.s32.totalorder %s67, 3
    %p122 = por %p120, %p121
    %p123 = scmp.ne.s32.totalorder %s115, %s118
    %p124 = scmp.eq.s32.totalorder %s67, 0
    %p125 = por %p123, %p124
    %p126 = scmp.ne.s32.totalorder %s115, %s118
    %p127 = scmp.eq.s32.totalorder %s72, 3
    %p128 = por %p126, %p127
    %p129 = scmp.ne.s32.totalorder %s118, %s119
    %p130 = scmp.eq.s32.totalorder %s72, 0
    %p131 = por %p129, %p130
    %p132 = scmp.ne.s32.totalorder %s118, %s119
    %p133 = scmp.eq.s32.totalorder %s73, 3
    %p134 = por %p132, %p133
    %p136 = scmp.ne.s32.totalorder %s119, %s135
    %p137 = scmp.eq.s32.totalorder %s73, 0
    %p138 = por %p136, %p137
    %s139 = ssub.s32 %s74, %s86
    %p140 = scmp.eq.s32.totalorder %s139, 0
    %s142 = sadd.s32 %s141, 1
    %s143 = scalar_select %p140, %s141, %s142
    %p146 = pneg %p140
    %p147 = scmp.eq.s32.totalorder %s67, 3
    %p148 = por %p146, %p147
    %p149 = scmp.ne.s32.totalorder %s141, %s144
    %p150 = scmp.eq.s32.totalorder %s67, 0
    %p151 = por %p149, %p150
    %p152 = scmp.ne.s32.totalorder %s141, %s144
    %p153 = scmp.eq.s32.totalorder %s72, 3
    %p154 = por %p152, %p153
    %p155 = scmp.ne.s32.totalorder %s144, %s145
    %p156 = scmp.eq.s32.totalorder %s72, 0
    %p157 = por %p155, %p156
    %p158 = scmp.ne.s32.totalorder %s144, %s145
    %p159 = scmp.eq.s32.totalorder %s73, 3
    %p160 = por %p158, %p159
    %p162 = scmp.ne.s32.totalorder %s145, %s161
    %p163 = scmp.eq.s32.totalorder %s73, 0
    %p164 = por %p162, %p163
    %s165 = ssub.s32 %s74, %s86
    %p166 = scmp.eq.s32.totalorder %s165, 0
    %s168 = sadd.s32 %s167, 1
    %s169 = scalar_select %p166, %s167, %s168
    %p172 = pneg %p166
    %p173 = scmp.eq.s32.totalorder %s67, 3
    %p174 = por %p172, %p173
    %p175 = scmp.ne.s32.totalorder %s167, %s170
    %p176 = scmp.eq.s32.totalorder %s67, 0
    %p177 = por %p175, %p176
    %p178 = scmp.ne.s32.totalorder %s167, %s170
    %p179 = scmp.eq.s32.totalorder %s72, 3
    %p180 = por %p178, %p179
    %p181 = scmp.ne.s32.totalorder %s170, %s171
    %p182 = scmp.eq.s32.totalorder %s72, 0
    %p183 = por %p181, %p182
    %p184 = scmp.ne.s32.totalorder %s170, %s171
    %p185 = scmp.eq.s32.totalorder %s73, 3
    %p186 = por %p184, %p185
    %p188 = scmp.ne.s32.totalorder %s171, %s187
    %p189 = scmp.eq.s32.totalorder %s73, 0
    %p190 = por %p188, %p189
    %s191 = ssub.s32 %s75, %s82
    %p192 = scmp.eq.s32.totalorder %s191, 0
    %s194 = sadd.s32 %s193, 1
    %s195 = scalar_select %p192, %s193, %s194
    %p198 = pneg %p192
    %p199 = scmp.eq.s32.totalorder %s67, 3
    %p200 = por %p198, %p199
    %p201 = scmp.ne.s32.totalorder %s193, %s196
    %p202 = scmp.eq.s32.totalorder %s67, 0
    %p203 = por %p201, %p202
    %p204 = scmp.ne.s32.totalorder %s193, %s196
    %p205 = scmp.eq.s32.totalorder %s72, 3
    %p206 = por %p204, %p205
    %p207 = scmp.ne.s32.totalorder %s196, %s197
    %p208 = scmp.eq.s32.totalorder %s72, 0
    %p209 = por %p207, %p208
    %p210 = scmp.ne.s32.totalorder %s196, %s197
    %p211 = scmp.eq.s32.totalorder %s73, 3
    %p212 = por %p210, %p211
    %p214 = scmp.ne.s32.totalorder %s197, %s213
    %p215 = scmp.eq.s32.totalorder %s73, 0
    %p216 = por %p214, %p215
    %s217 = ssub.s32 %s75, %s82
    %p218 = scmp.eq.s32.totalorder %s217, 0
    %s220 = sadd.s32 %s219, 1
    %s221 = scalar_select %p218, %s219, %s220
    %p224 = pneg %p218
    %p225 = scmp.eq.s32.totalorder %s67, 3
    %p226 = por %p224, %p225
    %p227 = scmp.ne.s32.totalorder %s219, %s222
    %p228 = scmp.eq.s32.totalorder %s67, 0
    %p229 = por %p227, %p228
    %p230 = scmp.ne.s32.totalorder %s219, %s222
    %p231 = scmp.eq.s32.totalorder %s72, 3
    %p232 = por %p230, %p231
    %p233 = scmp.ne.s32.totalorder %s222, %s223
    %p234 = scmp.eq.s32.totalorder %s72, 0
    %p235 = por %p233, %p234
    %p236 = scmp.ne.s32.totalorder %s222, %s223
    %p237 = scmp.eq.s32.totalorder %s73, 3
    %p238 = por %p236, %p237
    %p240 = scmp.ne.s32.totalorder %s223, %s239
    %p241 = scmp.eq.s32.totalorder %s73, 0
    %p242 = por %p240, %p241
    %s243 = ssub.s32 %s75, %s82
    %p244 = scmp.eq.s32.totalorder %s243, 0
    %s246 = sadd.s32 %s245, 1
    %s247 = scalar_select %p244, %s245, %s246
    %p250 = pneg %p244
    %p251 = scmp.eq.s32.totalorder %s67, 3
    %p252 = por %p250, %p251
    %p253 = scmp.ne.s32.totalorder %s245, %s248
    %p254 = scmp.eq.s32.totalorder %s67, 0
    %p255 = por %p253, %p254
    %p256 = scmp.ne.s32.totalorder %s245, %s248
    %p257 = scmp.eq.s32.totalorder %s72, 3
    %p258 = por %p256, %p257
    %p259 = scmp.ne.s32.totalorder %s248, %s249
    %p260 = scmp.eq.s32.totalorder %s72, 0
    %p261 = por %p259, %p260
    %p262 = scmp.ne.s32.totalorder %s248, %s249
    %p263 = scmp.eq.s32.totalorder %s73, 3
    %p264 = por %p262, %p263
    %p266 = scmp.ne.s32.totalorder %s249, %s265
    %p267 = scmp.eq.s32.totalorder %s73, 0
    %p268 = por %p266, %p267
    %s269 = ssub.s32 %s75, %s82
    %p270 = scmp.eq.s32.totalorder %s269, 0
    %s272 = sadd.s32 %s271, 1
    %s273 = scalar_select %p270, %s271, %s272
    %p276 = pneg %p270
    %p277 = scmp.eq.s32.totalorder %s67, 3
    %p278 = por %p276, %p277
    %p279 = scmp.ne.s32.totalorder %s271, %s274
    %p280 = scmp.eq.s32.totalorder %s67, 0
    %p281 = por %p279, %p280
    %p282 = scmp.ne.s32.totalorder %s271, %s274
    %p283 = scmp.eq.s32.totalorder %s72, 3
    %p284 = por %p282, %p283
    %p285 = scmp.ne.s32.totalorder %s274, %s275
    %p286 = scmp.eq.s32.totalorder %s72, 0
    %p287 = por %p285, %p286
    %p288 = scmp.ne.s32.totalorder %s274, %s275
    %p289 = scmp.eq.s32.totalorder %s73, 3
    %p290 = por %p288, %p289
    %p292 = scmp.ne.s32.totalorder %s275, %s291
    %p293 = scmp.eq.s32.totalorder %s73, 0
    %p294 = por %p292, %p293
    %s295 = ssub.s32 %s75, %s82
    %p296 = scmp.eq.s32.totalorder %s295, 0
    %s298 = sadd.s32 %s297, 1
    %s299 = scalar_select %p296, %s297, %s298
    %p302 = pneg %p296
    %p303 = scmp.eq.s32.totalorder %s67, 3
    %p304 = por %p302, %p303
    %p305 = scmp.ne.s32.totalorder %s297, %s300
    %p306 = scmp.eq.s32.totalorder %s67, 0
    %p307 = por %p305, %p306
    %p308 = scmp.ne.s32.totalorder %s297, %s300
    %p309 = scmp.eq.s32.totalorder %s72, 3
    %p310 = por %p308, %p309
    %p311 = scmp.ne.s32.totalorder %s300, %s301
    %p312 = scmp.eq.s32.totalorder %s72, 0
    %p313 = por %p311, %p312
    %p314 = scmp.ne.s32.totalorder %s300, %s301
    %p315 = scmp.eq.s32.totalorder %s73, 3
    %p316 = por %p314, %p315
    %p318 = scmp.ne.s32.totalorder %s301, %s317
    %p319 = scmp.eq.s32.totalorder %s73, 0
    %p320 = por %p318, %p319
    %s321 = ssub.s32 %s75, %s82
    %p322 = scmp.eq.s32.totalorder %s321, 0
    %s324 = sadd.s32 %s323, 1
    %s325 = scalar_select %p322, %s323, %s324
    %p328 = pneg %p322
    %p329 = scmp.eq.s32.totalorder %s67, 3
    %p330 = por %p328, %p329
    %p331 = scmp.ne.s32.totalorder %s323, %s326
    %p332 = scmp.eq.s32.totalorder %s67, 0
    %p333 = por %p331, %p332
    %p334 = scmp.ne.s32.totalorder %s323, %s326
    %p335 = scmp.eq.s32.totalorder %s72, 3
    %p336 = por %p334, %p335
    %p337 = scmp.ne.s32.totalorder %s326, %s327
    %p338 = scmp.eq.s32.totalorder %s72, 0
    %p339 = por %p337, %p338
    %p340 = scmp.ne.s32.totalorder %s326, %s327
    %p341 = scmp.eq.s32.totalorder %s73, 3
    %p342 = por %p340, %p341
    %p344 = scmp.ne.s32.totalorder %s327, %s343
    %p345 = scmp.eq.s32.totalorder %s73, 0
    %p346 = por %p344, %p345
    %s347 = ssub.s32 %s75, %s82
    %p348 = scmp.eq.s32.totalorder %s347, 0
    %s350 = sadd.s32 %s349, 1
    %s351 = scalar_select %p348, %s349, %s350
    %p354 = pneg %p348
    %p355 = scmp.eq.s32.totalorder %s67, 3
    %p356 = por %p354, %p355
    %p357 = scmp.ne.s32.totalorder %s349, %s352
    %p358 = scmp.eq.s32.totalorder %s67, 0
    %p359 = por %p357, %p358
    %p360 = scmp.ne.s32.totalorder %s349, %s352
    %p361 = scmp.eq.s32.totalorder %s72, 3
    %p362 = por %p360, %p361
    %p363 = scmp.ne.s32.totalorder %s352, %s353
    %p364 = scmp.eq.s32.totalorder %s72, 0
    %p365 = por %p363, %p364
    %p366 = scmp.ne.s32.totalorder %s352, %s353
    %p367 = scmp.eq.s32.totalorder %s73, 3
    %p368 = por %p366, %p367
    %p370 = scmp.ne.s32.totalorder %s353, %s369
    %p371 = scmp.eq.s32.totalorder %s73, 0
    %p372 = por %p370, %p371
    %s373 = ssub.s32 %s75, %s82
    %p374 = scmp.eq.s32.totalorder %s373, 0
    %s376 = sadd.s32 %s375, 1
    %s377 = scalar_select %p374, %s375, %s376
    %p380 = pneg %p374
    %p381 = scmp.eq.s32.totalorder %s67, 3
    %p382 = por %p380, %p381
    %p383 = scmp.ne.s32.totalorder %s375, %s378
    %p384 = scmp.eq.s32.totalorder %s67, 0
    %p385 = por %p383, %p384
    %p386 = scmp.ne.s32.totalorder %s375, %s378
    %p387 = scmp.eq.s32.totalorder %s72, 3
    %p388 = por %p386, %p387
    %p389 = scmp.ne.s32.totalorder %s378, %s379
    %p390 = scmp.eq.s32.totalorder %s72, 0
    %p391 = por %p389, %p390
    %p392 = scmp.ne.s32.totalorder %s378, %s379
    %p393 = scmp.eq.s32.totalorder %s73, 3
    %p394 = por %p392, %p393
    %p396 = scmp.ne.s32.totalorder %s379, %s395
    %p397 = scmp.eq.s32.totalorder %s73, 0
    %p398 = por %p396, %p397
    %s399 = ssub.s32 %s75, %s82
    %p400 = scmp.eq.s32.totalorder %s399, 0
    %s402 = sadd.s32 %s401, 1
    %s403 = scalar_select %p400, %s401, %s402
    %p406 = pneg %p400
    %p407 = scmp.eq.s32.totalorder %s67, 3
    %p408 = por %p406, %p407
    %p409 = scmp.ne.s32.totalorder %s401, %s404
    %p410 = scmp.eq.s32.totalorder %s67, 0
    %p411 = por %p409, %p410
    %p412 = scmp.ne.s32.totalorder %s401, %s404
    %p413 = scmp.eq.s32.totalorder %s72, 3
    %p414 = por %p412, %p413
    %p415 = scmp.ne.s32.totalorder %s404, %s405
    %p416 = scmp.eq.s32.totalorder %s72, 0
    %p417 = por %p415, %p416
    %p418 = scmp.ne.s32.totalorder %s404, %s405
    %p419 = scmp.eq.s32.totalorder %s73, 3
    %p420 = por %p418, %p419
    %p422 = scmp.ne.s32.totalorder %s405, %s421
    %p423 = scmp.eq.s32.totalorder %s73, 0
    %p424 = por %p422, %p423
    %s425 = ssub.s32 %s75, %s82
    %p426 = scmp.eq.s32.totalorder %s425, 0
    %s428 = sadd.s32 %s427, 1
    %s429 = scalar_select %p426, %s427, %s428
    %p432 = pneg %p426
    %p433 = scmp.eq.s32.totalorder %s67, 3
    %p434 = por %p432, %p433
    %p435 = scmp.ne.s32.totalorder %s427, %s430
    %p436 = scmp.eq.s32.totalorder %s67, 0
    %p437 = por %p435, %p436
    %p438 = scmp.ne.s32.totalorder %s427, %s430
    %p439 = scmp.eq.s32.totalorder %s72, 3
    %p440 = por %p438, %p439
    %p441 = scmp.ne.s32.totalorder %s430, %s431
    %p442 = scmp.eq.s32.totalorder %s72, 0
    %p443 = por %p441, %p442
    %p444 = scmp.ne.s32.totalorder %s430, %s431
    %p445 = scmp.eq.s32.totalorder %s73, 3
    %p446 = por %p444, %p445
    %p448 = scmp.ne.s32.totalorder %s431, %s447
    %p449 = scmp.eq.s32.totalorder %s73, 0
    %p450 = por %p448, %p449
    %s451 = ssub.s32 %s75, %s82
    %p452 = scmp.eq.s32.totalorder %s451, 0
    %s454 = sadd.s32 %s453, 1
    %s455 = scalar_select %p452, %s453, %s454
    %p458 = pneg %p452
    %p459 = scmp.eq.s32.totalorder %s67, 3
    %p460 = por %p458, %p459
    %p461 = scmp.ne.s32.totalorder %s453, %s456
    %p462 = scmp.eq.s32.totalorder %s67, 0
    %p463 = por %p461, %p462
    %p464 = scmp.ne.s32.totalorder %s453, %s456
    %p465 = scmp.eq.s32.totalorder %s72, 3
    %p466 = por %p464, %p465
    %p467 = scmp.ne.s32.totalorder %s456, %s457
    %p468 = scmp.eq.s32.totalorder %s72, 0
    %p469 = por %p467, %p468
    %p470 = scmp.ne.s32.totalorder %s456, %s457
    %p471 = scmp.eq.s32.totalorder %s73, 3
    %p472 = por %p470, %p471
    %p474 = scmp.ne.s32.totalorder %s457, %s473
    %p475 = scmp.eq.s32.totalorder %s73, 0
    %p476 = por %p474, %p475
    %s477 = ssub.s32 %s75, %s82
    %p478 = scmp.eq.s32.totalorder %s477, 0
    %s480 = sadd.s32 %s479, 1
    %s481 = scalar_select %p478, %s479, %s480
    %p484 = pneg %p478
    %p485 = scmp.eq.s32.totalorder %s67, 3
    %p486 = por %p484, %p485
    %p487 = scmp.ne.s32.totalorder %s479, %s482
    %p488 = scmp.eq.s32.totalorder %s67, 0
    %p489 = por %p487, %p488
    %p490 = scmp.ne.s32.totalorder %s479, %s482
    %p491 = scmp.eq.s32.totalorder %s72, 3
    %p492 = por %p490, %p491
    %p493 = scmp.ne.s32.totalorder %s482, %s483
    %p494 = scmp.eq.s32.totalorder %s72, 0
    %p495 = por %p493, %p494
    %p496 = scmp.ne.s32.totalorder %s482, %s483
    %p497 = scmp.eq.s32.totalorder %s73, 3
    %p498 = por %p496, %p497
    %p500 = scmp.ne.s32.totalorder %s483, %s499
    %p501 = scmp.eq.s32.totalorder %s73, 0
    %p502 = por %p500, %p501
    %s503 = ssub.s32 %s75, %s82
    %p504 = scmp.eq.s32.totalorder %s503, 0
    %s506 = sadd.s32 %s505, 1
    %s507 = scalar_select %p504, %s505, %s506
    %p510 = pneg %p504
    %p511 = scmp.eq.s32.totalorder %s67, 3
    %p512 = por %p510, %p511
    %p513 = scmp.ne.s32.totalorder %s505, %s508
    %p514 = scmp.eq.s32.totalorder %s67, 0
    %p515 = por %p513, %p514
    %p516 = scmp.ne.s32.totalorder %s505, %s508
    %p517 = scmp.eq.s32.totalorder %s72, 3
    %p518 = por %p516, %p517
    %p519 = scmp.ne.s32.totalorder %s508, %s509
    %p520 = scmp.eq.s32.totalorder %s72, 0
    %p521 = por %p519, %p520
    %p522 = scmp.ne.s32.totalorder %s508, %s509
    %p523 = scmp.eq.s32.totalorder %s73, 3
    %p524 = por %p522, %p523
    %p526 = scmp.ne.s32.totalorder %s509, %s525
    %p527 = scmp.eq.s32.totalorder %s73, 0
    %p528 = por %p526, %p527
    %s529 = ssub.s32 %s75, %s82
    %p530 = scmp.eq.s32.totalorder %s529, 0
    %s532 = sadd.s32 %s531, 1
    %s533 = scalar_select %p530, %s531, %s532
    %p536 = pneg %p530
    %p537 = scmp.eq.s32.totalorder %s67, 3
    %p538 = por %p536, %p537
    %p539 = scmp.ne.s32.totalorder %s531, %s534
    %p540 = scmp.eq.s32.totalorder %s67, 0
    %p541 = por %p539, %p540
    %p542 = scmp.ne.s32.totalorder %s531, %s534
    %p543 = scmp.eq.s32.totalorder %s72, 3
    %p544 = por %p542, %p543
    %p545 = scmp.ne.s32.totalorder %s534, %s535
    %p546 = scmp.eq.s32.totalorder %s72, 0
    %p547 = por %p545, %p546
    %p548 = scmp.ne.s32.totalorder %s534, %s535
    %p549 = scmp.eq.s32.totalorder %s73, 3
    %p550 = por %p548, %p549
    %p552 = scmp.ne.s32.totalorder %s535, %s551
    %p553 = scmp.eq.s32.totalorder %s73, 0
    %p554 = por %p552, %p553
    %s555 = ssub.s32 %s75, %s82
    %p556 = scmp.eq.s32.totalorder %s555, 0
    %s558 = sadd.s32 %s557, 1
    %s559 = scalar_select %p556, %s557, %s558
    %p562 = pneg %p556
    %p563 = scmp.eq.s32.totalorder %s67, 3
    %p564 = por %p562, %p563
    %p565 = scmp.ne.s32.totalorder %s557, %s560
    %p566 = scmp.eq.s32.totalorder %s67, 0
    %p567 = por %p565, %p566
    %p568 = scmp.ne.s32.totalorder %s557, %s560
    %p569 = scmp.eq.s32.totalorder %s72, 3
    %p570 = por %p568, %p569
    %p571 = scmp.ne.s32.totalorder %s560, %s561
    %p572 = scmp.eq.s32.totalorder %s72, 0
    %p573 = por %p571, %p572
    %p574 = scmp.ne.s32.totalorder %s560, %s561
    %p575 = scmp.eq.s32.totalorder %s73, 3
    %p576 = por %p574, %p575
    %p578 = scmp.ne.s32.totalorder %s561, %s577
    %p579 = scmp.eq.s32.totalorder %s73, 0
    %p580 = por %p578, %p579
    %s581 = ssub.s32 %s75, %s82
    %p582 = scmp.eq.s32.totalorder %s581, 0
    %s584 = sadd.s32 %s583, 1
    %s585 = scalar_select %p582, %s583, %s584
    %p588 = pneg %p582
    %p589 = scmp.eq.s32.totalorder %s67, 3
    %p590 = por %p588, %p589
    %p591 = scmp.ne.s32.totalorder %s583, %s586
    %p592 = scmp.eq.s32.totalorder %s67, 0
    %p593 = por %p591, %p592
    %p594 = scmp.ne.s32.totalorder %s583, %s586
    %p595 = scmp.eq.s32.totalorder %s72, 3
    %p596 = por %p594, %p595
    %p597 = scmp.ne.s32.totalorder %s586, %s587
    %p598 = scmp.eq.s32.totalorder %s72, 0
    %p599 = por %p597, %p598
    %p600 = scmp.ne.s32.totalorder %s586, %s587
    %p601 = scmp.eq.s32.totalorder %s73, 3
    %p602 = por %p600, %p601
    %p604 = scmp.ne.s32.totalorder %s587, %s603
    %p605 = scmp.eq.s32.totalorder %s73, 0
    %p606 = por %p604, %p605
    %s607 = ssub.s32 %s75, %s82
    %p608 = scmp.eq.s32.totalorder %s607, 0
    %s610 = sadd.s32 %s609, 1
    %s611 = scalar_select %p608, %s609, %s610
    %p614 = pneg %p608
    %p615 = scmp.eq.s32.totalorder %s67, 3
    %p616 = por %p614, %p615
    %p617 = scmp.ne.s32.totalorder %s609, %s612
    %p618 = scmp.eq.s32.totalorder %s67, 0
    %p619 = por %p617, %p618
    %p620 = scmp.ne.s32.totalorder %s609, %s612
    %p621 = scmp.eq.s32.totalorder %s72, 3
    %p622 = por %p620, %p621
    %p623 = scmp.ne.s32.totalorder %s612, %s613
    %p624 = scmp.eq.s32.totalorder %s72, 0
    %p625 = por %p623, %p624
    %p626 = scmp.ne.s32.totalorder %s612, %s613
    %p627 = scmp.eq.s32.totalorder %s73, 3
    %p628 = por %p626, %p627
    %p630 = scmp.ne.s32.totalorder %s613, %s629
    %p631 = scmp.eq.s32.totalorder %s73, 0
    %p632 = por %p630, %p631
    %s633 = ssub.s32 %s75, %s82
    %p634 = scmp.eq.s32.totalorder %s633, 0
    %s636 = sadd.s32 %s635, 1
    %s637 = scalar_select %p634, %s635, %s636
    %p640 = pneg %p634
    %p641 = scmp.eq.s32.totalorder %s67, 3
    %p642 = por %p640, %p641
    %p643 = scmp.ne.s32.totalorder %s635, %s638
    %p644 = scmp.eq.s32.totalorder %s67, 0
    %p645 = por %p643, %p644
    %p646 = scmp.ne.s32.totalorder %s635, %s638
    %p647 = scmp.eq.s32.totalorder %s72, 3
    %p648 = por %p646, %p647
    %p649 = scmp.ne.s32.totalorder %s638, %s639
    %p650 = scmp.eq.s32.totalorder %s72, 0
    %p651 = por %p649, %p650
    %p652 = scmp.ne.s32.totalorder %s638, %s639
    %p653 = scmp.eq.s32.totalorder %s73, 3
    %p654 = por %p652, %p653
    %p656 = scmp.ne.s32.totalorder %s639, %s655
    %p657 = scmp.eq.s32.totalorder %s73, 0
    %p658 = por %p656, %p657
    %s659 = ssub.s32 %s75, %s82
    %p660 = scmp.eq.s32.totalorder %s659, 0
    %s662 = sadd.s32 %s661, 1
    %s663 = scalar_select %p660, %s661, %s662
    %p666 = pneg %p660
    %p667 = scmp.eq.s32.totalorder %s67, 3
    %p668 = por %p666, %p667
    %p669 = scmp.ne.s32.totalorder %s661, %s664
    %p670 = scmp.eq.s32.totalorder %s67, 0
    %p671 = por %p669, %p670
    %p672 = scmp.ne.s32.totalorder %s661, %s664
    %p673 = scmp.eq.s32.totalorder %s72, 3
    %p674 = por %p672, %p673
    %p675 = scmp.ne.s32.totalorder %s664, %s665
    %p676 = scmp.eq.s32.totalorder %s72, 0
    %p677 = por %p675, %p676
    %p678 = scmp.ne.s32.totalorder %s664, %s665
    %p679 = scmp.eq.s32.totalorder %s73, 3
    %p680 = por %p678, %p679
    %p682 = scmp.ne.s32.totalorder %s665, %s681
    %p683 = scmp.eq.s32.totalorder %s73, 0
    %p684 = por %p682, %p683
    %s685 = ssub.s32 %s75, %s82
    %p686 = scmp.eq.s32.totalorder %s685, 0
    %s688 = sadd.s32 %s687, 1
    %s689 = scalar_select %p686, %s687, %s688
    %p692 = pneg %p686
    %p693 = scmp.eq.s32.totalorder %s67, 3
    %p694 = por %p692, %p693
    %p695 = scmp.ne.s32.totalorder %s687, %s690
    %p696 = scmp.eq.s32.totalorder %s67, 0
    %p697 = por %p695, %p696
    %p698 = scmp.ne.s32.totalorder %s687, %s690
    %p699 = scmp.eq.s32.totalorder %s72, 3
    %p700 = por %p698, %p699
    %p701 = scmp.ne.s32.totalorder %s690, %s691
    %p702 = scmp.eq.s32.totalorder %s72, 0
    %p703 = por %p701, %p702
    %p704 = scmp.ne.s32.totalorder %s690, %s691
    %p705 = scmp.eq.s32.totalorder %s73, 3
    %p706 = por %p704, %p705
    %p708 = scmp.ne.s32.totalorder %s691, %s707
    %p709 = scmp.eq.s32.totalorder %s73, 0
    %p710 = por %p708, %p709
    %s711 = ssub.s32 %s75, %s82
    %p712 = scmp.eq.s32.totalorder %s711, 0
    %s714 = sadd.s32 %s713, 1
    %s715 = scalar_select %p712, %s713, %s714
    %p718 = pneg %p712
    %p719 = scmp.eq.s32.totalorder %s67, 3
    %p720 = por %p718, %p719
    %p721 = scmp.ne.s32.totalorder %s713, %s716
    %p722 = scmp.eq.s32.totalorder %s67, 0
    %p723 = por %p721, %p722
    %p724 = scmp.ne.s32.totalorder %s713, %s716
    %p725 = scmp.eq.s32.totalorder %s72, 3
    %p726 = por %p724, %p725
    %p727 = scmp.ne.s32.totalorder %s716, %s717
    %p728 = scmp.eq.s32.totalorder %s72, 0
    %p729 = por %p727, %p728
    %p730 = scmp.ne.s32.totalorder %s716, %s717
    %p731 = scmp.eq.s32.totalorder %s73, 3
    %p732 = por %p730, %p731
    %p734 = scmp.ne.s32.totalorder %s717, %s733
    %p735 = scmp.eq.s32.totalorder %s73, 0
    %p736 = por %p734, %p735
    %s737 = ssub.s32 %s75, %s82
    %p738 = scmp.eq.s32.totalorder %s737, 0
    %s740 = sadd.s32 %s739, 1
    %s741 = scalar_select %p738, %s739, %s740
    %p744 = pneg %p738
    %p745 = scmp.eq.s32.totalorder %s67, 3
    %p746 = por %p744, %p745
    %p747 = scmp.ne.s32.totalorder %s739, %s742
    %p748 = scmp.eq.s32.totalorder %s67, 0
    %p749 = por %p747, %p748
    %p750 = scmp.ne.s32.totalorder %s739, %s742
    %p751 = scmp.eq.s32.totalorder %s72, 3
    %p752 = por %p750, %p751
    %p753 = scmp.ne.s32.totalorder %s742, %s743
    %p754 = scmp.eq.s32.totalorder %s72, 0
    %p755 = por %p753, %p754
    %p756 = scmp.ne.s32.totalorder %s742, %s743
    %p757 = scmp.eq.s32.totalorder %s73, 3
    %p758 = por %p756, %p757
    %p760 = scmp.ne.s32.totalorder %s743, %s759
    %p761 = scmp.eq.s32.totalorder %s73, 0
    %p762 = por %p760, %p761
    %s763 = ssub.s32 %s75, %s82
    %p764 = scmp.eq.s32.totalorder %s763, 0
    %s766 = sadd.s32 %s765, 1
    %s767 = scalar_select %p764, %s765, %s766
    %p770 = pneg %p764
    %p771 = scmp.eq.s32.totalorder %s67, 3
    %p772 = por %p770, %p771
    %p773 = scmp.ne.s32.totalorder %s765, %s768
    %p774 = scmp.eq.s32.totalorder %s67, 0
    %p775 = por %p773, %p774
    %p776 = scmp.ne.s32.totalorder %s765, %s768
    %p777 = scmp.eq.s32.totalorder %s72, 3
    %p778 = por %p776, %p777
    %p779 = scmp.ne.s32.totalorder %s768, %s769
    %p780 = scmp.eq.s32.totalorder %s72, 0
    %p781 = por %p779, %p780
    %p782 = scmp.ne.s32.totalorder %s768, %s769
    %p783 = scmp.eq.s32.totalorder %s73, 3
    %p784 = por %p782, %p783
    %p786 = scmp.ne.s32.totalorder %s769, %s785
    %p787 = scmp.eq.s32.totalorder %s73, 0
    %p788 = por %p786, %p787
    %s789 = ssub.s32 %s75, %s82
    %p790 = scmp.eq.s32.totalorder %s789, 0
    %s792 = sadd.s32 %s791, 1
    %s793 = scalar_select %p790, %s791, %s792
    %p796 = pneg %p790
    %p797 = scmp.eq.s32.totalorder %s67, 3
    %p798 = por %p796, %p797
    %p799 = scmp.ne.s32.totalorder %s791, %s794
    %p800 = scmp.eq.s32.totalorder %s67, 0
    %p801 = por %p799, %p800
    %p802 = scmp.ne.s32.totalorder %s791, %s794
    %p803 = scmp.eq.s32.totalorder %s72, 3
    %p804 = por %p802, %p803
    %p805 = scmp.ne.s32.totalorder %s794, %s795
    %p806 = scmp.eq.s32.totalorder %s72, 0
    %p807 = por %p805, %p806
    %p808 = scmp.ne.s32.totalorder %s794, %s795
    %p809 = scmp.eq.s32.totalorder %s73, 3
    %p810 = por %p808, %p809
    %p812 = scmp.ne.s32.totalorder %s795, %s811
    %p813 = scmp.eq.s32.totalorder %s73, 0
    %p814 = por %p812, %p813
    %s816 = sadd.s32 %s815, 1
    %p819 = scmp.eq.s32.totalorder %s67, 3
    %p820 = scmp.ne.s32.totalorder %s815, %s817
    %p821 = scmp.eq.s32.totalorder %s67, 0
    %p822 = por %p820, %p821
    %p823 = scmp.ne.s32.totalorder %s815, %s817
    %p824 = scmp.eq.s32.totalorder %s72, 3
    %p825 = por %p823, %p824
    %p826 = scmp.ne.s32.totalorder %s817, %s818
    %p827 = scmp.eq.s32.totalorder %s72, 0
    %p828 = por %p826, %p827
    %p829 = scmp.ne.s32.totalorder %s817, %s818
    %p830 = scmp.eq.s32.totalorder %s73, 3
    %p831 = por %p829, %p830
    %p833 = scmp.ne.s32.totalorder %s818, %s832
    %p834 = scmp.eq.s32.totalorder %s73, 0
    %p835 = por %p833, %p834
    %s837 = sadd.s32 %s836, 1
    %p840 = scmp.eq.s32.totalorder %s67, 3
    %p841 = scmp.ne.s32.totalorder %s836, %s838
    %p842 = scmp.eq.s32.totalorder %s67, 0
    %p843 = por %p841, %p842
    %p844 = scmp.ne.s32.totalorder %s836, %s838
    %p845 = scmp.eq.s32.totalorder %s72, 3
    %p846 = por %p844, %p845
    %p847 = scmp.ne.s32.totalorder %s838, %s839
    %p848 = scmp.eq.s32.totalorder %s72, 0
    %p849 = por %p847, %p848
    %p850 = scmp.ne.s32.totalorder %s838, %s839
    %p851 = scmp.eq.s32.totalorder %s73, 3
    %p852 = por %p850, %p851
    %p854 = scmp.ne.s32.totalorder %s839, %s853
    %p855 = scmp.eq.s32.totalorder %s73, 0
    %p856 = por %p854, %p855
    %s857 = ssub.s32 %s74, %s86
    %p858 = scmp.eq.s32.totalorder %s857, 0
    %s860 = sadd.s32 %s859, 1
    %s861 = scalar_select %p858, %s859, %s860
    %p864 = pneg %p858
    %p865 = scmp.eq.s32.totalorder %s67, 3
    %p866 = por %p864, %p865
    %p867 = scmp.ne.s32.totalorder %s859, %s862
    %p868 = scmp.eq.s32.totalorder %s67, 0
    %p869 = por %p867, %p868
    %p870 = scmp.ne.s32.totalorder %s859, %s862
    %p871 = scmp.eq.s32.totalorder %s72, 3
    %p872 = por %p870, %p871
    %p873 = scmp.ne.s32.totalorder %s862, %s863
    %p874 = scmp.eq.s32.totalorder %s72, 0
    %p875 = por %p873, %p874
    %p876 = scmp.ne.s32.totalorder %s862, %s863
    %p877 = scmp.eq.s32.totalorder %s73, 3
    %p878 = por %p876, %p877
    %p880 = scmp.ne.s32.totalorder %s863, %s879
    %p881 = scmp.eq.s32.totalorder %s73, 0
    %p882 = por %p880, %p881
    %p883 = scmp.le.s32.totalorder 1, %s67
    %p884 = scmp.lt.s32.totalorder %s67, 5
    %p885 = pnand %p883, %p884
    %p886 = pneg %p885
    // Predicated region
    $region9: #{transformer_decoder.1} parent=5 // pred_check
      _
    $region10: #{transformer_decoder.1} parent=5 // pred_check_branch
      %888 = sbr.rel (%p885) target = $region12
    $region11: #{transformer_decoder.1} parent=5 // pred_region
      %s889 = ssub.s32 %s67, 1
      // Predicated region
      $region13: #{transformer_decoder.1} parent=11 // pred_check
        %p890 = pneg %p828
      $region14: #{transformer_decoder.1} parent=11 // pred_check_branch
        %892 = sbr.rel (%p890) target = $region16
      $region15: #{transformer_decoder.1} parent=11 // pred_region
        _
      $region16: #{transformer_decoder.1} parent=11 // pred_fallthru
        _
      // Predicated region
      $region17: #{transformer_decoder.1} parent=11 // pred_check
        %p893 = pneg %p849
      $region18: #{transformer_decoder.1} parent=11 // pred_check_branch
        %895 = sbr.rel (%p893) target = $region20
      $region19: #{transformer_decoder.1} parent=11 // pred_region
        _
      $region20: #{transformer_decoder.1} parent=11 // pred_fallthru
        _
    $region12: #{transformer_decoder.1} parent=5 // pred_fallthru
      _
    %p896 = scmp.lt.s32.totalorder %s67, 4
    // Predicated region
    $region21: #{transformer_decoder.1} parent=5 // pred_check
      %p897 = pneg %p896
    $region22: #{transformer_decoder.1} parent=5 // pred_check_branch
      %899 = sbr.rel (%p897) target = $region24
    $region23: #{transformer_decoder.1} parent=5 // pred_region
      // Predicated region
      $region25: #{transformer_decoder.1} parent=23 // pred_check
        %p900 = pneg %p99
      $region26: #{transformer_decoder.1} parent=23 // pred_check_branch
        %902 = sbr.rel (%p900) target = $region28
      $region27: #{transformer_decoder.1} parent=23 // pred_region
        %p903 = scmp.lt.s32.totalorder %s74, 1
        %s904 = scalar_select %p903, %s74, 1
        %s905 = smul.addr %s904, 8
        %s906 = scalar_lea.vmem %s1, %s905
      $region28: #{transformer_decoder.1} parent=23 // pred_fallthru
        _
      // Predicated region
      $region29: #{transformer_decoder.1} parent=23 // pred_check
        %p907 = pneg %p125
      $region30: #{transformer_decoder.1} parent=23 // pred_check_branch
        %909 = sbr.rel (%p907) target = $region32
      $region31: #{transformer_decoder.1} parent=23 // pred_region
        %p910 = scmp.lt.s32.totalorder %s74, 1
        %s911 = scalar_select %p910, %s74, 1
        %s912 = smul.addr %s911, 2
        %s913 = smul.addr %s912, 8
        %s914 = scalar_lea.vmem %s3, %s913
      $region32: #{transformer_decoder.1} parent=23 // pred_fallthru
        _
      // Predicated region
      $region33: #{transformer_decoder.1} parent=23 // pred_check
        %p915 = pneg %p151
      $region34: #{transformer_decoder.1} parent=23 // pred_check_branch
        %917 = sbr.rel (%p915) target = $region36
      $region35: #{transformer_decoder.1} parent=23 // pred_region
        %p918 = scmp.lt.s32.totalorder %s74, 1
        %s919 = scalar_select %p918, %s74, 1
        %s920 = smul.addr %s919, 2
        %s921 = smul.addr %s920, 8
        %s922 = scalar_lea.vmem %s5, %s921
      $region36: #{transformer_decoder.1} parent=23 // pred_fallthru
        _
      // Predicated region
      $region37: #{transformer_decoder.1} parent=23 // pred_check
        %p923 = pneg %p177
      $region38: #{transformer_decoder.1} parent=23 // pred_check_branch
        %925 = sbr.rel (%p923) target = $region40
      $region39: #{transformer_decoder.1} parent=23 // pred_region
        %p926 = scmp.lt.s32.totalorder %s74, 1
        %s927 = scalar_select %p926, %s74, 1
        %s928 = smul.addr %s927, 8
        %s929 = scalar_lea.vmem %s7, %s928
      $region40: #{transformer_decoder.1} parent=23 // pred_fallthru
        _
      // Predicated region
      $region41: #{transformer_decoder.1} parent=23 // pred_check
        %p930 = pneg %p203
      $region42: #{transformer_decoder.1} parent=23 // pred_check_branch
        %932 = sbr.rel (%p930) target = $region44
      $region43: #{transformer_decoder.1} parent=23 // pred_region
        %p933 = scmp.lt.s32.totalorder %s75, 1
        %s934 = scalar_select %p933, %s75, 1
        %s935 = scalar_lea.vmem %s9, %s934
      $region44: #{transformer_decoder.1} parent=23 // pred_fallthru
        _
      // Predicated region
      $region45: #{transformer_decoder.1} parent=23 // pred_check
        %p936 = pneg %p229
      $region46: #{transformer_decoder.1} parent=23 // pred_check_branch
        %938 = sbr.rel (%p936) target = $region48
      $region47: #{transformer_decoder.1} parent=23 // pred_region
        %p939 = scmp.lt.s32.totalorder %s75, 1
        %s940 = scalar_select %p939, %s75, 1
        %s941 = scalar_lea.vmem %s11, %s940
      $region48: #{transformer_decoder.1} parent=23 // pred_fallthru
        _
      // Predicated region
      $region49: #{transformer_decoder.1} parent=23 // pred_check
        %p942 = pneg %p255
      $region50: #{transformer_decoder.1} parent=23 // pred_check_branch
        %944 = sbr.rel (%p942) target = $region52
      $region51: #{transformer_decoder.1} parent=23 // pred_region
        %p945 = scmp.lt.s32.totalorder %s75, 1
        %s946 = scalar_select %p945, %s75, 1
        %s947 = scalar_lea.vmem %s13, %s946
      $region52: #{transformer_decoder.1} parent=23 // pred_fallthru
        _
      // Predicated region
      $region53: #{transformer_decoder.1} parent=23 // pred_check
        %p948 = pneg %p281
      $region54: #{transformer_decoder.1} parent=23 // pred_check_branch
        %950 = sbr.rel (%p948) target = $region56
      $region55: #{transformer_decoder.1} parent=23 // pred_region
        %p951 = scmp.lt.s32.totalorder %s75, 1
        %s952 = scalar_select %p951, %s75, 1
        %s953 = scalar_lea.vmem %s15, %s952
      $region56: #{transformer_decoder.1} parent=23 // pred_fallthru
        _
      // Predicated region
      $region57: #{transformer_decoder.1} parent=23 // pred_check
        %p954 = pneg %p307
      $region58: #{transformer_decoder.1} parent=23 // pred_check_branch
        %956 = sbr.rel (%p954) target = $region60
      $region59: #{transformer_decoder.1} parent=23 // pred_region
        %p957 = scmp.lt.s32.totalorder %s75, 1
        %s958 = scalar_select %p957, %s75, 1
        %s959 = scalar_lea.vmem %s17, %s958
      $region60: #{transformer_decoder.1} parent=23 // pred_fallthru
        _
      // Predicated region
      $region61: #{transformer_decoder.1} parent=23 // pred_check
        %p960 = pneg %p333
      $region62: #{transformer_decoder.1} parent=23 // pred_check_branch
        %962 = sbr.rel (%p960) target = $region64
      $region63: #{transformer_decoder.1} parent=23 // pred_region
        %p963 = scmp.lt.s32.totalorder %s75, 1
        %s964 = scalar_select %p963, %s75, 1
        %s965 = scalar_lea.vmem %s19, %s964
      $region64: #{transformer_decoder.1} parent=23 // pred_fallthru
        _
      // Predicated region
      $region65: #{transformer_decoder.1} parent=23 // pred_check
        %p966 = pneg %p359
      $region66: #{transformer_decoder.1} parent=23 // pred_check_branch
        %968 = sbr.rel (%p966) target = $region68
      $region67: #{transformer_decoder.1} parent=23 // pred_region
        %p969 = scmp.lt.s32.totalorder %s75, 1
        %s970 = scalar_select %p969, %s75, 1
        %s971 = smul.addr %s970, 4
        %s972 = smul.addr %s971, 4
        %s973 = scalar_lea.vmem %s21, %s972
      $region68: #{transformer_decoder.1} parent=23 // pred_fallthru
        _
      // Predicated region
      $region69: #{transformer_decoder.1} parent=23 // pred_check
        %p974 = pneg %p385
      $region70: #{transformer_decoder.1} parent=23 // pred_check_branch
        %976 = sbr.rel (%p974) target = $region72
      $region71: #{transformer_decoder.1} parent=23 // pred_region
        %p977 = scmp.lt.s32.totalorder %s75, 1
        %s978 = scalar_select %p977, %s75, 1
        %s979 = smul.addr %s978, 4
        %s980 = smul.addr %s979, 4
        %s981 = scalar_lea.vmem %s23, %s980
      $region72: #{transformer_decoder.1} parent=23 // pred_fallthru
        _
      // Predicated region
      $region73: #{transformer_decoder.1} parent=23 // pred_check
        %p982 = pneg %p411
      $region74: #{transformer_decoder.1} parent=23 // pred_check_branch
        %984 = sbr.rel (%p982) target = $region76
      $region75: #{transformer_decoder.1} parent=23 // pred_region
        %p985 = scmp.lt.s32.totalorder %s75, 1
        %s986 = scalar_select %p985, %s75, 1
        %s987 = smul.addr %s986, 4
        %s988 = smul.addr %s987, 4
        %s989 = scalar_lea.vmem %s25, %s988
      $region76: #{transformer_decoder.1} parent=23 // pred_fallthru
        _
      // Predicated region
      $region77: #{transformer_decoder.1} parent=23 // pred_check
        %p990 = pneg %p437
      $region78: #{transformer_decoder.1} parent=23 // pred_check_branch
        %992 = sbr.rel (%p990) target = $region80
      $region79: #{transformer_decoder.1} parent=23 // pred_region
        %p993 = scmp.lt.s32.totalorder %s75, 1
        %s994 = scalar_select %p993, %s75, 1
        %s995 = smul.addr %s994, 4
        %s996 = smul.addr %s995, 4
        %s997 = scalar_lea.vmem %s27, %s996
      $region80: #{transformer_decoder.1} parent=23 // pred_fallthru
        _
      // Predicated region
      $region81: #{transformer_decoder.1} parent=23 // pred_check
        %p998 = pneg %p463
      $region82: #{transformer_decoder.1} parent=23 // pred_check_branch
        %1000 = sbr.rel (%p998) target = $region84
      $region83: #{transformer_decoder.1} parent=23 // pred_region
        %p1001 = scmp.lt.s32.totalorder %s75, 1
        %s1002 = scalar_select %p1001, %s75, 1
        %s1003 = scalar_lea.vmem %s29, %s1002
      $region84: #{transformer_decoder.1} parent=23 // pred_fallthru
        _
      // Predicated region
      $region85: #{transformer_decoder.1} parent=23 // pred_check
        %p1004 = pneg %p489
      $region86: #{transformer_decoder.1} parent=23 // pred_check_branch
        %1006 = sbr.rel (%p1004) target = $region88
      $region87: #{transformer_decoder.1} parent=23 // pred_region
        %p1007 = scmp.lt.s32.totalorder %s75, 1
        %s1008 = scalar_select %p1007, %s75, 1
        %s1009 = scalar_lea.vmem %s31, %s1008
      $region88: #{transformer_decoder.1} parent=23 // pred_fallthru
        _
      // Predicated region
      $region89: #{transformer_decoder.1} parent=23 // pred_check
        %p1010 = pneg %p515
      $region90: #{transformer_decoder.1} parent=23 // pred_check_branch
        %1012 = sbr.rel (%p1010) target = $region92
      $region91: #{transformer_decoder.1} parent=23 // pred_region
        %p1013 = scmp.lt.s32.totalorder %s75, 1
        %s1014 = scalar_select %p1013, %s75, 1
        %s1015 = scalar_lea.vmem %s33, %s1014
      $region92: #{transformer_decoder.1} parent=23 // pred_fallthru
        _
      // Predicated region
      $region93: #{transformer_decoder.1} parent=23 // pred_check
        %p1016 = pneg %p541
      $region94: #{transformer_decoder.1} parent=23 // pred_check_branch
        %1018 = sbr.rel (%p1016) target = $region96
      $region95: #{transformer_decoder.1} parent=23 // pred_region
        %p1019 = scmp.lt.s32.totalorder %s75, 1
        %s1020 = scalar_select %p1019, %s75, 1
        %s1021 = scalar_lea.vmem %s35, %s1020
      $region96: #{transformer_decoder.1} parent=23 // pred_fallthru
        _
      // Predicated region
      $region97: #{transformer_decoder.1} parent=23 // pred_check
        %p1022 = pneg %p567
      $region98: #{transformer_decoder.1} parent=23 // pred_check_branch
        %1024 = sbr.rel (%p1022) target = $region100
      $region99: #{transformer_decoder.1} parent=23 // pred_region
        %p1025 = scmp.lt.s32.totalorder %s75, 1
        %s1026 = scalar_select %p1025, %s75, 1
        %s1027 = scalar_lea.vmem %s37, %s1026
      $region100: #{transformer_decoder.1} parent=23 // pred_fallthru
        _
      // Predicated region
      $region101: #{transformer_decoder.1} parent=23 // pred_check
        %p1028 = pneg %p593
      $region102: #{transformer_decoder.1} parent=23 // pred_check_branch
        %1030 = sbr.rel (%p1028) target = $region104
      $region103: #{transformer_decoder.1} parent=23 // pred_region
        %p1031 = scmp.lt.s32.totalorder %s75, 1
        %s1032 = scalar_select %p1031, %s75, 1
        %s1033 = scalar_lea.vmem %s39, %s1032
      $region104: #{transformer_decoder.1} parent=23 // pred_fallthru
        _
      // Predicated region
      $region105: #{transformer_decoder.1} parent=23 // pred_check
        %p1034 = pneg %p619
      $region106: #{transformer_decoder.1} parent=23 // pred_check_branch
        %1036 = sbr.rel (%p1034) target = $region108
      $region107: #{transformer_decoder.1} parent=23 // pred_region
        %p1037 = scmp.lt.s32.totalorder %s75, 1
        %s1038 = scalar_select %p1037, %s75, 1
        %s1039 = scalar_lea.vmem %s41, %s1038
      $region108: #{transformer_decoder.1} parent=23 // pred_fallthru
        _
      // Predicated region
      $region109: #{transformer_decoder.1} parent=23 // pred_check
        %p1040 = pneg %p645
      $region110: #{transformer_decoder.1} parent=23 // pred_check_branch
        %1042 = sbr.rel (%p1040) target = $region112
      $region111: #{transformer_decoder.1} parent=23 // pred_region
        %p1043 = scmp.lt.s32.totalorder %s75, 1
        %s1044 = scalar_select %p1043, %s75, 1
        %s1045 = scalar_lea.vmem %s43, %s1044
      $region112: #{transformer_decoder.1} parent=23 // pred_fallthru
        _
      // Predicated region
      $region113: #{transformer_decoder.1} parent=23 // pred_check
        %p1046 = pneg %p671
      $region114: #{transformer_decoder.1} parent=23 // pred_check_branch
        %1048 = sbr.rel (%p1046) target = $region116
      $region115: #{transformer_decoder.1} parent=23 // pred_region
        %p1049 = scmp.lt.s32.totalorder %s75, 1
        %s1050 = scalar_select %p1049, %s75, 1
        %s1051 = scalar_lea.vmem %s45, %s1050
      $region116: #{transformer_decoder.1} parent=23 // pred_fallthru
        _
      // Predicated region
      $region117: #{transformer_decoder.1} parent=23 // pred_check
        %p1052 = pneg %p697
      $region118: #{transformer_decoder.1} parent=23 // pred_check_branch
        %1054 = sbr.rel (%p1052) target = $region120
      $region119: #{transformer_decoder.1} parent=23 // pred_region
        %p1055 = scmp.lt.s32.totalorder %s75, 1
        %s1056 = scalar_select %p1055, %s75, 1
        %s1057 = smul.addr %s1056, 4
        %s1058 = smul.addr %s1057, 4
        %s1059 = scalar_lea.vmem %s47, %s1058
      $region120: #{transformer_decoder.1} parent=23 // pred_fallthru
        _
      // Predicated region
      $region121: #{transformer_decoder.1} parent=23 // pred_check
        %p1060 = pneg %p723
      $region122: #{transformer_decoder.1} parent=23 // pred_check_branch
        %1062 = sbr.rel (%p1060) target = $region124
      $region123: #{transformer_decoder.1} parent=23 // pred_region
        %p1063 = scmp.lt.s32.totalorder %s75, 1
        %s1064 = scalar_select %p1063, %s75, 1
        %s1065 = smul.addr %s1064, 4
        %s1066 = smul.addr %s1065, 4
        %s1067 = scalar_lea.vmem %s49, %s1066
      $region124: #{transformer_decoder.1} parent=23 // pred_fallthru
        _
      // Predicated region
      $region125: #{transformer_decoder.1} parent=23 // pred_check
        %p1068 = pneg %p749
      $region126: #{transformer_decoder.1} parent=23 // pred_check_branch
        %1070 = sbr.rel (%p1068) target = $region128
      $region127: #{transformer_decoder.1} parent=23 // pred_region
        %p1071 = scmp.lt.s32.totalorder %s75, 1
        %s1072 = scalar_select %p1071, %s75, 1
        %s1073 = smul.addr %s1072, 4
        %s1074 = smul.addr %s1073, 4
        %s1075 = scalar_lea.vmem %s51, %s1074
      $region128: #{transformer_decoder.1} parent=23 // pred_fallthru
        _
      // Predicated region
      $region129: #{transformer_decoder.1} parent=23 // pred_check
        %p1076 = pneg %p775
      $region130: #{transformer_decoder.1} parent=23 // pred_check_branch
        %1078 = sbr.rel (%p1076) target = $region132
      $region131: #{transformer_decoder.1} parent=23 // pred_region
        %p1079 = scmp.lt.s32.totalorder %s75, 1
        %s1080 = scalar_select %p1079, %s75, 1
        %s1081 = smul.addr %s1080, 4
        %s1082 = smul.addr %s1081, 4
        %s1083 = scalar_lea.vmem %s53, %s1082
      $region132: #{transformer_decoder.1} parent=23 // pred_fallthru
        _
      // Predicated region
      $region133: #{transformer_decoder.1} parent=23 // pred_check
        %p1084 = pneg %p801
      $region134: #{transformer_decoder.1} parent=23 // pred_check_branch
        %1086 = sbr.rel (%p1084) target = $region136
      $region135: #{transformer_decoder.1} parent=23 // pred_region
        %p1087 = scmp.lt.s32.totalorder %s75, 1
        %s1088 = scalar_select %p1087, %s75, 1
        %s1089 = smul.addr %s1088, 8
        %s1090 = smul.addr %s1089, 4
        %s1091 = scalar_lea.vmem %s55, %s1090
      $region136: #{transformer_decoder.1} parent=23 // pred_fallthru
        _
    $region24: #{transformer_decoder.1} parent=5 // pred_fallthru
      _
    %p1092 = scmp.le.s32.totalorder 1, %s67
    %p1093 = scmp.lt.s32.totalorder %s67, 5
    %p1094 = pnand %p1092, %p1093
    %p1095 = pneg %p1094
    // Predicated region
    $region137: #{transformer_decoder.1} parent=5 // pred_check
      _
    $region138: #{transformer_decoder.1} parent=5 // pred_check_branch
      %1097 = sbr.rel (%p1094) target = $region140
    $region139: #{transformer_decoder.1} parent=5 // pred_region
      %s1098 = ssub.s32 %s67, 1
      %p1099 = scmp.lt.s32.totalorder %s76, 1
      %s1100 = scalar_select %p1099, %s76, 1
      %s1101 = smul.addr %s1100, 8
      %s1102 = scalar_lea.vmem %s1, %s1101
      %p1103 = pneg %p105
      %p1104 = pneg %p102
      %p1105 = scmp.lt.s32.totalorder %s76, 1
      %s1106 = scalar_select %p1105, %s76, 1
      %s1107 = smul.addr %s1106, 2
      %s1108 = smul.addr %s1107, 8
      %s1109 = scalar_lea.vmem %s3, %s1108
      %p1110 = pneg %p131
      %p1111 = pneg %p128
      %p1112 = scmp.lt.s32.totalorder %s76, 1
      %s1113 = scalar_select %p1112, %s76, 1
      %s1114 = smul.addr %s1113, 2
      %s1115 = smul.addr %s1114, 8
      %s1116 = scalar_lea.vmem %s5, %s1115
      %p1117 = pneg %p157
      %p1118 = pneg %p154
      %p1119 = scmp.lt.s32.totalorder %s76, 1
      %s1120 = scalar_select %p1119, %s76, 1
      %s1121 = smul.addr %s1120, 8
      %s1122 = scalar_lea.vmem %s7, %s1121
      %p1123 = pneg %p183
      %p1124 = pneg %p180
      %p1125 = scmp.lt.s32.totalorder %s77, 1
      %s1126 = scalar_select %p1125, %s77, 1
      %s1127 = scalar_lea.vmem %s9, %s1126
      %p1128 = pneg %p209
      %p1129 = pneg %p206
      %p1130 = scmp.lt.s32.totalorder %s77, 1
      %s1131 = scalar_select %p1130, %s77, 1
      %s1132 = scalar_lea.vmem %s11, %s1131
      %p1133 = pneg %p235
      %p1134 = pneg %p232
      %p1135 = scmp.lt.s32.totalorder %s77, 1
      %s1136 = scalar_select %p1135, %s77, 1
      %s1137 = scalar_lea.vmem %s13, %s1136
      %p1138 = pneg %p261
      %p1139 = pneg %p258
      %p1140 = scmp.lt.s32.totalorder %s77, 1
      %s1141 = scalar_select %p1140, %s77, 1
      %s1142 = scalar_lea.vmem %s15, %s1141
      %p1143 = pneg %p287
      %p1144 = pneg %p284
      %p1145 = scmp.lt.s32.totalorder %s77, 1
      %s1146 = scalar_select %p1145, %s77, 1
      %s1147 = scalar_lea.vmem %s17, %s1146
      %p1148 = pneg %p313
      %p1149 = pneg %p310
      %p1150 = scmp.lt.s32.totalorder %s77, 1
      %s1151 = scalar_select %p1150, %s77, 1
      %s1152 = scalar_lea.vmem %s19, %s1151
      %p1153 = pneg %p339
      %p1154 = pneg %p336
      %p1155 = scmp.lt.s32.totalorder %s77, 1
      %s1156 = scalar_select %p1155, %s77, 1
      %s1157 = smul.addr %s1156, 4
      %s1158 = smul.addr %s1157, 4
      %s1159 = scalar_lea.vmem %s21, %s1158
      %p1160 = pneg %p365
      %p1161 = pneg %p362
      %p1162 = scmp.lt.s32.totalorder %s77, 1
      %s1163 = scalar_select %p1162, %s77, 1
      %s1164 = smul.addr %s1163, 4
      %s1165 = smul.addr %s1164, 4
      %s1166 = scalar_lea.vmem %s23, %s1165
      %p1167 = pneg %p391
      %p1168 = pneg %p388
      %p1169 = scmp.lt.s32.totalorder %s77, 1
      %s1170 = scalar_select %p1169, %s77, 1
      %s1171 = smul.addr %s1170, 4
      %s1172 = smul.addr %s1171, 4
      %s1173 = scalar_lea.vmem %s25, %s1172
      %p1174 = pneg %p417
      %p1175 = pneg %p414
      %p1176 = scmp.lt.s32.totalorder %s77, 1
      %s1177 = scalar_select %p1176, %s77, 1
      %s1178 = smul.addr %s1177, 4
      %s1179 = smul.addr %s1178, 4
      %s1180 = scalar_lea.vmem %s27, %s1179
      %p1181 = pneg %p443
      %p1182 = pneg %p440
      %p1183 = scmp.lt.s32.totalorder %s77, 1
      %s1184 = scalar_select %p1183, %s77, 1
      %s1185 = scalar_lea.vmem %s29, %s1184
      %p1186 = pneg %p469
      %p1187 = pneg %p466
      %p1188 = scmp.lt.s32.totalorder %s77, 1
      %s1189 = scalar_select %p1188, %s77, 1
      %s1190 = scalar_lea.vmem %s31, %s1189
      %p1191 = pneg %p495
      %p1192 = pneg %p492
      %p1193 = scmp.lt.s32.totalorder %s77, 1
      %s1194 = scalar_select %p1193, %s77, 1
      %s1195 = scalar_lea.vmem %s33, %s1194
      %p1196 = pneg %p521
      %p1197 = pneg %p518
      %p1198 = scmp.lt.s32.totalorder %s77, 1
      %s1199 = scalar_select %p1198, %s77, 1
      %s1200 = scalar_lea.vmem %s35, %s1199
      %p1201 = pneg %p547
      %p1202 = pneg %p544
      %p1203 = scmp.lt.s32.totalorder %s77, 1
      %s1204 = scalar_select %p1203, %s77, 1
      %s1205 = scalar_lea.vmem %s37, %s1204
      %p1206 = pneg %p573
      %p1207 = pneg %p570
      %p1208 = scmp.lt.s32.totalorder %s77, 1
      %s1209 = scalar_select %p1208, %s77, 1
      %s1210 = scalar_lea.vmem %s39, %s1209
      %p1211 = pneg %p599
      %p1212 = pneg %p596
      %p1213 = scmp.lt.s32.totalorder %s77, 1
      %s1214 = scalar_select %p1213, %s77, 1
      %s1215 = scalar_lea.vmem %s41, %s1214
      %p1216 = pneg %p625
      %p1217 = pneg %p622
      %p1218 = scmp.lt.s32.totalorder %s77, 1
      %s1219 = scalar_select %p1218, %s77, 1
      %s1220 = scalar_lea.vmem %s43, %s1219
      %p1221 = pneg %p651
      %p1222 = pneg %p648
      %p1223 = scmp.lt.s32.totalorder %s77, 1
      %s1224 = scalar_select %p1223, %s77, 1
      %s1225 = scalar_lea.vmem %s45, %s1224
      %p1226 = pneg %p677
      %p1227 = pneg %p674
      %p1228 = scmp.lt.s32.totalorder %s77, 1
      %s1229 = scalar_select %p1228, %s77, 1
      %s1230 = smul.addr %s1229, 4
      %s1231 = smul.addr %s1230, 4
      %s1232 = scalar_lea.vmem %s47, %s1231
      %p1233 = pneg %p703
      %p1234 = pneg %p700
      %p1235 = scmp.lt.s32.totalorder %s77, 1
      %s1236 = scalar_select %p1235, %s77, 1
      %s1237 = smul.addr %s1236, 4
      %s1238 = smul.addr %s1237, 4
      %s1239 = scalar_lea.vmem %s49, %s1238
      %p1240 = pneg %p729
      %p1241 = pneg %p726
      %p1242 = scmp.lt.s32.totalorder %s77, 1
      %s1243 = scalar_select %p1242, %s77, 1
      %s1244 = smul.addr %s1243, 4
      %s1245 = smul.addr %s1244, 4
      %s1246 = scalar_lea.vmem %s51, %s1245
      %p1247 = pneg %p755
      %p1248 = pneg %p752
      %p1249 = scmp.lt.s32.totalorder %s77, 1
      %s1250 = scalar_select %p1249, %s77, 1
      %s1251 = smul.addr %s1250, 4
      %s1252 = smul.addr %s1251, 4
      %s1253 = scalar_lea.vmem %s53, %s1252
      %p1254 = pneg %p781
      %p1255 = pneg %p778
      %p1256 = scmp.lt.s32.totalorder %s77, 1
      %s1257 = scalar_select %p1256, %s77, 1
      %s1258 = smul.addr %s1257, 8
      %s1259 = smul.addr %s1258, 4
      %s1260 = scalar_lea.vmem %s55, %s1259
      %p1261 = pneg %p807
      %p1262 = pneg %p804
      %p1263 = pneg %p828
      %p1264 = pneg %p825
      %p1265 = pneg %p849
      %p1266 = pneg %p846
      %p1267 = pneg %p875
      %p1268 = pneg %p872
      %p1269 = scmp.lt.s32.totalorder %s76, 1
      %s1270 = scalar_select %p1269, %s76, 1
      %s1271 = smul.addr %s1270, 8
      %s1272 = scalar_lea.vmem %s61, %s1271
      %p1273 = scmp.lt.s32.totalorder %s76, 1
      %s1274 = scalar_select %p1273, %s76, 1
      %s1275 = smul.addr %s1274, 8
      %s1276 = scalar_lea.vmem %s1, %s1275
      %p1277 = scmp.lt.s32.totalorder %s76, 1
      %s1278 = scalar_select %p1277, %s76, 1
      %s1279 = smul.addr %s1278, 2
      %s1280 = smul.addr %s1279, 8
      %s1281 = scalar_lea.vmem %s3, %s1280
      %p1282 = scmp.lt.s32.totalorder %s76, 1
      %s1283 = scalar_select %p1282, %s76, 1
      %s1284 = smul.addr %s1283, 2
      %s1285 = smul.addr %s1284, 8
      %s1286 = scalar_lea.vmem %s5, %s1285
      %p1287 = scmp.lt.s32.totalorder %s76, 1
      %s1288 = scalar_select %p1287, %s76, 1
      %s1289 = smul.addr %s1288, 8
      %s1290 = scalar_lea.vmem %s7, %s1289
      %p1291 = scmp.lt.s32.totalorder %s77, 1
      %s1292 = scalar_select %p1291, %s77, 1
      %s1293 = scalar_lea.vmem %s9, %s1292
      %p1294 = scmp.lt.s32.totalorder %s77, 1
      %s1295 = scalar_select %p1294, %s77, 1
      %s1296 = scalar_lea.vmem %s11, %s1295
      %p1297 = scmp.lt.s32.totalorder %s77, 1
      %s1298 = scalar_select %p1297, %s77, 1
      %s1299 = scalar_lea.vmem %s13, %s1298
      %p1300 = scmp.lt.s32.totalorder %s77, 1
      %s1301 = scalar_select %p1300, %s77, 1
      %s1302 = scalar_lea.vmem %s15, %s1301
      %p1303 = scmp.lt.s32.totalorder %s77, 1
      %s1304 = scalar_select %p1303, %s77, 1
      %s1305 = scalar_lea.vmem %s17, %s1304
      %p1306 = scmp.lt.s32.totalorder %s77, 1
      %s1307 = scalar_select %p1306, %s77, 1
      %s1308 = scalar_lea.vmem %s19, %s1307
      %p1309 = scmp.lt.s32.totalorder %s77, 1
      %s1310 = scalar_select %p1309, %s77, 1
      %s1311 = smul.addr %s1310, 4
      %s1312 = smul.addr %s1311, 4
      %s1313 = scalar_lea.vmem %s21, %s1312
      %p1314 = scmp.lt.s32.totalorder %s77, 1
      %s1315 = scalar_select %p1314, %s77, 1
      %s1316 = smul.addr %s1315, 4
      %s1317 = smul.addr %s1316, 4
      %s1318 = scalar_lea.vmem %s23, %s1317
      %p1319 = scmp.lt.s32.totalorder %s77, 1
      %s1320 = scalar_select %p1319, %s77, 1
      %s1321 = smul.addr %s1320, 4
      %s1322 = smul.addr %s1321, 4
      %s1323 = scalar_lea.vmem %s25, %s1322
      %p1324 = scmp.lt.s32.totalorder %s77, 1
      %s1325 = scalar_select %p1324, %s77, 1
      %s1326 = smul.addr %s1325, 4
      %s1327 = smul.addr %s1326, 4
      %s1328 = scalar_lea.vmem %s27, %s1327
      %p1329 = scmp.lt.s32.totalorder %s77, 1
      %s1330 = scalar_select %p1329, %s77, 1
      %s1331 = scalar_lea.vmem %s29, %s1330
      %p1332 = scmp.lt.s32.totalorder %s77, 1
      %s1333 = scalar_select %p1332, %s77, 1
      %s1334 = scalar_lea.vmem %s31, %s1333
      %p1335 = scmp.lt.s32.totalorder %s77, 1
      %s1336 = scalar_select %p1335, %s77, 1
      %s1337 = scalar_lea.vmem %s33, %s1336
      %p1338 = scmp.lt.s32.totalorder %s77, 1
      %s1339 = scalar_select %p1338, %s77, 1
      %s1340 = scalar_lea.vmem %s35, %s1339
      %p1341 = scmp.lt.s32.totalorder %s77, 1
      %s1342 = scalar_select %p1341, %s77, 1
      %s1343 = scalar_lea.vmem %s37, %s1342
      %p1344 = scmp.lt.s32.totalorder %s77, 1
      %s1345 = scalar_select %p1344, %s77, 1
      %s1346 = scalar_lea.vmem %s39, %s1345
      %p1347 = scmp.lt.s32.totalorder %s77, 1
      %s1348 = scalar_select %p1347, %s77, 1
      %s1349 = scalar_lea.vmem %s41, %s1348
      %p1350 = scmp.lt.s32.totalorder %s77, 1
      %s1351 = scalar_select %p1350, %s77, 1
      %s1352 = scalar_lea.vmem %s43, %s1351
      %p1353 = scmp.lt.s32.totalorder %s77, 1
      %s1354 = scalar_select %p1353, %s77, 1
      %s1355 = scalar_lea.vmem %s45, %s1354
      %p1356 = scmp.lt.s32.totalorder %s77, 1
      %s1357 = scalar_select %p1356, %s77, 1
      %s1358 = smul.addr %s1357, 4
      %s1359 = smul.addr %s1358, 4
      %s1360 = scalar_lea.vmem %s47, %s1359
      %p1361 = scmp.lt.s32.totalorder %s77, 1
      %s1362 = scalar_select %p1361, %s77, 1
      %s1363 = smul.addr %s1362, 4
      %s1364 = smul.addr %s1363, 4
      %s1365 = scalar_lea.vmem %s49, %s1364
      %p1366 = scmp.lt.s32.totalorder %s77, 1
      %s1367 = scalar_select %p1366, %s77, 1
      %s1368 = smul.addr %s1367, 4
      %s1369 = smul.addr %s1368, 4
      %s1370 = scalar_lea.vmem %s51, %s1369
      %p1371 = scmp.lt.s32.totalorder %s77, 1
      %s1372 = scalar_select %p1371, %s77, 1
      %s1373 = smul.addr %s1372, 4
      %s1374 = smul.addr %s1373, 4
      %s1375 = scalar_lea.vmem %s53, %s1374
      %p1376 = scmp.lt.s32.totalorder %s77, 1
      %s1377 = scalar_select %p1376, %s77, 1
      %s1378 = smul.addr %s1377, 8
      %s1379 = smul.addr %s1378, 4
      %s1380 = scalar_lea.vmem %s55, %s1379
      %p1381 = scmp.lt.s32.totalorder %s76, 1
      %s1382 = scalar_select %p1381, %s76, 1
      %s1383 = smul.addr %s1382, 8
      %s1384 = scalar_lea.vmem %s61, %s1383
      %p1386 = scmp.eq.s32.totalorder %s77, 0
      // Predicated region
      $region141: #{transformer_decoder.1} parent=139 // pred_check
        %p1387 = pneg %p1386
      $region142: #{transformer_decoder.1} parent=139 // pred_check_branch
        %1389 = sbr.rel (%p1387) target = $region144
      $region143: #{transformer_decoder.1} parent=139 // pred_region
        %v1390 = vld [vmem:[%s1276] sm:$0xff]
        %vm1391 = vcmask 261120
        %1392 = vst.msk [vmem:[#allocation2] sm:$0xff] %vm1391, %v1390
        %v1393 = vld [vmem:[%s1281] sm:$0xff]
        %v1394 = vld [vmem:[%s1281 + $0x8] sm:$0xff]
        %v1395 = vld [vmem:[%s1286] sm:$0xff]
        %v1396 = vld [vmem:[%s1286 + $0x8] sm:$0xff]
        %v1397 = vadd.f32 %v1393, %v1395
        %v1398 = vadd.f32 %v1394, %v1396
        %1399 = vst.msk [vmem:[#allocation3] sm:$0xff] %vm1391, %v1397
        %1400 = vst.msk [vmem:[#allocation3 + $0x8] sm:$0xff] %vm1391, %v1398
      $region144: #{transformer_decoder.1} parent=139 // pred_fallthru
        _
      %v1401 = vld [vmem:[#allocation2] sm:$0xff]
      %v1402 = vld [vmem:[%s1290] sm:$0xff]
      %v1403 = vld [vmem:[%s1281] sm:$0xff]
      %v1404 = vld [vmem:[%s1281 + $0x8] sm:$0xff]
      %v1405 = vld [vmem:[#allocation3] sm:$0xff]
      %v1406 = vld [vmem:[#allocation3 + $0x8] sm:$0xff]
      %v1407 = vadd.f32 %v1401, %v1402
      %v1408 = vld [vmem:[%s1365] sm:$0xf]
      %v1409 = vld [vmem:[%s1365 + $0x4] sm:$0xf]
      %v1410 = vld [vmem:[%s1365 + $0x8] sm:$0xf]
      %v1411 = vld [vmem:[%s1365 + $0xc] sm:$0xf]
      %v1412 = vld [vmem:[%s1352] sm:$0x1]
      %v1413 = vpack.c.bf16 %v1407, %v1407
      %v1415 = vperm.slane %v1412, 0
      %v1421 = vunpack.c.l.b16 %v1408
      %v1422 = vunpack.c.l.b16 %v1409
      %v1423 = vunpack.c.l.b16 %v1410
      %v1424 = vunpack.c.l.b16 %v1411
      %v1425 = vpack.c.b16 %v1422, %v1421
      %v1426 = vpack.c.b16 %v1424, %v1423
      %vm1429 = vcmask 261120
      %v1431 = vsel %vm1429, %v1413, 0
      %1433 = vmatpush.bf16.msra.mxu0 0
      %1434 = vmatpush.bf16.msra.mxu0 0
      %1435 = vmatpush.bf16.msra.mxu0 0
      %1436 = vmatpush.bf16.msra.mxu0 0
      %1437 = vmatpush.bf16.msra.mxu0 0
      %1438 = vmatpush.bf16.msra.mxu0 0
      %1439 = vmatpush.bf16.msra.mxu0 %v1426
      %1440 = vmatpush.bf16.msra.mxu0 %v1425
      %1441 = vmatmul.bf16.gmra.mxu0 %v1431
      %v1442 = vpop.f32.mrf.mxu0
      %v1443 = vadd.f32 %v1415, %v1442
      %v1444 = vpop.f32.mrf.mxu0
      %1445 = vdwg.mxu0
      %v1446 = vld [vmem:[%s1370] sm:$0xf]
      %v1447 = vld [vmem:[%s1370 + $0x4] sm:$0xf]
      %v1448 = vld [vmem:[%s1370 + $0x8] sm:$0xf]
      %v1449 = vld [vmem:[%s1370 + $0xc] sm:$0xf]
      %v1450 = vld [vmem:[%s1355] sm:$0x1]
      %v1451 = vpack.c.bf16 %v1401, %v1401
      %v1453 = vperm.slane %v1450, 0
      %v1459 = vunpack.c.l.b16 %v1446
      %v1460 = vunpack.c.l.b16 %v1447
      %v1461 = vunpack.c.l.b16 %v1448
      %v1462 = vunpack.c.l.b16 %v1449
      %v1463 = vpack.c.b16 %v1460, %v1459
      %v1464 = vpack.c.b16 %v1462, %v1461
      %v1468 = vsel %vm1429, %v1451, 0
      %1470 = vmatpush.bf16.msra.mxu0 0
      %1471 = vmatpush.bf16.msra.mxu0 0
      %1472 = vmatpush.bf16.msra.mxu0 0
      %1473 = vmatpush.bf16.msra.mxu0 0
      %1474 = vmatpush.bf16.msra.mxu0 0
      %1475 = vmatpush.bf16.msra.mxu0 0
      %1476 = vmatpush.bf16.msra.mxu0 %v1464
      %1477 = vmatpush.bf16.msra.mxu0 %v1463
      %1478 = vmatmul.bf16.gmra.mxu0 %v1468
      %v1479 = vpop.f32.mrf.mxu0
      %v1480 = vadd.f32 %v1453, %v1479
      %v1481 = vpop.f32.mrf.mxu0
      %1482 = vdwg.mxu0
      %v1483 = vld [vmem:[%s1360] sm:$0xf]
      %v1484 = vld [vmem:[%s1360 + $0x4] sm:$0xf]
      %v1485 = vld [vmem:[%s1360 + $0x8] sm:$0xf]
      %v1486 = vld [vmem:[%s1360 + $0xc] sm:$0xf]
      %v1487 = vld [vmem:[%s1349] sm:$0x1]
      %v1488 = vpack.c.bf16 %v1443, %v1443
      %v1489 = vpack.c.bf16 %v1480, %v1480
      %1491 = vrot.lane.b32.xlu0 %v1488, 96
      %v1492 = vpop.permute.xlu0 %1491
      %vm1493 = vcmask 64512
      %v1495 = vsel %vm1493, %v1488, 0
      %v1498 = vsel %vm1493, %v1492, 0
      %1500 = vmatpush.bf16.xpose.msra.mxu0 0
      %1501 = vmatpush.bf16.xpose.msra.mxu0 0
      %1502 = vmatpush.bf16.xpose.msra.mxu0 0
      %1503 = vmatpush.bf16.xpose.msra.mxu0 0
      %1504 = vmatpush.bf16.xpose.msra.mxu0 0
      %1505 = vmatpush.bf16.xpose.msra.mxu0 0
      %1506 = vmatpush.bf16.xpose.msra.mxu0 0
      %1507 = vmatpush.bf16.xpose.msra.mxu0 %v1498
      %1508 = vmatmul.bf16.gmra.mxu0 %v1495
      %v1509 = vpop.f32.mrf.mxu0
      %v1510 = vadd.f32 0.0, %v1509
      %v1511 = vpop.f32.mrf.mxu0
      %1512 = vdwg.mxu0
      %v1513 = vsel %vm1493, %v1510, -inf
      %1514 = vmax.xlane.f32.xlu0 %v1513
      %v1515 = vpop.xlane.xlu0 %1514
      %v1516 = vsub.f32 %v1510, %v1515
      %v1517 = vmul.f32 %v1516, 1.442695
      %v1518 = vpow.pop %v1517
      %v1519 = vsel %vm1493, %v1518, 0.0
      %1520 = vadd.xlane.f32.xlu0 %v1519
      %v1521 = vpop.xlane.xlu0 %1520
      %v1522 = vrcp.pop %v1521
      %v1523 = vmul.f32 %v1518, %v1522
      %v1524 = vpack.c.bf16 %v1523, %v1523
      %v1526 = vsel %vm1493, %v1524, 0
      %vm1528 = vcmask 1043456
      %v1530 = vsel %vm1528, %v1489, 0
      %1532 = vmatpush.bf16.msra.mxu0 0
      %1533 = vmatpush.bf16.msra.mxu0 0
      %1534 = vmatpush.bf16.msra.mxu0 0
      %1535 = vmatpush.bf16.msra.mxu0 0
      %1536 = vmatpush.bf16.msra.mxu0 0
      %1537 = vmatpush.bf16.msra.mxu0 0
      %1538 = vmatpush.bf16.msra.mxu0 0
      %1539 = vmatpush.bf16.msra.mxu0 %v1530
      %1540 = vmatmul.bf16.gmra.mxu0 %v1526
      %v1541 = vpop.f32.mrf.mxu0
      %v1542 = vadd.f32 0.0, %v1541
      %v1543 = vpop.f32.mrf.mxu0
      %1544 = vdwg.mxu0
      %1545 = vrot.lane.b32.xlu0 %v1488, 120
      %v1546 = vpop.permute.xlu0 %1545
      %1547 = vrot.lane.b32.xlu0 %v1488, 88
      %v1548 = vpop.permute.xlu0 %1547
      %v1550 = vsel %vm1493, %v1546, 0
      %v1553 = vsel %vm1493, %v1548, 0
      %1555 = vmatpush.bf16.xpose.msra.mxu0 0
      %1556 = vmatpush.bf16.xpose.msra.mxu0 0
      %1557 = vmatpush.bf16.xpose.msra.mxu0 0
      %1558 = vmatpush.bf16.xpose.msra.mxu0 0
      %1559 = vmatpush.bf16.xpose.msra.mxu0 0
      %1560 = vmatpush.bf16.xpose.msra.mxu0 0
      %1561 = vmatpush.bf16.xpose.msra.mxu0 0
      %1562 = vmatpush.bf16.xpose.msra.mxu0 %v1553
      %1563 = vmatmul.bf16.gmra.mxu0 %v1550
      %v1564 = vpop.f32.mrf.mxu0
      %v1565 = vadd.f32 0.0, %v1564
      %v1566 = vpop.f32.mrf.mxu0
      %1567 = vdwg.mxu0
      %v1568 = vsel %vm1493, %v1565, -inf
      %1569 = vmax.xlane.f32.xlu0 %v1568
      %v1570 = vpop.xlane.xlu0 %1569
      %v1571 = vsub.f32 %v1565, %v1570
      %v1572 = vmul.f32 %v1571, 1.442695
      %v1573 = vpow.pop %v1572
      %v1574 = vsel %vm1493, %v1573, 0.0
      %1575 = vadd.xlane.f32.xlu0 %v1574
      %v1576 = vpop.xlane.xlu0 %1575
      %v1577 = vrcp.pop %v1576
      %v1578 = vmul.f32 %v1573, %v1577
      %v1579 = vpack.c.bf16 %v1578, %v1578
      %1581 = vrot.lane.b32.xlu0 %v1489, 120
      %v1582 = vpop.permute.xlu0 %1581
      %v1584 = vsel %vm1493, %v1579, 0
      %v1587 = vsel %vm1528, %v1582, 0
      %1589 = vmatpush.bf16.msra.mxu0 0
      %1590 = vmatpush.bf16.msra.mxu0 0
      %1591 = vmatpush.bf16.msra.mxu0 0
      %1592 = vmatpush.bf16.msra.mxu0 0
      %1593 = vmatpush.bf16.msra.mxu0 0
      %1594 = vmatpush.bf16.msra.mxu0 0
      %1595 = vmatpush.bf16.msra.mxu0 0
      %1596 = vmatpush.bf16.msra.mxu0 %v1587
      %1597 = vmatmul.bf16.gmra.mxu0 %v1584
      %v1598 = vpop.f32.mrf.mxu0
      %v1599 = vadd.f32 0.0, %v1598
      %v1600 = vpop.f32.mrf.mxu0
      %1601 = vdwg.mxu0
      %1602 = vrot.lane.b32.xlu0 %v1488, 112
      %v1603 = vpop.permute.xlu0 %1602
      %1604 = vrot.lane.b32.xlu0 %v1488, 80
      %v1605 = vpop.permute.xlu0 %1604
      %v1607 = vsel %vm1493, %v1603, 0
      %v1610 = vsel %vm1493, %v1605, 0
      %1612 = vmatpush.bf16.xpose.msra.mxu0 0
      %1613 = vmatpush.bf16.xpose.msra.mxu0 0
      %1614 = vmatpush.bf16.xpose.msra.mxu0 0
      %1615 = vmatpush.bf16.xpose.msra.mxu0 0
      %1616 = vmatpush.bf16.xpose.msra.mxu0 0
      %1617 = vmatpush.bf16.xpose.msra.mxu0 0
      %1618 = vmatpush.bf16.xpose.msra.mxu0 0
      %1619 = vmatpush.bf16.xpose.msra.mxu0 %v1610
      %1620 = vmatmul.bf16.gmra.mxu0 %v1607
      %v1621 = vpop.f32.mrf.mxu0
      %v1622 = vadd.f32 0.0, %v1621
      %v1623 = vpop.f32.mrf.mxu0
      %1624 = vdwg.mxu0
      %v1625 = vsel %vm1493, %v1622, -inf
      %1626 = vmax.xlane.f32.xlu0 %v1625
      %v1627 = vpop.xlane.xlu0 %1626
      %v1628 = vsub.f32 %v1622, %v1627
      %v1629 = vmul.f32 %v1628, 1.442695
      %v1630 = vpow.pop %v1629
      %v1631 = vsel %vm1493, %v1630, 0.0
      %1632 = vadd.xlane.f32.xlu0 %v1631
      %v1633 = vpop.xlane.xlu0 %1632
      %v1634 = vrcp.pop %v1633
      %v1635 = vmul.f32 %v1630, %v1634
      %v1636 = vpack.c.bf16 %v1635, %v1635
      %1637 = vrot.lane.b32.xlu0 %v1489, 112
      %v1638 = vpop.permute.xlu0 %1637
      %v1640 = vsel %vm1493, %v1636, 0
      %v1643 = vsel %vm1528, %v1638, 0
      %1645 = vmatpush.bf16.msra.mxu0 0
      %1646 = vmatpush.bf16.msra.mxu0 0
      %1647 = vmatpush.bf16.msra.mxu0 0
      %1648 = vmatpush.bf16.msra.mxu0 0
      %1649 = vmatpush.bf16.msra.mxu0 0
      %1650 = vmatpush.bf16.msra.mxu0 0
      %1651 = vmatpush.bf16.msra.mxu0 0
      %1652 = vmatpush.bf16.msra.mxu0 %v1643
      %1653 = vmatmul.bf16.gmra.mxu0 %v1640
      %v1654 = vpop.f32.mrf.mxu0
      %v1655 = vadd.f32 0.0, %v1654
      %v1656 = vpop.f32.mrf.mxu0
      %1657 = vdwg.mxu0
      %1658 = vrot.lane.b32.xlu0 %v1488, 104
      %v1659 = vpop.permute.xlu0 %1658
      %1660 = vrot.lane.b32.xlu0 %v1488, 72
      %v1661 = vpop.permute.xlu0 %1660
      %v1663 = vsel %vm1493, %v1659, 0
      %v1666 = vsel %vm1493, %v1661, 0
      %1668 = vmatpush.bf16.xpose.msra.mxu0 0
      %1669 = vmatpush.bf16.xpose.msra.mxu0 0
      %1670 = vmatpush.bf16.xpose.msra.mxu0 0
      %1671 = vmatpush.bf16.xpose.msra.mxu0 0
      %1672 = vmatpush.bf16.xpose.msra.mxu0 0
      %1673 = vmatpush.bf16.xpose.msra.mxu0 0
      %1674 = vmatpush.bf16.xpose.msra.mxu0 0
      %1675 = vmatpush.bf16.xpose.msra.mxu0 %v1666
      %1676 = vmatmul.bf16.gmra.mxu0 %v1663
      %v1677 = vpop.f32.mrf.mxu0
      %v1678 = vadd.f32 0.0, %v1677
      %v1679 = vpop.f32.mrf.mxu0
      %1680 = vdwg.mxu0
      %v1681 = vsel %vm1493, %v1678, -inf
      %1682 = vmax.xlane.f32.xlu0 %v1681
      %v1683 = vpop.xlane.xlu0 %1682
      %v1684 = vsub.f32 %v1678, %v1683
      %v1685 = vmul.f32 %v1684, 1.442695
      %v1686 = vpow.pop %v1685
      %v1687 = vsel %vm1493, %v1686, 0.0
      %1688 = vadd.xlane.f32.xlu0 %v1687
      %v1689 = vpop.xlane.xlu0 %1688
      %v1690 = vrcp.pop %v1689
      %v1691 = vmul.f32 %v1686, %v1690
      %v1692 = vpack.c.bf16 %v1691, %v1691
      %1693 = vrot.lane.b32.xlu0 %v1489, 104
      %v1694 = vpop.permute.xlu0 %1693
      %v1696 = vsel %vm1493, %v1692, 0
      %v1699 = vsel %vm1528, %v1694, 0
      %1701 = vmatpush.bf16.msra.mxu0 0
      %1702 = vmatpush.bf16.msra.mxu0 0
      %1703 = vmatpush.bf16.msra.mxu0 0
      %1704 = vmatpush.bf16.msra.mxu0 0
      %1705 = vmatpush.bf16.msra.mxu0 0
      %1706 = vmatpush.bf16.msra.mxu0 0
      %1707 = vmatpush.bf16.msra.mxu0 0
      %1708 = vmatpush.bf16.msra.mxu0 %v1699
      %1709 = vmatmul.bf16.gmra.mxu0 %v1696
      %v1710 = vpop.f32.mrf.mxu0
      %v1711 = vadd.f32 0.0, %v1710
      %v1712 = vpop.f32.mrf.mxu0
      %1713 = vdwg.mxu0
      %1715 = vrot.lane.b32.xlu0 %v1599, 8
      %v1716 = vpop.permute.xlu0 %1715
      %1719 = vrot.lane.b32.xlu0 %v1655, 16
      %v1720 = vpop.permute.xlu0 %1719
      %1723 = vrot.lane.b32.xlu0 %v1711, 24
      %v1724 = vpop.permute.xlu0 %1723
      %v1726 = vsel %vm1493, %v1542, %v1716
      %vm1727 = vcmask 130048
      %v1728 = vsel %vm1727, %v1726, %v1720
      %vm1729 = vcmask 195584
      %v1730 = vsel %vm1729, %v1728, %v1724
      %v1731 = vpack.c.bf16 %v1730, %v1730
      %v1733 = vperm.slane %v1487, 0
      %v1739 = vunpack.c.l.b16 %v1483
      %v1740 = vunpack.c.l.b16 %v1484
      %v1741 = vunpack.c.l.b16 %v1485
      %v1742 = vunpack.c.l.b16 %v1486
      %v1743 = vpack.c.b16 %v1740, %v1739
      %v1744 = vpack.c.b16 %v1742, %v1741
      %v1748 = vsel %vm1429, %v1731, 0
      %1750 = vmatpush.bf16.msra.mxu0 0
      %1751 = vmatpush.bf16.msra.mxu0 0
      %1752 = vmatpush.bf16.msra.mxu0 0
      %1753 = vmatpush.bf16.msra.mxu0 0
      %1754 = vmatpush.bf16.msra.mxu0 0
      %1755 = vmatpush.bf16.msra.mxu0 0
      %1756 = vmatpush.bf16.msra.mxu0 %v1744
      %1757 = vmatpush.bf16.msra.mxu0 %v1743
      %1758 = vmatmul.bf16.gmra.mxu0 %v1748
      %v1759 = vpop.f32.mrf.mxu0
      %v1760 = vadd.f32 %v1733, %v1759
      %v1761 = vpop.f32.mrf.mxu0
      %1762 = vdwg.mxu0
      %v1763 = vadd.f32 %v1401, %v1760
      %v1764 = vld [vmem:[%s1334] sm:$0x1]
      %v1765 = vld [vmem:[%s1331] sm:$0x1]
      %v1766 = vsel %vm1429, %v1763, 0.0
      %1767 = vadd.xlane.f32.xlu0 %v1766
      %v1768 = vpop.xlane.xlu0 %1767
      %v1769 = vrcp.pop 32.0
      %v1770 = vmul.f32 32.0, %v1769
      %v1771 = vsub.f32 1.0, %v1770
      %v1772 = vmul.f32 %v1769, %v1771
      %v1773 = vadd.f32 %v1769, %v1772
      %vm1774 = vweird.f32 %v1769
      %v1775 = vsel %vm1774, %v1769, %v1773
      %v1776 = vmul.f32 %v1768, %v1775
      %v1777 = vsub.f32 %v1763, %v1776
      %v1778 = vmul.f32 %v1777, %v1777
      %v1779 = vsel %vm1429, %v1778, 0.0
      %1780 = vadd.xlane.f32.xlu0 %v1779
      %v1781 = vpop.xlane.xlu0 %1780
      %v1782 = vmul.f32 %v1781, %v1775
      %v1783 = vadd.f32 %v1782, 1e-05
      %v1784 = vrsqrt.pop %v1783
      %v1785 = vmul.f32 %v1784, %v1783
      %v1786 = vmul.f32 %v1785, %v1784
      %v1787 = vmul.f32 0.5, %v1786
      %v1788 = vsub.f32 1.5, %v1787
      %v1789 = vmul.f32 %v1784, %v1788
      %vm1790 = vweird.f32 %v1783
      %vm1791 = vweird.f32 %v1784
      %vm1792 = vmor %vm1790, %vm1791
      %v1793 = vsel %vm1792, %v1784, %v1789
      %v1794 = vmul.f32 %v1777, %v1793
      %v1796 = vperm.slane %v1764, 0
      %v1798 = vmul.f32 %v1794, %v1796
      %v1800 = vperm.slane %v1765, 0
      %v1802 = vadd.f32 %v1798, %v1800
      %v1803 = vadd.f32 %v1802, %v1402
      %v1804 = vld [vmem:[%s1323] sm:$0xf]
      %v1805 = vld [vmem:[%s1323 + $0x4] sm:$0xf]
      %v1806 = vld [vmem:[%s1323 + $0x8] sm:$0xf]
      %v1807 = vld [vmem:[%s1323 + $0xc] sm:$0xf]
      %v1808 = vld [vmem:[%s1305] sm:$0x1]
      %v1809 = vpack.c.bf16 %v1803, %v1803
      %v1811 = vperm.slane %v1808, 0
      %v1817 = vunpack.c.l.b16 %v1804
      %v1818 = vunpack.c.l.b16 %v1805
      %v1819 = vunpack.c.l.b16 %v1806
      %v1820 = vunpack.c.l.b16 %v1807
      %v1821 = vpack.c.b16 %v1818, %v1817
      %v1822 = vpack.c.b16 %v1820, %v1819
      %v1826 = vsel %vm1429, %v1809, 0
      %1828 = vmatpush.bf16.msra.mxu0 0
      %1829 = vmatpush.bf16.msra.mxu0 0
      %1830 = vmatpush.bf16.msra.mxu0 0
      %1831 = vmatpush.bf16.msra.mxu0 0
      %1832 = vmatpush.bf16.msra.mxu0 0
      %1833 = vmatpush.bf16.msra.mxu0 0
      %1834 = vmatpush.bf16.msra.mxu0 %v1822
      %1835 = vmatpush.bf16.msra.mxu0 %v1821
      %1836 = vmatmul.bf16.gmra.mxu0 %v1826
      %v1837 = vpop.f32.mrf.mxu0
      %v1838 = vadd.f32 %v1811, %v1837
      %v1839 = vpop.f32.mrf.mxu0
      %1840 = vdwg.mxu0
      %v1841 = vld [vmem:[%s1313] sm:$0xf]
      %v1842 = vld [vmem:[%s1313 + $0x4] sm:$0xf]
      %v1843 = vld [vmem:[%s1313 + $0x8] sm:$0xf]
      %v1844 = vld [vmem:[%s1313 + $0xc] sm:$0xf]
      %v1845 = vld [vmem:[%s1299] sm:$0x1]
      %v1846 = vpack.c.bf16 %v1406, %v1405
      %v1848 = vperm.slane %v1845, 0
      %v1854 = vunpack.c.l.b16 %v1841
      %v1855 = vunpack.c.l.b16 %v1842
      %v1856 = vunpack.c.l.b16 %v1843
      %v1857 = vunpack.c.l.b16 %v1844
      %v1858 = vpack.c.b16 %v1855, %v1854
      %v1859 = vpack.c.b16 %v1857, %v1856
      %v1863 = vsel %vm1429, %v1846, 0
      %1865 = vmatpush.bf16.msra.mxu0 0
      %1866 = vmatpush.bf16.msra.mxu0 0
      %1867 = vmatpush.bf16.msra.mxu0 0
      %1868 = vmatpush.bf16.msra.mxu0 0
      %1869 = vmatpush.bf16.msra.mxu0 0
      %1870 = vmatpush.bf16.msra.mxu0 0
      %1871 = vmatpush.bf16.msra.mxu0 %v1859
      %1872 = vmatpush.bf16.msra.mxu0 %v1858
      %1873 = vmatmul.bf16.gmra.mxu0 %v1863
      %v1874 = vpop.f32.mrf.mxu0
      %v1875 = vadd.f32 %v1848, %v1874
      %v1876 = vpop.f32.mrf.mxu0
      %v1877 = vadd.f32 %v1848, %v1876
      %1878 = vdwg.mxu0
      %v1879 = vld [vmem:[%s1328] sm:$0xf]
      %v1880 = vld [vmem:[%s1328 + $0x4] sm:$0xf]
      %v1881 = vld [vmem:[%s1328 + $0x8] sm:$0xf]
      %v1882 = vld [vmem:[%s1328 + $0xc] sm:$0xf]
      %v1883 = vld [vmem:[%s1308] sm:$0x1]
      %v1884 = vpack.c.bf16 %v1404, %v1403
      %v1886 = vperm.slane %v1883, 0
      %v1892 = vunpack.c.l.b16 %v1879
      %v1893 = vunpack.c.l.b16 %v1880
      %v1894 = vunpack.c.l.b16 %v1881
      %v1895 = vunpack.c.l.b16 %v1882
      %v1896 = vpack.c.b16 %v1893, %v1892
      %v1897 = vpack.c.b16 %v1895, %v1894
      %v1901 = vsel %vm1429, %v1884, 0
      %1903 = vmatpush.bf16.msra.mxu0 0
      %1904 = vmatpush.bf16.msra.mxu0 0
      %1905 = vmatpush.bf16.msra.mxu0 0
      %1906 = vmatpush.bf16.msra.mxu0 0
      %1907 = vmatpush.bf16.msra.mxu0 0
      %1908 = vmatpush.bf16.msra.mxu0 0
      %1909 = vmatpush.bf16.msra.mxu0 %v1897
      %1910 = vmatpush.bf16.msra.mxu0 %v1896
      %1911 = vmatmul.bf16.gmra.mxu0 %v1901
      %v1912 = vpop.f32.mrf.mxu0
      %v1913 = vadd.f32 %v1886, %v1912
      %v1914 = vpop.f32.mrf.mxu0
      %v1915 = vadd.f32 %v1886, %v1914
      %1916 = vdwg.mxu0
      %v1917 = vld [vmem:[%s1318] sm:$0xf]
      %v1918 = vld [vmem:[%s1318 + $0x4] sm:$0xf]
      %v1919 = vld [vmem:[%s1318 + $0x8] sm:$0xf]
      %v1920 = vld [vmem:[%s1318 + $0xc] sm:$0xf]
      %v1921 = vld [vmem:[%s1302] sm:$0x1]
      %v1922 = vpack.c.bf16 %v1838, %v1838
      %v1923 = vpack.c.bf16 %v1877, %v1875
      %v1924 = vpack.c.bf16 %v1915, %v1913
      %v1926 = vsel %vm1493, %v1922, 0
      %v1929 = vsel %vm1493, %v1923, 0
      %1931 = vmatpush.bf16.xpose.msra.mxu0 0
      %1932 = vmatpush.bf16.xpose.msra.mxu0 0
      %1933 = vmatpush.bf16.xpose.msra.mxu0 0
      %1934 = vmatpush.bf16.xpose.msra.mxu0 0
      %1935 = vmatpush.bf16.xpose.msra.mxu0 0
      %1936 = vmatpush.bf16.xpose.msra.mxu0 0
      %1937 = vmatpush.bf16.xpose.msra.mxu0 0
      %1938 = vmatpush.bf16.xpose.msra.mxu0 %v1929
      %1939 = vmatmul.bf16.gmra.mxu0 %v1926
      %v1940 = vpop.f32.mrf.mxu0
      %v1941 = vadd.f32 0.0, %v1940
      %v1942 = vpop.f32.mrf.mxu0
      %1943 = vdwg.mxu0
      %v1944 = vsel %vm1727, %v1941, -inf
      %1945 = vmax.xlane.f32.xlu0 %v1944
      %v1946 = vpop.xlane.xlu0 %1945
      %v1947 = vsub.f32 %v1941, %v1946
      %v1948 = vmul.f32 %v1947, 1.442695
      %v1949 = vpow.pop %v1948
      %v1950 = vsel %vm1727, %v1949, 0.0
      %1951 = vadd.xlane.f32.xlu0 %v1950
      %v1952 = vpop.xlane.xlu0 %1951
      %v1953 = vrcp.pop %v1952
      %v1954 = vmul.f32 %v1949, %v1953
      %v1955 = vpack.c.bf16 %v1954, %v1954
      %v1957 = vsel %vm1727, %v1955, 0
      %1959 = vmatpush.bf16.msra.mxu0 0
      %1960 = vmatpush.bf16.msra.mxu0 0
      %1961 = vmatpush.bf16.msra.mxu0 0
      %1962 = vmatpush.bf16.msra.mxu0 0
      %1963 = vmatpush.bf16.msra.mxu0 0
      %1964 = vmatpush.bf16.msra.mxu0 0
      %1965 = vmatpush.bf16.msra.mxu0 0
      %1966 = vmatpush.bf16.msra.mxu0 %v1924
      %1967 = vmatmul.bf16.gmra.mxu0 %v1957
      %v1968 = vpop.f32.mrf.mxu0
      %v1969 = vadd.f32 0.0, %v1968
      %v1970 = vpop.f32.mrf.mxu0
      %1971 = vdwg.mxu0
      %1973 = vrot.lane.b32.xlu0 %v1922, 120
      %v1974 = vpop.permute.xlu0 %1973
      %1976 = vrot.lane.b32.xlu0 %v1923, 120
      %v1977 = vpop.permute.xlu0 %1976
      %v1979 = vsel %vm1493, %v1974, 0
      %v1982 = vsel %vm1493, %v1977, 0
      %1984 = vmatpush.bf16.xpose.msra.mxu0 0
      %1985 = vmatpush.bf16.xpose.msra.mxu0 0
      %1986 = vmatpush.bf16.xpose.msra.mxu0 0
      %1987 = vmatpush.bf16.xpose.msra.mxu0 0
      %1988 = vmatpush.bf16.xpose.msra.mxu0 0
      %1989 = vmatpush.bf16.xpose.msra.mxu0 0
      %1990 = vmatpush.bf16.xpose.msra.mxu0 0
      %1991 = vmatpush.bf16.xpose.msra.mxu0 %v1982
      %1992 = vmatmul.bf16.gmra.mxu0 %v1979
      %v1993 = vpop.f32.mrf.mxu0
      %v1994 = vadd.f32 0.0, %v1993
      %v1995 = vpop.f32.mrf.mxu0
      %1996 = vdwg.mxu0
      %v1997 = vsel %vm1727, %v1994, -inf
      %1998 = vmax.xlane.f32.xlu0 %v1997
      %v1999 = vpop.xlane.xlu0 %1998
      %v2000 = vsub.f32 %v1994, %v1999
      %v2001 = vmul.f32 %v2000, 1.442695
      %v2002 = vpow.pop %v2001
      %v2003 = vsel %vm1727, %v2002, 0.0
      %2004 = vadd.xlane.f32.xlu0 %v2003
      %v2005 = vpop.xlane.xlu0 %2004
      %v2006 = vrcp.pop %v2005
      %v2007 = vmul.f32 %v2002, %v2006
      %v2008 = vpack.c.bf16 %v2007, %v2007
      %2010 = vrot.lane.b32.xlu0 %v1924, 120
      %v2011 = vpop.permute.xlu0 %2010
      %v2014 = vsel %vm1727, %v2008, 0
      %2016 = vmatpush.bf16.msra.mxu0 0
      %2017 = vmatpush.bf16.msra.mxu0 0
      %2018 = vmatpush.bf16.msra.mxu0 0
      %2019 = vmatpush.bf16.msra.mxu0 0
      %2020 = vmatpush.bf16.msra.mxu0 0
      %2021 = vmatpush.bf16.msra.mxu0 0
      %2022 = vmatpush.bf16.msra.mxu0 0
      %2023 = vmatpush.bf16.msra.mxu0 %v2011
      %2024 = vmatmul.bf16.gmra.mxu0 %v2014
      %v2025 = vpop.f32.mrf.mxu0
      %v2026 = vadd.f32 0.0, %v2025
      %v2027 = vpop.f32.mrf.mxu0
      %2028 = vdwg.mxu0
      %2029 = vrot.lane.b32.xlu0 %v1922, 112
      %v2030 = vpop.permute.xlu0 %2029
      %2031 = vrot.lane.b32.xlu0 %v1923, 112
      %v2032 = vpop.permute.xlu0 %2031
      %v2034 = vsel %vm1493, %v2030, 0
      %v2037 = vsel %vm1493, %v2032, 0
      %2039 = vmatpush.bf16.xpose.msra.mxu0 0
      %2040 = vmatpush.bf16.xpose.msra.mxu0 0
      %2041 = vmatpush.bf16.xpose.msra.mxu0 0
      %2042 = vmatpush.bf16.xpose.msra.mxu0 0
      %2043 = vmatpush.bf16.xpose.msra.mxu0 0
      %2044 = vmatpush.bf16.xpose.msra.mxu0 0
      %2045 = vmatpush.bf16.xpose.msra.mxu0 0
      %2046 = vmatpush.bf16.xpose.msra.mxu0 %v2037
      %2047 = vmatmul.bf16.gmra.mxu0 %v2034
      %v2048 = vpop.f32.mrf.mxu0
      %v2049 = vadd.f32 0.0, %v2048
      %v2050 = vpop.f32.mrf.mxu0
      %2051 = vdwg.mxu0
      %v2052 = vsel %vm1727, %v2049, -inf
      %2053 = vmax.xlane.f32.xlu0 %v2052
      %v2054 = vpop.xlane.xlu0 %2053
      %v2055 = vsub.f32 %v2049, %v2054
      %v2056 = vmul.f32 %v2055, 1.442695
      %v2057 = vpow.pop %v2056
      %v2058 = vsel %vm1727, %v2057, 0.0
      %2059 = vadd.xlane.f32.xlu0 %v2058
      %v2060 = vpop.xlane.xlu0 %2059
      %v2061 = vrcp.pop %v2060
      %v2062 = vmul.f32 %v2057, %v2061
      %v2063 = vpack.c.bf16 %v2062, %v2062
      %2064 = vrot.lane.b32.xlu0 %v1924, 112
      %v2065 = vpop.permute.xlu0 %2064
      %v2068 = vsel %vm1727, %v2063, 0
      %2070 = vmatpush.bf16.msra.mxu0 0
      %2071 = vmatpush.bf16.msra.mxu0 0
      %2072 = vmatpush.bf16.msra.mxu0 0
      %2073 = vmatpush.bf16.msra.mxu0 0
      %2074 = vmatpush.bf16.msra.mxu0 0
      %2075 = vmatpush.bf16.msra.mxu0 0
      %2076 = vmatpush.bf16.msra.mxu0 0
      %2077 = vmatpush.bf16.msra.mxu0 %v2065
      %2078 = vmatmul.bf16.gmra.mxu0 %v2068
      %v2079 = vpop.f32.mrf.mxu0
      %v2080 = vadd.f32 0.0, %v2079
      %v2081 = vpop.f32.mrf.mxu0
      %2082 = vdwg.mxu0
      %2083 = vrot.lane.b32.xlu0 %v1922, 104
      %v2084 = vpop.permute.xlu0 %2083
      %2085 = vrot.lane.b32.xlu0 %v1923, 104
      %v2086 = vpop.permute.xlu0 %2085
      %v2088 = vsel %vm1493, %v2084, 0
      %v2091 = vsel %vm1493, %v2086, 0
      %2093 = vmatpush.bf16.xpose.msra.mxu0 0
      %2094 = vmatpush.bf16.xpose.msra.mxu0 0
      %2095 = vmatpush.bf16.xpose.msra.mxu0 0
      %2096 = vmatpush.bf16.xpose.msra.mxu0 0
      %2097 = vmatpush.bf16.xpose.msra.mxu0 0
      %2098 = vmatpush.bf16.xpose.msra.mxu0 0
      %2099 = vmatpush.bf16.xpose.msra.mxu0 0
      %2100 = vmatpush.bf16.xpose.msra.mxu0 %v2091
      %2101 = vmatmul.bf16.gmra.mxu0 %v2088
      %v2102 = vpop.f32.mrf.mxu0
      %v2103 = vadd.f32 0.0, %v2102
      %v2104 = vpop.f32.mrf.mxu0
      %2105 = vdwg.mxu0
      %v2106 = vsel %vm1727, %v2103, -inf
      %2107 = vmax.xlane.f32.xlu0 %v2106
      %v2108 = vpop.xlane.xlu0 %2107
      %v2109 = vsub.f32 %v2103, %v2108
      %v2110 = vmul.f32 %v2109, 1.442695
      %v2111 = vpow.pop %v2110
      %v2112 = vsel %vm1727, %v2111, 0.0
      %2113 = vadd.xlane.f32.xlu0 %v2112
      %v2114 = vpop.xlane.xlu0 %2113
      %v2115 = vrcp.pop %v2114
      %v2116 = vmul.f32 %v2111, %v2115
      %v2117 = vpack.c.bf16 %v2116, %v2116
      %2118 = vrot.lane.b32.xlu0 %v1924, 104
      %v2119 = vpop.permute.xlu0 %2118
      %v2122 = vsel %vm1727, %v2117, 0
      %2124 = vmatpush.bf16.msra.mxu0 0
      %2125 = vmatpush.bf16.msra.mxu0 0
      %2126 = vmatpush.bf16.msra.mxu0 0
      %2127 = vmatpush.bf16.msra.mxu0 0
      %2128 = vmatpush.bf16.msra.mxu0 0
      %2129 = vmatpush.bf16.msra.mxu0 0
      %2130 = vmatpush.bf16.msra.mxu0 0
      %2131 = vmatpush.bf16.msra.mxu0 %v2119
      %2132 = vmatmul.bf16.gmra.mxu0 %v2122
      %v2133 = vpop.f32.mrf.mxu0
      %v2134 = vadd.f32 0.0, %v2133
      %v2135 = vpop.f32.mrf.mxu0
      %2136 = vdwg.mxu0
      %2138 = vrot.lane.b32.xlu0 %v2026, 8
      %v2139 = vpop.permute.xlu0 %2138
      %2142 = vrot.lane.b32.xlu0 %v2080, 16
      %v2143 = vpop.permute.xlu0 %2142
      %2146 = vrot.lane.b32.xlu0 %v2134, 24
      %v2147 = vpop.permute.xlu0 %2146
      %v2149 = vsel %vm1493, %v1969, %v2139
      %v2150 = vsel %vm1727, %v2149, %v2143
      %v2151 = vsel %vm1729, %v2150, %v2147
      %v2152 = vpack.c.bf16 %v2151, %v2151
      %v2154 = vperm.slane %v1921, 0
      %v2160 = vunpack.c.l.b16 %v1917
      %v2161 = vunpack.c.l.b16 %v1918
      %v2162 = vunpack.c.l.b16 %v1919
      %v2163 = vunpack.c.l.b16 %v1920
      %v2164 = vpack.c.b16 %v2161, %v2160
      %v2165 = vpack.c.b16 %v2163, %v2162
      %v2169 = vsel %vm1429, %v2152, 0
      %2171 = vmatpush.bf16.msra.mxu0 0
      %2172 = vmatpush.bf16.msra.mxu0 0
      %2173 = vmatpush.bf16.msra.mxu0 0
      %2174 = vmatpush.bf16.msra.mxu0 0
      %2175 = vmatpush.bf16.msra.mxu0 0
      %2176 = vmatpush.bf16.msra.mxu0 0
      %2177 = vmatpush.bf16.msra.mxu0 %v2165
      %2178 = vmatpush.bf16.msra.mxu0 %v2164
      %2179 = vmatmul.bf16.gmra.mxu0 %v2169
      %v2180 = vpop.f32.mrf.mxu0
      %v2181 = vadd.f32 %v2154, %v2180
      %v2182 = vpop.f32.mrf.mxu0
      %2183 = vdwg.mxu0
      %v2184 = vadd.f32 %v1802, %v2181
      %v2185 = vld [vmem:[%s1340] sm:$0x1]
      %v2186 = vld [vmem:[%s1337] sm:$0x1]
      %v2187 = vsel %vm1429, %v2184, 0.0
      %2188 = vadd.xlane.f32.xlu0 %v2187
      %v2189 = vpop.xlane.xlu0 %2188
      %v2190 = vmul.f32 %v2189, %v1775
      %v2191 = vsub.f32 %v2184, %v2190
      %v2192 = vmul.f32 %v2191, %v2191
      %v2193 = vsel %vm1429, %v2192, 0.0
      %2194 = vadd.xlane.f32.xlu0 %v2193
      %v2195 = vpop.xlane.xlu0 %2194
      %v2196 = vmul.f32 %v2195, %v1775
      %v2197 = vadd.f32 %v2196, 1e-05
      %v2198 = vrsqrt.pop %v2197
      %v2199 = vmul.f32 %v2198, %v2197
      %v2200 = vmul.f32 %v2199, %v2198
      %v2201 = vmul.f32 0.5, %v2200
      %v2202 = vsub.f32 1.5, %v2201
      %v2203 = vmul.f32 %v2198, %v2202
      %vm2204 = vweird.f32 %v2197
      %vm2205 = vweird.f32 %v2198
      %vm2206 = vmor %vm2204, %vm2205
      %v2207 = vsel %vm2206, %v2198, %v2203
      %v2208 = vmul.f32 %v2191, %v2207
      %v2210 = vperm.slane %v2185, 0
      %v2212 = vmul.f32 %v2208, %v2210
      %v2214 = vperm.slane %v2186, 0
      %v2216 = vadd.f32 %v2212, %v2214
      %v2217 = vld [vmem:[%s1375] sm:$0xf]
      %v2218 = vld [vmem:[%s1375 + $0x4] sm:$0xf]
      %v2219 = vld [vmem:[%s1375 + $0x8] sm:$0xf]
      %v2220 = vld [vmem:[%s1375 + $0xc] sm:$0xf]
      %v2221 = vld [vmem:[%s1293] sm:$0x1]
      %v2222 = vpack.c.bf16 %v2216, %v2216
      %v2224 = vperm.slane %v2221, 0
      %v2230 = vunpack.c.l.b16 %v2217
      %v2231 = vunpack.c.l.b16 %v2218
      %v2232 = vunpack.c.l.b16 %v2219
      %v2233 = vunpack.c.l.b16 %v2220
      %v2234 = vpack.c.b16 %v2231, %v2230
      %v2235 = vpack.c.b16 %v2233, %v2232
      %v2239 = vsel %vm1429, %v2222, 0
      %2241 = vmatpush.bf16.msra.mxu0 0
      %2242 = vmatpush.bf16.msra.mxu0 0
      %2243 = vmatpush.bf16.msra.mxu0 0
      %2244 = vmatpush.bf16.msra.mxu0 0
      %2245 = vmatpush.bf16.msra.mxu0 0
      %2246 = vmatpush.bf16.msra.mxu0 0
      %2247 = vmatpush.bf16.msra.mxu0 %v2235
      %2248 = vmatpush.bf16.msra.mxu0 %v2234
      %2249 = vmatmul.bf16.gmra.mxu0 %v2239
      %v2250 = vpop.f32.mrf.mxu0
      %v2251 = vadd.f32 %v2224, %v2250
      %v2252 = vpop.f32.mrf.mxu0
      %2253 = vdwg.mxu0
      %v2254 = vmax.f32 %v2251, 0.0
      %v2255 = vld [vmem:[%s1380] sm:$0xf]
      %v2256 = vld [vmem:[%s1380 + $0x4] sm:$0xf]
      %v2257 = vld [vmem:[%s1380 + $0x8] sm:$0xf]
      %v2258 = vld [vmem:[%s1380 + $0xc] sm:$0xf]
      %v2259 = vld [vmem:[%s1380 + $0x10] sm:$0xf]
      %v2260 = vld [vmem:[%s1380 + $0x14] sm:$0xf]
      %v2261 = vld [vmem:[%s1380 + $0x18] sm:$0xf]
      %v2262 = vld [vmem:[%s1380 + $0x1c] sm:$0xf]
      %v2263 = vld [vmem:[%s1296] sm:$0x1]
      %v2264 = vpack.c.bf16 %v2254, %v2254
      %v2266 = vperm.slane %v2263, 0
      %v2276 = vunpack.c.l.b16 %v2255
      %v2277 = vunpack.c.l.b16 %v2256
      %v2278 = vunpack.c.l.b16 %v2257
      %v2279 = vunpack.c.l.b16 %v2258
      %v2280 = vunpack.c.l.b16 %v2259
      %v2281 = vunpack.c.l.b16 %v2260
      %v2282 = vunpack.c.l.b16 %v2261
      %v2283 = vunpack.c.l.b16 %v2262
      %v2284 = vpack.c.b16 %v2277, %v2276
      %v2285 = vpack.c.b16 %v2279, %v2278
      %v2286 = vpack.c.b16 %v2281, %v2280
      %v2287 = vpack.c.b16 %v2283, %v2282
      %vm2292 = vcmask 523264
      %v2294 = vsel %vm2292, %v2264, 0
      %2296 = vmatpush.bf16.msra.mxu0 0
      %2297 = vmatpush.bf16.msra.mxu0 0
      %2298 = vmatpush.bf16.msra.mxu0 0
      %2299 = vmatpush.bf16.msra.mxu0 0
      %2300 = vmatpush.bf16.msra.mxu0 %v2287
      %2301 = vmatpush.bf16.msra.mxu0 %v2286
      %2302 = vmatpush.bf16.msra.mxu0 %v2285
      %2303 = vmatpush.bf16.msra.mxu0 %v2284
      %2304 = vmatmul.bf16.gmra.mxu0 %v2294
      %v2305 = vpop.f32.mrf.mxu0
      %v2306 = vadd.f32 %v2266, %v2305
      %v2307 = vpop.f32.mrf.mxu0
      %2308 = vdwg.mxu0
      %v2309 = vadd.f32 %v2216, %v2306
      %v2310 = vld [vmem:[%s1346] sm:$0x1]
      %v2311 = vld [vmem:[%s1343] sm:$0x1]
      %v2312 = vsel %vm1429, %v2309, 0.0
      %2313 = vadd.xlane.f32.xlu0 %v2312
      %v2314 = vpop.xlane.xlu0 %2313
      %v2315 = vmul.f32 %v2314, %v1775
      %v2316 = vsub.f32 %v2309, %v2315
      %v2317 = vmul.f32 %v2316, %v2316
      %v2318 = vsel %vm1429, %v2317, 0.0
      %2319 = vadd.xlane.f32.xlu0 %v2318
      %v2320 = vpop.xlane.xlu0 %2319
      %v2321 = vmul.f32 %v2320, %v1775
      %v2322 = vadd.f32 %v2321, 1e-05
      %v2323 = vrsqrt.pop %v2322
      %v2324 = vmul.f32 %v2323, %v2322
      %v2325 = vmul.f32 %v2324, %v2323
      %v2326 = vmul.f32 0.5, %v2325
      %v2327 = vsub.f32 1.5, %v2326
      %v2328 = vmul.f32 %v2323, %v2327
      %vm2329 = vweird.f32 %v2322
      %vm2330 = vweird.f32 %v2323
      %vm2331 = vmor %vm2329, %vm2330
      %v2332 = vsel %vm2331, %v2323, %v2328
      %v2333 = vmul.f32 %v2316, %v2332
      %v2335 = vperm.slane %v2310, 0
      %v2337 = vmul.f32 %v2333, %v2335
      %v2339 = vperm.slane %v2311, 0
      %v2341 = vadd.f32 %v2337, %v2339
      %2342 = vst.msk [vmem:[#allocation2] sm:$0xff] %vm1429, %v2341
      %p2343 = scmp.eq.s32.totalorder %s77, 1
      // Predicated region
      $region145: #{transformer_decoder.1} parent=139 // pred_check
        %p2344 = pneg %p2343
      $region146: #{transformer_decoder.1} parent=139 // pred_check_branch
        %2346 = sbr.rel (%p2344) target = $region148
      $region147: #{transformer_decoder.1} parent=139 // pred_region
        %v2347 = vld [vmem:[%s57] sm:$0x1]
        %v2348 = vld [vmem:[%s59] sm:$0x1]
        %v2349 = vsel %vm1429, %v2341, 0.0
        %2350 = vadd.xlane.f32.xlu0 %v2349
        %v2351 = vpop.xlane.xlu0 %2350
        %v2352 = vmul.f32 %v2351, %v1775
        %v2353 = vsub.f32 %v2341, %v2352
        %v2354 = vmul.f32 %v2353, %v2353
        %v2355 = vsel %vm1429, %v2354, 0.0
        %2356 = vadd.xlane.f32.xlu0 %v2355
        %v2357 = vpop.xlane.xlu0 %2356
        %v2358 = vmul.f32 %v2357, %v1775
        %v2359 = vadd.f32 %v2358, 1e-05
        %v2360 = vrsqrt.pop %v2359
        %v2361 = vmul.f32 %v2360, %v2359
        %v2362 = vmul.f32 %v2361, %v2360
        %v2363 = vmul.f32 0.5, %v2362
        %v2364 = vsub.f32 1.5, %v2363
        %v2365 = vmul.f32 %v2360, %v2364
        %vm2366 = vweird.f32 %v2359
        %vm2367 = vweird.f32 %v2360
        %vm2368 = vmor %vm2366, %vm2367
        %v2369 = vsel %vm2368, %v2360, %v2365
        %v2370 = vmul.f32 %v2353, %v2369
        %v2372 = vperm.slane %v2347, 0
        %v2374 = vmul.f32 %v2370, %v2372
        %v2376 = vperm.slane %v2348, 0
        %v2378 = vadd.f32 %v2374, %v2376
        %2379 = vst.msk [vmem:[%s1384] sm:$0xff] %vm1429, %v2378
      $region148: #{transformer_decoder.1} parent=139 // pred_fallthru
        _
      %p2380 = scmp.lt.s32.totalorder %s76, 1
      %s2381 = scalar_select %p2380, %s76, 1
      %s2382 = smul.addr %s2381, 8
      %s2383 = scalar_lea.vmem %s61, %s2382
      // Predicated region
      $region149: #{transformer_decoder.1} parent=139 // pred_check
        %p2384 = pneg %p872
      $region150: #{transformer_decoder.1} parent=139 // pred_check_branch
        %2386 = sbr.rel (%p2384) target = $region152
      $region151: #{transformer_decoder.1} parent=139 // pred_region
        _
      $region152: #{transformer_decoder.1} parent=139 // pred_fallthru
        _
    $region140: #{transformer_decoder.1} parent=5 // pred_fallthru
      _
    %p2387 = scmp.le.s32.totalorder 2, %s67
    // Predicated region
    $region153: #{transformer_decoder.1} parent=5 // pred_check
      %p2388 = pneg %p2387
    $region154: #{transformer_decoder.1} parent=5 // pred_check_branch
      %2390 = sbr.rel (%p2388) target = $region156
    $region155: #{transformer_decoder.1} parent=5 // pred_region
      %s2391 = ssub.s32 %s67, 2
      // Predicated region
      $region157: #{transformer_decoder.1} parent=155 // pred_check
        %p2392 = pneg %p878
      $region158: #{transformer_decoder.1} parent=155 // pred_check_branch
        %2394 = sbr.rel (%p2392) target = $region160
      $region159: #{transformer_decoder.1} parent=155 // pred_region
        %p2395 = scmp.lt.s32.totalorder %s78, 1
        %s2396 = scalar_select %p2395, %s78, 1
        %s2397 = smul.addr %s2396, 8
        %s2398 = scalar_lea.vmem %s61, %s2397
      $region160: #{transformer_decoder.1} parent=155 // pred_fallthru
        _
    $region156: #{transformer_decoder.1} parent=5 // pred_fallthru
      _
  $region6: #{transformer_decoder.1} parent=0 // loop_footer
    %s71 = sadd.s32 1, %s67
  $region7: #{transformer_decoder.1} parent=0 // loop_footer_branch
    %66 = sbr.rel target = $region3
  $region8: #{transformer_decoder.1} parent=0 // loop_exit
    _

</llo_original>
